<compile_context>
chip_gen: v5e
topology: v5e:2x2
jax: 0.10.0
libtpu: 0.0.40
codegen_flags: <defaults>
</compile_context>

<pallas_src>
import functools
import math

import jax
import jax.numpy as jnp
from jax.experimental import pallas as pl
from jax.experimental.pallas import tpu as pltpu

_VMEM_LIMIT = 32 * 1024 * 1024   # within scoped-VMEM budget on v5e/v6e/v7x


def _full_spec(arr):
    """BlockSpec for a small grid-invariant operand (whole array every step)."""
    zeros = (0,) * arr.ndim
    return pl.BlockSpec(arr.shape, lambda *_: zeros)


def _bn_node_block(n):
    """Largest multiple-of-8 divisor of n that leaves >=2 blocks; else the full
    dim (never 1 -> no degenerate grids, and the block stays (8,128)-legal)."""
    best = n
    for d in range(8, n // 2 + 1, 8):
        if n % d == 0:
            best = d
    return best


# --------------------------------------------------------------------------- #
# Grid-invariant weight packing (built once in the wrapper; tiny arrays).
# --------------------------------------------------------------------------- #
def _temporal_band(wc, bc, w1, b1, t_in, cin, co, k):
    """Pack causal_conv (2*Co) + conv1 (Co) of a TemporalConv into ONE banded
    matmul:  X (N, T*Cin) @ band (T*Cin, 3*Tout*Co)  ->  [p | q | temp] slabs,
    each slab folded (t, channel) on the lane axis.  Flat tap layout matches
    the previous version: row k*Cin + c  <->  torch W[o, c, 0, k]."""
    t_out = t_in - k + 1
    tc = t_out * co
    w = jnp.concatenate([wc, w1], axis=1).astype(jnp.float32)     # (K*Cin, 3*Co)
    w5 = w.reshape(k, cin, 3, co)                                 # [k, c, j, o]
    band = jnp.zeros((t_in, cin, 3, t_out, co), jnp.float32)
    for t in range(t_out):                                        # static, tiny
        band = band.at[t:t + k, :, :, t, :].set(w5)
    band = band.reshape(t_in * cin, 3 * tc)
    b = jnp.concatenate([bc, b1], axis=1).astype(jnp.float32).reshape(3, 1, co)
    bias = jnp.broadcast_to(b, (3, t_out, co)).reshape(1, 3 * tc)
    return band, bias


def _theta_band(th1, th2, th3, tp):
    """Fuse [theta1 | theta2 | theta3] and block-diag-expand over the folded
    time axis:  (L, C, Cs) x3  ->  (L, Tp*C, 3*Tp*Cs), so one matmul applies
    all three thetas to every time step of the (N, Tp*C) node slab."""
    num_layers, c, cs = th1.shape
    ths = jnp.stack([th1, th2, th3], axis=2).astype(jnp.float32)  # (L, C, 3, Cs)
    band = jnp.zeros((num_layers, tp, c, 3, tp, cs), jnp.float32)
    for t in range(tp):                                           # static, tiny
        band = band.at[:, t, :, :, t, :].set(ths)
    return band.reshape(num_layers, tp * c, 3 * tp * cs)


# --------------------------------------------------------------------------- #
# Kernel 1: fused temporal1 -> 6-layer het-GCN -> temporal2 (one batch element
# per grid step; everything stays resident in VMEM, lane axis = time*channel).
# --------------------------------------------------------------------------- #
def _fused_kernel(x_ref, w1_ref, b1_ref, a00_ref, ac0_ref, a11_ref, ac1_ref,
                  tha_ref, thb_ref, w2_ref, b2_ref, o_ref, *, n0, tpcs):
    x = x_ref[0]                                    # (N, T*Cin), lane-dense
    # ---- temporal1: one banded matmul + gate over the whole (N, Tp*Co) slab
    cc = jnp.dot(x, w1_ref[...], preferred_element_type=jnp.float32) + b1_ref[...]
    t1 = (cc[:, :tpcs] + cc[:, 2 * tpcs:]) * jax.nn.sigmoid(cc[:, tpcs:2 * tpcs])

    x0res = t1[:n0]                                 # residuals: ORIGINAL t1 slices
    x1res = t1[n0:]

    a00 = a00_ref[...]
    ac0 = ac0_ref[...]                              # [A01@A10 | A01]   (n0, N)
    a11 = a11_ref[...]
    ac1 = ac1_ref[...]                              # [A10@A01 | A10]   (n1, N)

    def het_gcn(xcat, xres, a_self, a_cat, wth, self_is_type0):
        # single fused [th1|th2|th3] matmul on the concatenated node slab
        yall = jnp.dot(xcat, wth, preferred_element_type=jnp.float32)  # (N, 3*Tp*Cs)
        if self_is_type0:
            y1 = yall[:n0, :tpcs]                                       # self . th1
            y23 = jnp.concatenate([yall[:n0, tpcs:2 * tpcs],            # self . th2
                                   yall[n0:, 2 * tpcs:]], axis=0)       # other . th3
        else:
            y1 = yall[n0:, :tpcs]
            y23 = jnp.concatenate([yall[n0:, tpcs:2 * tpcs],
                                   yall[:n0, 2 * tpcs:]], axis=0)
        # adjacency contraction: plain 2-D matmuls, output width Tp*Cs
        z1 = jnp.dot(a_self, y1, preferred_element_type=jnp.float32)
        z23 = jnp.dot(a_cat, y23, preferred_element_type=jnp.float32)
        v = jnp.maximum((jnp.maximum(z1, 0.0) + jax.nn.sigmoid(z23)) * 0.5, 0.0)
        return jnp.maximum(0.9 * v + 0.1 * xres, 0.0)

    u0, u1 = x0res, x1res
    for layer in range(tha_ref.shape[0]):           # static unroll: 6 layers
        u0 = het_gcn(jnp.concatenate([u0, u1], axis=0), x0res,
                     a00, ac0, tha_ref[layer], True)
        u1 = het_gcn(jnp.concatenate([u0, u1], axis=0), x1res,
                     a11, ac1, thb_ref[layer], False)

    # ---- temporal2: one banded matmul + gate
    u = jnp.concatenate([u0, u1], axis=0)           # (N, Tp*Cs)
    cc2 = jnp.dot(u, w2_ref[...], preferred_element_type=jnp.float32) + b2_ref[...]
    t2c = cc2.shape[-1] // 3
    out = (cc2[:, :t2c] + cc2[:, 2 * t2c:]) * jax.nn.sigmoid(cc2[:, t2c:2 * t2c])
    o_ref[0] = out.astype(o_ref.dtype)              # (N, Tout2*Co), lane-dense


# --------------------------------------------------------------------------- #
# Kernel 2: BatchNorm2d(num_nodes), training mode, one-pass statistics on the
# lane-dense (B, nb, Tout2*Co) block (stats per node over batch & time*chan).
# --------------------------------------------------------------------------- #
def _bn_kernel(x_ref, g_ref, b_ref, o_ref, *, eps):
    x = x_ref[...]                                  # (B, nb, F)
    cnt = x.shape[0] * x.shape[2]
    s1 = jnp.sum(jnp.sum(x, axis=2, keepdims=True), axis=0, keepdims=True)
    s2 = jnp.sum(jnp.sum(x * x, axis=2, keepdims=True), axis=0, keepdims=True)
    mean = s1 / cnt
    var = s2 / cnt - mean * mean                    # biased variance
    xn = (x - mean) * jax.lax.rsqrt(var + eps)
    o_ref[...] = (xn * g_ref[...] + b_ref[...]).astype(o_ref.dtype)


def _batch_norm_folded(x, gamma, beta, *, eps=1e-5):
    # x: (B, N, F) with F = Tout2*Co folded; stats per node over (B, F).
    B, N, F = x.shape
    nb = _bn_node_block(N)
    g = gamma.reshape(1, N, 1).astype(jnp.float32)
    b = beta.reshape(1, N, 1).astype(jnp.float32)
    return pl.pallas_call(
        functools.partial(_bn_kernel, eps=eps),
        grid=(N // nb,),
        in_specs=[pl.BlockSpec((B, nb, F), lambda i: (0, i, 0)),
                  pl.BlockSpec((1, nb, 1), lambda i: (0, i, 0)),
                  pl.BlockSpec((1, nb, 1), lambda i: (0, i, 0))],
        out_specs=pl.BlockSpec((B, nb, F), lambda i: (0, i, 0)),
        out_shape=jax.ShapeDtypeStruct((B, N, F), jnp.float32),
        compiler_params=pltpu.CompilerParams(
            dimension_semantics=("parallel",),
            vmem_limit_bytes=_VMEM_LIMIT),
    )(x, g, b)


# --------------------------------------------------------------------------- #
# HetSTGCNBlock.forward
# --------------------------------------------------------------------------- #
def het_stgcn_block(X, p):
    X = X.astype(jnp.float32)                       # X.type(torch.FloatTensor)
    B, N, T, Cin = X.shape
    K = p["wc1"].shape[0] // Cin
    Co = p["w11"].shape[1]
    Cs = p["th3a"].shape[-1]
    if Co != Cs:
        raise ValueError("residual requires out_channels == spatial_channels")
    Tp = T - K + 1                                  # time after temporal1
    Tout2 = Tp - K + 1                              # time after temporal2
    n0 = p["A00"].shape[0]
    tpcs = Tp * Cs
    t2c = Tout2 * Co

    # Grid-invariant packing (hoisted): banded temporal weights, block-diag
    # fused thetas, hoisted A01@A10 / A10@A01 fused as [A_loop | A_ab].
    w1band, b1band = _temporal_band(p["wc1"], p["bc1"], p["w11"], p["b11"], T, Cin, Co, K)
    w2band, b2band = _temporal_band(p["wc2"], p["bc2"], p["w12"], p["b12"], Tp, Cs, Co, K)
    tha = _theta_band(p["th1a"], p["th2a"], p["th3a"], Tp)
    thb = _theta_band(p["th1b"], p["th2b"], p["th3b"], Tp)
    acat0 = jnp.concatenate([p["A01"] @ p["A10"], p["A01"]], axis=1)   # (n0, N)
    acat1 = jnp.concatenate([p["A10"] @ p["A01"], p["A10"]], axis=1)   # (n1, N)

    x_flat = X.reshape(B, N, T * Cin)               # free reshape (row-major)

    kernel = functools.partial(_fused_kernel, n0=n0, tpcs=tpcs)
    t2 = pl.pallas_call(
        kernel,
        grid=(B,),
        in_specs=[pl.BlockSpec((1, N, T * Cin), lambda bi: (bi, 0, 0)),
                  _full_spec(w1band), _full_spec(b1band),
                  _full_spec(p["A00"]), _full_spec(acat0),
                  _full_spec(p["A11"]), _full_spec(acat1),
                  _full_spec(tha), _full_spec(thb),
                  _full_spec(w2band), _full_spec(b2band)],
        out_specs=pl.BlockSpec((1, N, t2c), lambda bi: (bi, 0, 0)),
        out_shape=jax.ShapeDtypeStruct((B, N, t2c), jnp.float32),
        compiler_params=pltpu.CompilerParams(
            dimension_semantics=("parallel",),
            vmem_limit_bytes=_VMEM_LIMIT),
    )(x_flat, w1band, b1band, p["A00"], acat0, p["A11"], acat1,
      tha, thb, w2band, b2band)

    out = _batch_norm_folded(t2, p["bn_gamma"], p["bn_beta"])
    return out.reshape(B, N, Tout2, Co)             # free reshape back


# --------------------------------------------------------------------------- #
if __name__ == "__main__":
    key = jax.random.PRNGKey(0)
    B, T = 2, 10
    N0 = N1 = 8                    # reference hardcodes N0 = 81
    num_nodes = N0 + N1
    Cin = 4                        # in_channels
    Co = 8                         # out_channels (temporal)
    Cs = 8                         # spatial_channels (== Co, as the reference requires)
    K = 3                          # temporal kernel size
    L = 6                          # self.layers

    ks = jax.random.split(key, 20)

    def uni(k, shape, s):
        return jax.random.uniform(k, shape, jnp.float32, -s, s)

    # TemporalConv weights (flattened (K*Cin, Cout) im2col layout)
    s1 = 1.0 / math.sqrt(Cin * K)
    wc1 = uni(ks[0], (K * Cin, 2 * Co), s1); bc1 = uni(ks[1], (1, 2 * Co), s1)
    w11 = uni(ks[2], (K * Cin, Co), s1);     b11 = uni(ks[3], (1, Co), s1)
    s2 = 1.0 / math.sqrt(Cs * K)
    wc2 = uni(ks[4], (K * Cs, 2 * Co), s2);  bc2 = uni(ks[5], (1, 2 * Co), s2)
    w12 = uni(ks[6], (K * Cs, Co), s2);      b12 = uni(ks[7], (1, Co), s2)

    # Heterogeneous adjacency blocks As[6], As[2], As[3], As[7]
    A00 = jax.random.uniform(ks[8], (N0, N0), jnp.float32) / N0
    A01 = jax.random.uniform(ks[9], (N0, N1), jnp.float32) / N1
    A10 = jax.random.uniform(ks[10], (N1, N0), jnp.float32) / N0
    A11 = jax.random.uniform(ks[11], (N1, N1), jnp.float32) / N1

    # HetGraphConvolution thetas: uniform(-1/sqrt(out_channels), +)
    st = 1.0 / math.sqrt(Cs)
    th1a = uni(ks[12], (L, Co, Cs), st)
    th2a = uni(ks[13], (L, Co, Cs), st)
    th3a = uni(ks[14], (L, Co, Cs), st)
    th1b = uni(ks[15], (L, Co, Cs), st)
    th2b = uni(ks[16], (L, Co, Cs), st)
    th3b = uni(ks[17], (L, Co, Cs), st)

    bn_gamma = jnp.ones((num_nodes,), jnp.float32)
    bn_beta = jnp.zeros((num_nodes,), jnp.float32)

    params = dict(wc1=wc1, bc1=bc1, w11=w11, b11=b11,
                  wc2=wc2, bc2=bc2, w12=w12, b12=b12,
                  A00=A00, A01=A01, A10=A10, A11=A11,
                  th1a=th1a, th2a=th2a, th3a=th3a,
                  th1b=th1b, th2b=th2b, th3b=th3b,
                  bn_gamma=bn_gamma, bn_beta=bn_beta)

    X = jax.random.normal(ks[18], (B, num_nodes, T, Cin), jnp.float32)

    out = jax.jit(het_stgcn_block)(X, params)
    out = jax.block_until_ready(out)
    assert out.shape == (B, num_nodes, T - 2 * (K - 1), Co), out.shape
    assert bool(jnp.all(jnp.isfinite(out)))
    print("KERNEL_OK")
</pallas_src>

<mosaic_0001>
module attributes {stable_mosaic.version = 11 : i64} {
  func.func @_fused_kernel(%arg0: i32, %arg1: memref<1x16x40xf32, #tpu.memory_space<vmem>>, %arg2: memref<40x192xf32, #tpu.memory_space<vmem>>, %arg3: memref<1x192xf32, #tpu.memory_space<vmem>>, %arg4: memref<8x8xf32, #tpu.memory_space<vmem>>, %arg5: memref<8x16xf32, #tpu.memory_space<vmem>>, %arg6: memref<8x8xf32, #tpu.memory_space<vmem>>, %arg7: memref<8x16xf32, #tpu.memory_space<vmem>>, %arg8: memref<6x64x192xf32, #tpu.memory_space<vmem>>, %arg9: memref<6x64x192xf32, #tpu.memory_space<vmem>>, %arg10: memref<64x144xf32, #tpu.memory_space<vmem>>, %arg11: memref<1x144xf32, #tpu.memory_space<vmem>>, %arg12: memref<1x16x48xf32, #tpu.memory_space<vmem>>) attributes {dimension_semantics = [#tpu.dimension_semantics<parallel>], iteration_bounds = array<i64: 2>, scalar_prefetch = 0 : i64, scratch_operands = 0 : i64, tpu.core_type = #tpu.core_type<tc>, window_params = [{transform_indices = @transform_0, window_bounds = array<i64: 1, 16, 40>}, {pipeline_mode = #tpu.pipeline_mode<synchronous>, transform_indices = @transform_1, window_bounds = array<i64: 40, 192>}, {pipeline_mode = #tpu.pipeline_mode<synchronous>, transform_indices = @transform_2, window_bounds = array<i64: 1, 192>}, {pipeline_mode = #tpu.pipeline_mode<synchronous>, transform_indices = @transform_3, window_bounds = array<i64: 8, 8>}, {pipeline_mode = #tpu.pipeline_mode<synchronous>, transform_indices = @transform_4, window_bounds = array<i64: 8, 16>}, {pipeline_mode = #tpu.pipeline_mode<synchronous>, transform_indices = @transform_5, window_bounds = array<i64: 8, 8>}, {pipeline_mode = #tpu.pipeline_mode<synchronous>, transform_indices = @transform_6, window_bounds = array<i64: 8, 16>}, {pipeline_mode = #tpu.pipeline_mode<synchronous>, transform_indices = @transform_7, window_bounds = array<i64: 6, 64, 192>}, {pipeline_mode = #tpu.pipeline_mode<synchronous>, transform_indices = @transform_8, window_bounds = array<i64: 6, 64, 192>}, {pipeline_mode = #tpu.pipeline_mode<synchronous>, transform_indices = @transform_9, window_bounds = array<i64: 64, 144>}, {pipeline_mode = #tpu.pipeline_mode<synchronous>, transform_indices = @transform_10, window_bounds = array<i64: 1, 144>}, {transform_indices = @transform_11, window_bounds = array<i64: 1, 16, 48>}]} {
    %c0 = arith.constant 0 : index
    %c0_0 = arith.constant 0 : index
    %c0_1 = arith.constant 0 : index
    %0 = vector.load %arg1[%c0, %c0_0, %c0_1] : memref<1x16x40xf32, #tpu.memory_space<vmem>>, vector<1x16x40xf32>
    %1 = vector.shape_cast %0 : vector<1x16x40xf32> to vector<16x40xf32>
    %c0_2 = arith.constant 0 : index
    %c0_3 = arith.constant 0 : index
    %2 = vector.load %arg2[%c0_2, %c0_3] : memref<40x192xf32, #tpu.memory_space<vmem>>, vector<40x192xf32>
    %cst = arith.constant dense<0.000000e+00> : vector<16x192xf32>
    %3 = tpu.matmul %1, %2, %cst {dimension_numbers = #tpu.dot_dimension_numbers<[1], [0], [0], [1], [0, 0, 1, 1], [], []>} : vector<16x40xf32>, vector<40x192xf32>, vector<16x192xf32> -> vector<16x192xf32>
    %c0_4 = arith.constant 0 : index
    %c0_5 = arith.constant 0 : index
    %4 = vector.load %arg3[%c0_4, %c0_5] : memref<1x192xf32, #tpu.memory_space<vmem>>, vector<1x192xf32>
    %5 = vector.broadcast %4 : vector<1x192xf32> to vector<16x192xf32>
    %6 = arith.addf %3, %5 : vector<16x192xf32>
    %7 = vector.extract_strided_slice %6 {offsets = [0, 0], sizes = [16, 64], strides = [1, 1]} : vector<16x192xf32> to vector<16x64xf32>
    %8 = vector.extract_strided_slice %6 {offsets = [0, 128], sizes = [16, 64], strides = [1, 1]} : vector<16x192xf32> to vector<16x64xf32>
    %9 = arith.addf %7, %8 : vector<16x64xf32>
    %10 = vector.extract_strided_slice %6 {offsets = [0, 64], sizes = [16, 64], strides = [1, 1]} : vector<16x192xf32> to vector<16x64xf32>
    %11 = arith.negf %10 : vector<16x64xf32>
    %12 = math.exp %11 : vector<16x64xf32>
    %cst_6 = arith.constant 1.000000e+00 : f32
    %13 = vector.broadcast %cst_6 : f32 to vector<16x64xf32>
    %14 = arith.addf %13, %12 : vector<16x64xf32>
    %15 = arith.divf %13, %14 : vector<16x64xf32>
    %16 = arith.mulf %9, %15 : vector<16x64xf32>
    %17 = vector.extract_strided_slice %16 {offsets = [0, 0], sizes = [8, 64], strides = [1, 1]} : vector<16x64xf32> to vector<8x64xf32>
    %18 = vector.extract_strided_slice %16 {offsets = [8, 0], sizes = [8, 64], strides = [1, 1]} : vector<16x64xf32> to vector<8x64xf32>
    %c0_7 = arith.constant 0 : index
    %c0_8 = arith.constant 0 : index
    %19 = vector.load %arg4[%c0_7, %c0_8] : memref<8x8xf32, #tpu.memory_space<vmem>>, vector<8x8xf32>
    %c0_9 = arith.constant 0 : index
    %c0_10 = arith.constant 0 : index
    %20 = vector.load %arg5[%c0_9, %c0_10] : memref<8x16xf32, #tpu.memory_space<vmem>>, vector<8x16xf32>
    %c0_11 = arith.constant 0 : index
    %c0_12 = arith.constant 0 : index
    %21 = vector.load %arg6[%c0_11, %c0_12] : memref<8x8xf32, #tpu.memory_space<vmem>>, vector<8x8xf32>
    %c0_13 = arith.constant 0 : index
    %c0_14 = arith.constant 0 : index
    %22 = vector.load %arg7[%c0_13, %c0_14] : memref<8x16xf32, #tpu.memory_space<vmem>>, vector<8x16xf32>
    %23 = tpu.concatenate %17, %18 in 0 : vector<8x64xf32>, vector<8x64xf32> -> vector<16x64xf32>
    %c0_15 = arith.constant 0 : index
    %c0_16 = arith.constant 0 : index
    %c0_17 = arith.constant 0 : index
    %24 = vector.load %arg8[%c0_15, %c0_16, %c0_17] : memref<6x64x192xf32, #tpu.memory_space<vmem>>, vector<1x64x192xf32>
    %25 = vector.shape_cast %24 : vector<1x64x192xf32> to vector<64x192xf32>
    %cst_18 = arith.constant dense<0.000000e+00> : vector<16x192xf32>
    %26 = tpu.matmul %23, %25, %cst_18 {dimension_numbers = #tpu.dot_dimension_numbers<[1], [0], [0], [1], [0, 0, 1, 1], [], []>} : vector<16x64xf32>, vector<64x192xf32>, vector<16x192xf32> -> vector<16x192xf32>
    %27 = vector.extract_strided_slice %26 {offsets = [0, 0], sizes = [8, 64], strides = [1, 1]} : vector<16x192xf32> to vector<8x64xf32>
    %28 = vector.extract_strided_slice %26 {offsets = [0, 64], sizes = [8, 64], strides = [1, 1]} : vector<16x192xf32> to vector<8x64xf32>
    %29 = vector.extract_strided_slice %26 {offsets = [8, 128], sizes = [8, 64], strides = [1, 1]} : vector<16x192xf32> to vector<8x64xf32>
    %30 = tpu.concatenate %28, %29 in 0 : vector<8x64xf32>, vector<8x64xf32> -> vector<16x64xf32>
    %cst_19 = arith.constant dense<0.000000e+00> : vector<8x64xf32>
    %31 = tpu.matmul %19, %27, %cst_19 {dimension_numbers = #tpu.dot_dimension_numbers<[1], [0], [0], [1], [0, 0, 1, 1], [], []>} : vector<8x8xf32>, vector<8x64xf32>, vector<8x64xf32> -> vector<8x64xf32>
    %cst_20 = arith.constant dense<0.000000e+00> : vector<8x64xf32>
    %32 = tpu.matmul %20, %30, %cst_20 {dimension_numbers = #tpu.dot_dimension_numbers<[1], [0], [0], [1], [0, 0, 1, 1], [], []>} : vector<8x16xf32>, vector<16x64xf32>, vector<8x64xf32> -> vector<8x64xf32>
    %cst_21 = arith.constant 0.000000e+00 : f32
    %33 = vector.broadcast %cst_21 : f32 to vector<8x64xf32>
    %34 = arith.maximumf %31, %33 : vector<8x64xf32>
    %35 = arith.negf %32 : vector<8x64xf32>
    %36 = math.exp %35 : vector<8x64xf32>
    %cst_22 = arith.constant 1.000000e+00 : f32
    %37 = vector.broadcast %cst_22 : f32 to vector<8x64xf32>
    %38 = arith.addf %37, %36 : vector<8x64xf32>
    %39 = arith.divf %37, %38 : vector<8x64xf32>
    %40 = arith.addf %34, %39 : vector<8x64xf32>
    %cst_23 = arith.constant 5.000000e-01 : f32
    %41 = vector.broadcast %cst_23 : f32 to vector<8x64xf32>
    %42 = arith.mulf %40, %41 : vector<8x64xf32>
    %cst_24 = arith.constant 0.000000e+00 : f32
    %43 = vector.broadcast %cst_24 : f32 to vector<8x64xf32>
    %44 = arith.maximumf %42, %43 : vector<8x64xf32>
    %cst_25 = arith.constant 0.899999976 : f32
    %45 = vector.broadcast %cst_25 : f32 to vector<8x64xf32>
    %46 = arith.mulf %45, %44 : vector<8x64xf32>
    %cst_26 = arith.constant 1.000000e-01 : f32
    %47 = vector.broadcast %cst_26 : f32 to vector<8x64xf32>
    %48 = arith.mulf %47, %17 : vector<8x64xf32>
    %49 = arith.addf %46, %48 : vector<8x64xf32>
    %cst_27 = arith.constant 0.000000e+00 : f32
    %50 = vector.broadcast %cst_27 : f32 to vector<8x64xf32>
    %51 = arith.maximumf %49, %50 : vector<8x64xf32>
    %52 = tpu.concatenate %51, %18 in 0 : vector<8x64xf32>, vector<8x64xf32> -> vector<16x64xf32>
    %c0_28 = arith.constant 0 : index
    %c0_29 = arith.constant 0 : index
    %c0_30 = arith.constant 0 : index
    %53 = vector.load %arg9[%c0_28, %c0_29, %c0_30] : memref<6x64x192xf32, #tpu.memory_space<vmem>>, vector<1x64x192xf32>
    %54 = vector.shape_cast %53 : vector<1x64x192xf32> to vector<64x192xf32>
    %cst_31 = arith.constant dense<0.000000e+00> : vector<16x192xf32>
    %55 = tpu.matmul %52, %54, %cst_31 {dimension_numbers = #tpu.dot_dimension_numbers<[1], [0], [0], [1], [0, 0, 1, 1], [], []>} : vector<16x64xf32>, vector<64x192xf32>, vector<16x192xf32> -> vector<16x192xf32>
    %56 = vector.extract_strided_slice %55 {offsets = [8, 0], sizes = [8, 64], strides = [1, 1]} : vector<16x192xf32> to vector<8x64xf32>
    %57 = vector.extract_strided_slice %55 {offsets = [8, 64], sizes = [8, 64], strides = [1, 1]} : vector<16x192xf32> to vector<8x64xf32>
    %58 = vector.extract_strided_slice %55 {offsets = [0, 128], sizes = [8, 64], strides = [1, 1]} : vector<16x192xf32> to vector<8x64xf32>
    %59 = tpu.concatenate %57, %58 in 0 : vector<8x64xf32>, vector<8x64xf32> -> vector<16x64xf32>
    %cst_32 = arith.constant dense<0.000000e+00> : vector<8x64xf32>
    %60 = tpu.matmul %21, %56, %cst_32 {dimension_numbers = #tpu.dot_dimension_numbers<[1], [0], [0], [1], [0, 0, 1, 1], [], []>} : vector<8x8xf32>, vector<8x64xf32>, vector<8x64xf32> -> vector<8x64xf32>
    %cst_33 = arith.constant dense<0.000000e+00> : vector<8x64xf32>
    %61 = tpu.matmul %22, %59, %cst_33 {dimension_numbers = #tpu.dot_dimension_numbers<[1], [0], [0], [1], [0, 0, 1, 1], [], []>} : vector<8x16xf32>, vector<16x64xf32>, vector<8x64xf32> -> vector<8x64xf32>
    %cst_34 = arith.constant 0.000000e+00 : f32
    %62 = vector.broadcast %cst_34 : f32 to vector<8x64xf32>
    %63 = arith.maximumf %60, %62 : vector<8x64xf32>
    %64 = arith.negf %61 : vector<8x64xf32>
    %65 = math.exp %64 : vector<8x64xf32>
    %cst_35 = arith.constant 1.000000e+00 : f32
    %66 = vector.broadcast %cst_35 : f32 to vector<8x64xf32>
    %67 = arith.addf %66, %65 : vector<8x64xf32>
    %68 = arith.divf %66, %67 : vector<8x64xf32>
    %69 = arith.addf %63, %68 : vector<8x64xf32>
    %cst_36 = arith.constant 5.000000e-01 : f32
    %70 = vector.broadcast %cst_36 : f32 to vector<8x64xf32>
    %71 = arith.mulf %69, %70 : vector<8x64xf32>
    %cst_37 = arith.constant 0.000000e+00 : f32
    %72 = vector.broadcast %cst_37 : f32 to vector<8x64xf32>
    %73 = arith.maximumf %71, %72 : vector<8x64xf32>
    %cst_38 = arith.constant 0.899999976 : f32
    %74 = vector.broadcast %cst_38 : f32 to vector<8x64xf32>
    %75 = arith.mulf %74, %73 : vector<8x64xf32>
    %cst_39 = arith.constant 1.000000e-01 : f32
    %76 = vector.broadcast %cst_39 : f32 to vector<8x64xf32>
    %77 = arith.mulf %76, %18 : vector<8x64xf32>
    %78 = arith.addf %75, %77 : vector<8x64xf32>
    %cst_40 = arith.constant 0.000000e+00 : f32
    %79 = vector.broadcast %cst_40 : f32 to vector<8x64xf32>
    %80 = arith.maximumf %78, %79 : vector<8x64xf32>
    %81 = tpu.concatenate %51, %80 in 0 : vector<8x64xf32>, vector<8x64xf32> -> vector<16x64xf32>
    %c1 = arith.constant 1 : index
    %c0_41 = arith.constant 0 : index
    %c0_42 = arith.constant 0 : index
    %82 = vector.load %arg8[%c1, %c0_41, %c0_42] : memref<6x64x192xf32, #tpu.memory_space<vmem>>, vector<1x64x192xf32>
    %83 = vector.shape_cast %82 : vector<1x64x192xf32> to vector<64x192xf32>
    %cst_43 = arith.constant dense<0.000000e+00> : vector<16x192xf32>
    %84 = tpu.matmul %81, %83, %cst_43 {dimension_numbers = #tpu.dot_dimension_numbers<[1], [0], [0], [1], [0, 0, 1, 1], [], []>} : vector<16x64xf32>, vector<64x192xf32>, vector<16x192xf32> -> vector<16x192xf32>
    %85 = vector.extract_strided_slice %84 {offsets = [0, 0], sizes = [8, 64], strides = [1, 1]} : vector<16x192xf32> to vector<8x64xf32>
    %86 = vector.extract_strided_slice %84 {offsets = [0, 64], sizes = [8, 64], strides = [1, 1]} : vector<16x192xf32> to vector<8x64xf32>
    %87 = vector.extract_strided_slice %84 {offsets = [8, 128], sizes = [8, 64], strides = [1, 1]} : vector<16x192xf32> to vector<8x64xf32>
    %88 = tpu.concatenate %86, %87 in 0 : vector<8x64xf32>, vector<8x64xf32> -> vector<16x64xf32>
    %cst_44 = arith.constant dense<0.000000e+00> : vector<8x64xf32>
    %89 = tpu.matmul %19, %85, %cst_44 {dimension_numbers = #tpu.dot_dimension_numbers<[1], [0], [0], [1], [0, 0, 1, 1], [], []>} : vector<8x8xf32>, vector<8x64xf32>, vector<8x64xf32> -> vector<8x64xf32>
    %cst_45 = arith.constant dense<0.000000e+00> : vector<8x64xf32>
    %90 = tpu.matmul %20, %88, %cst_45 {dimension_numbers = #tpu.dot_dimension_numbers<[1], [0], [0], [1], [0, 0, 1, 1], [], []>} : vector<8x16xf32>, vector<16x64xf32>, vector<8x64xf32> -> vector<8x64xf32>
    %cst_46 = arith.constant 0.000000e+00 : f32
    %91 = vector.broadcast %cst_46 : f32 to vector<8x64xf32>
    %92 = arith.maximumf %89, %91 : vector<8x64xf32>
    %93 = arith.negf %90 : vector<8x64xf32>
    %94 = math.exp %93 : vector<8x64xf32>
    %cst_47 = arith.constant 1.000000e+00 : f32
    %95 = vector.broadcast %cst_47 : f32 to vector<8x64xf32>
    %96 = arith.addf %95, %94 : vector<8x64xf32>
    %97 = arith.divf %95, %96 : vector<8x64xf32>
    %98 = arith.addf %92, %97 : vector<8x64xf32>
    %cst_48 = arith.constant 5.000000e-01 : f32
    %99 = vector.broadcast %cst_48 : f32 to vector<8x64xf32>
    %100 = arith.mulf %98, %99 : vector<8x64xf32>
    %cst_49 = arith.constant 0.000000e+00 : f32
    %101 = vector.broadcast %cst_49 : f32 to vector<8x64xf32>
    %102 = arith.maximumf %100, %101 : vector<8x64xf32>
    %cst_50 = arith.constant 0.899999976 : f32
    %103 = vector.broadcast %cst_50 : f32 to vector<8x64xf32>
    %104 = arith.mulf %103, %102 : vector<8x64xf32>
    %cst_51 = arith.constant 1.000000e-01 : f32
    %105 = vector.broadcast %cst_51 : f32 to vector<8x64xf32>
    %106 = arith.mulf %105, %17 : vector<8x64xf32>
    %107 = arith.addf %104, %106 : vector<8x64xf32>
    %cst_52 = arith.constant 0.000000e+00 : f32
    %108 = vector.broadcast %cst_52 : f32 to vector<8x64xf32>
    %109 = arith.maximumf %107, %108 : vector<8x64xf32>
    %110 = tpu.concatenate %109, %80 in 0 : vector<8x64xf32>, vector<8x64xf32> -> vector<16x64xf32>
    %c1_53 = arith.constant 1 : index
    %c0_54 = arith.constant 0 : index
    %c0_55 = arith.constant 0 : index
    %111 = vector.load %arg9[%c1_53, %c0_54, %c0_55] : memref<6x64x192xf32, #tpu.memory_space<vmem>>, vector<1x64x192xf32>
    %112 = vector.shape_cast %111 : vector<1x64x192xf32> to vector<64x192xf32>
    %cst_56 = arith.constant dense<0.000000e+00> : vector<16x192xf32>
    %113 = tpu.matmul %110, %112, %cst_56 {dimension_numbers = #tpu.dot_dimension_numbers<[1], [0], [0], [1], [0, 0, 1, 1], [], []>} : vector<16x64xf32>, vector<64x192xf32>, vector<16x192xf32> -> vector<16x192xf32>
    %114 = vector.extract_strided_slice %113 {offsets = [8, 0], sizes = [8, 64], strides = [1, 1]} : vector<16x192xf32> to vector<8x64xf32>
    %115 = vector.extract_strided_slice %113 {offsets = [8, 64], sizes = [8, 64], strides = [1, 1]} : vector<16x192xf32> to vector<8x64xf32>
    %116 = vector.extract_strided_slice %113 {offsets = [0, 128], sizes = [8, 64], strides = [1, 1]} : vector<16x192xf32> to vector<8x64xf32>
    %117 = tpu.concatenate %115, %116 in 0 : vector<8x64xf32>, vector<8x64xf32> -> vector<16x64xf32>
    %cst_57 = arith.constant dense<0.000000e+00> : vector<8x64xf32>
    %118 = tpu.matmul %21, %114, %cst_57 {dimension_numbers = #tpu.dot_dimension_numbers<[1], [0], [0], [1], [0, 0, 1, 1], [], []>} : vector<8x8xf32>, vector<8x64xf32>, vector<8x64xf32> -> vector<8x64xf32>
    %cst_58 = arith.constant dense<0.000000e+00> : vector<8x64xf32>
    %119 = tpu.matmul %22, %117, %cst_58 {dimension_numbers = #tpu.dot_dimension_numbers<[1], [0], [0], [1], [0, 0, 1, 1], [], []>} : vector<8x16xf32>, vector<16x64xf32>, vector<8x64xf32> -> vector<8x64xf32>
    %cst_59 = arith.constant 0.000000e+00 : f32
    %120 = vector.broadcast %cst_59 : f32 to vector<8x64xf32>
    %121 = arith.maximumf %118, %120 : vector<8x64xf32>
    %122 = arith.negf %119 : vector<8x64xf32>
    %123 = math.exp %122 : vector<8x64xf32>
    %cst_60 = arith.constant 1.000000e+00 : f32
    %124 = vector.broadcast %cst_60 : f32 to vector<8x64xf32>
    %125 = arith.addf %124, %123 : vector<8x64xf32>
    %126 = arith.divf %124, %125 : vector<8x64xf32>
    %127 = arith.addf %121, %126 : vector<8x64xf32>
    %cst_61 = arith.constant 5.000000e-01 : f32
    %128 = vector.broadcast %cst_61 : f32 to vector<8x64xf32>
    %129 = arith.mulf %127, %128 : vector<8x64xf32>
    %cst_62 = arith.constant 0.000000e+00 : f32
    %130 = vector.broadcast %cst_62 : f32 to vector<8x64xf32>
    %131 = arith.maximumf %129, %130 : vector<8x64xf32>
    %cst_63 = arith.constant 0.899999976 : f32
    %132 = vector.broadcast %cst_63 : f32 to vector<8x64xf32>
    %133 = arith.mulf %132, %131 : vector<8x64xf32>
    %cst_64 = arith.constant 1.000000e-01 : f32
    %134 = vector.broadcast %cst_64 : f32 to vector<8x64xf32>
    %135 = arith.mulf %134, %18 : vector<8x64xf32>
    %136 = arith.addf %133, %135 : vector<8x64xf32>
    %cst_65 = arith.constant 0.000000e+00 : f32
    %137 = vector.broadcast %cst_65 : f32 to vector<8x64xf32>
    %138 = arith.maximumf %136, %137 : vector<8x64xf32>
    %139 = tpu.concatenate %109, %138 in 0 : vector<8x64xf32>, vector<8x64xf32> -> vector<16x64xf32>
    %c2 = arith.constant 2 : index
    %c0_66 = arith.constant 0 : index
    %c0_67 = arith.constant 0 : index
    %140 = vector.load %arg8[%c2, %c0_66, %c0_67] : memref<6x64x192xf32, #tpu.memory_space<vmem>>, vector<1x64x192xf32>
    %141 = vector.shape_cast %140 : vector<1x64x192xf32> to vector<64x192xf32>
    %cst_68 = arith.constant dense<0.000000e+00> : vector<16x192xf32>
    %142 = tpu.matmul %139, %141, %cst_68 {dimension_numbers = #tpu.dot_dimension_numbers<[1], [0], [0], [1], [0, 0, 1, 1], [], []>} : vector<16x64xf32>, vector<64x192xf32>, vector<16x192xf32> -> vector<16x192xf32>
    %143 = vector.extract_strided_slice %142 {offsets = [0, 0], sizes = [8, 64], strides = [1, 1]} : vector<16x192xf32> to vector<8x64xf32>
    %144 = vector.extract_strided_slice %142 {offsets = [0, 64], sizes = [8, 64], strides = [1, 1]} : vector<16x192xf32> to vector<8x64xf32>
    %145 = vector.extract_strided_slice %142 {offsets = [8, 128], sizes = [8, 64], strides = [1, 1]} : vector<16x192xf32> to vector<8x64xf32>
    %146 = tpu.concatenate %144, %145 in 0 : vector<8x64xf32>, vector<8x64xf32> -> vector<16x64xf32>
    %cst_69 = arith.constant dense<0.000000e+00> : vector<8x64xf32>
    %147 = tpu.matmul %19, %143, %cst_69 {dimension_numbers = #tpu.dot_dimension_numbers<[1], [0], [0], [1], [0, 0, 1, 1], [], []>} : vector<8x8xf32>, vector<8x64xf32>, vector<8x64xf32> -> vector<8x64xf32>
    %cst_70 = arith.constant dense<0.000000e+00> : vector<8x64xf32>
    %148 = tpu.matmul %20, %146, %cst_70 {dimension_numbers = #tpu.dot_dimension_numbers<[1], [0], [0], [1], [0, 0, 1, 1], [], []>} : vector<8x16xf32>, vector<16x64xf32>, vector<8x64xf32> -> vector<8x64xf32>
    %cst_71 = arith.constant 0.000000e+00 : f32
    %149 = vector.broadcast %cst_71 : f32 to vector<8x64xf32>
    %150 = arith.maximumf %147, %149 : vector<8x64xf32>
    %151 = arith.negf %148 : vector<8x64xf32>
    %152 = math.exp %151 : vector<8x64xf32>
    %cst_72 = arith.constant 1.000000e+00 : f32
    %153 = vector.broadcast %cst_72 : f32 to vector<8x64xf32>
    %154 = arith.addf %153, %152 : vector<8x64xf32>
    %155 = arith.divf %153, %154 : vector<8x64xf32>
    %156 = arith.addf %150, %155 : vector<8x64xf32>
    %cst_73 = arith.constant 5.000000e-01 : f32
    %157 = vector.broadcast %cst_73 : f32 to vector<8x64xf32>
    %158 = arith.mulf %156, %157 : vector<8x64xf32>
    %cst_74 = arith.constant 0.000000e+00 : f32
    %159 = vector.broadcast %cst_74 : f32 to vector<8x64xf32>
    %160 = arith.maximumf %158, %159 : vector<8x64xf32>
    %cst_75 = arith.constant 0.899999976 : f32
    %161 = vector.broadcast %cst_75 : f32 to vector<8x64xf32>
    %162 = arith.mulf %161, %160 : vector<8x64xf32>
    %cst_76 = arith.constant 1.000000e-01 : f32
    %163 = vector.broadcast %cst_76 : f32 to vector<8x64xf32>
    %164 = arith.mulf %163, %17 : vector<8x64xf32>
    %165 = arith.addf %162, %164 : vector<8x64xf32>
    %cst_77 = arith.constant 0.000000e+00 : f32
    %166 = vector.broadcast %cst_77 : f32 to vector<8x64xf32>
    %167 = arith.maximumf %165, %166 : vector<8x64xf32>
    %168 = tpu.concatenate %167, %138 in 0 : vector<8x64xf32>, vector<8x64xf32> -> vector<16x64xf32>
    %c2_78 = arith.constant 2 : index
    %c0_79 = arith.constant 0 : index
    %c0_80 = arith.constant 0 : index
    %169 = vector.load %arg9[%c2_78, %c0_79, %c0_80] : memref<6x64x192xf32, #tpu.memory_space<vmem>>, vector<1x64x192xf32>
    %170 = vector.shape_cast %169 : vector<1x64x192xf32> to vector<64x192xf32>
    %cst_81 = arith.constant dense<0.000000e+00> : vector<16x192xf32>
    %171 = tpu.matmul %168, %170, %cst_81 {dimension_numbers = #tpu.dot_dimension_numbers<[1], [0], [0], [1], [0, 0, 1, 1], [], []>} : vector<16x64xf32>, vector<64x192xf32>, vector<16x192xf32> -> vector<16x192xf32>
    %172 = vector.extract_strided_slice %171 {offsets = [8, 0], sizes = [8, 64], strides = [1, 1]} : vector<16x192xf32> to vector<8x64xf32>
    %173 = vector.extract_strided_slice %171 {offsets = [8, 64], sizes = [8, 64], strides = [1, 1]} : vector<16x192xf32> to vector<8x64xf32>
    %174 = vector.extract_strided_slice %171 {offsets = [0, 128], sizes = [8, 64], strides = [1, 1]} : vector<16x192xf32> to vector<8x64xf32>
    %175 = tpu.concatenate %173, %174 in 0 : vector<8x64xf32>, vector<8x64xf32> -> vector<16x64xf32>
    %cst_82 = arith.constant dense<0.000000e+00> : vector<8x64xf32>
    %176 = tpu.matmul %21, %172, %cst_82 {dimension_numbers = #tpu.dot_dimension_numbers<[1], [0], [0], [1], [0, 0, 1, 1], [], []>} : vector<8x8xf32>, vector<8x64xf32>, vector<8x64xf32> -> vector<8x64xf32>
    %cst_83 = arith.constant dense<0.000000e+00> : vector<8x64xf32>
    %177 = tpu.matmul %22, %175, %cst_83 {dimension_numbers = #tpu.dot_dimension_numbers<[1], [0], [0], [1], [0, 0, 1, 1], [], []>} : vector<8x16xf32>, vector<16x64xf32>, vector<8x64xf32> -> vector<8x64xf32>
    %cst_84 = arith.constant 0.000000e+00 : f32
    %178 = vector.broadcast %cst_84 : f32 to vector<8x64xf32>
    %179 = arith.maximumf %176, %178 : vector<8x64xf32>
    %180 = arith.negf %177 : vector<8x64xf32>
    %181 = math.exp %180 : vector<8x64xf32>
    %cst_85 = arith.constant 1.000000e+00 : f32
    %182 = vector.broadcast %cst_85 : f32 to vector<8x64xf32>
    %183 = arith.addf %182, %181 : vector<8x64xf32>
    %184 = arith.divf %182, %183 : vector<8x64xf32>
    %185 = arith.addf %179, %184 : vector<8x64xf32>
    %cst_86 = arith.constant 5.000000e-01 : f32
    %186 = vector.broadcast %cst_86 : f32 to vector<8x64xf32>
    %187 = arith.mulf %185, %186 : vector<8x64xf32>
    %cst_87 = arith.constant 0.000000e+00 : f32
    %188 = vector.broadcast %cst_87 : f32 to vector<8x64xf32>
    %189 = arith.maximumf %187, %188 : vector<8x64xf32>
    %cst_88 = arith.constant 0.899999976 : f32
    %190 = vector.broadcast %cst_88 : f32 to vector<8x64xf32>
    %191 = arith.mulf %190, %189 : vector<8x64xf32>
    %cst_89 = arith.constant 1.000000e-01 : f32
    %192 = vector.broadcast %cst_89 : f32 to vector<8x64xf32>
    %193 = arith.mulf %192, %18 : vector<8x64xf32>
    %194 = arith.addf %191, %193 : vector<8x64xf32>
    %cst_90 = arith.constant 0.000000e+00 : f32
    %195 = vector.broadcast %cst_90 : f32 to vector<8x64xf32>
    %196 = arith.maximumf %194, %195 : vector<8x64xf32>
    %197 = tpu.concatenate %167, %196 in 0 : vector<8x64xf32>, vector<8x64xf32> -> vector<16x64xf32>
    %c3 = arith.constant 3 : index
    %c0_91 = arith.constant 0 : index
    %c0_92 = arith.constant 0 : index
    %198 = vector.load %arg8[%c3, %c0_91, %c0_92] : memref<6x64x192xf32, #tpu.memory_space<vmem>>, vector<1x64x192xf32>
    %199 = vector.shape_cast %198 : vector<1x64x192xf32> to vector<64x192xf32>
    %cst_93 = arith.constant dense<0.000000e+00> : vector<16x192xf32>
    %200 = tpu.matmul %197, %199, %cst_93 {dimension_numbers = #tpu.dot_dimension_numbers<[1], [0], [0], [1], [0, 0, 1, 1], [], []>} : vector<16x64xf32>, vector<64x192xf32>, vector<16x192xf32> -> vector<16x192xf32>
    %201 = vector.extract_strided_slice %200 {offsets = [0, 0], sizes = [8, 64], strides = [1, 1]} : vector<16x192xf32> to vector<8x64xf32>
    %202 = vector.extract_strided_slice %200 {offsets = [0, 64], sizes = [8, 64], strides = [1, 1]} : vector<16x192xf32> to vector<8x64xf32>
    %203 = vector.extract_strided_slice %200 {offsets = [8, 128], sizes = [8, 64], strides = [1, 1]} : vector<16x192xf32> to vector<8x64xf32>
    %204 = tpu.concatenate %202, %203 in 0 : vector<8x64xf32>, vector<8x64xf32> -> vector<16x64xf32>
    %cst_94 = arith.constant dense<0.000000e+00> : vector<8x64xf32>
    %205 = tpu.matmul %19, %201, %cst_94 {dimension_numbers = #tpu.dot_dimension_numbers<[1], [0], [0], [1], [0, 0, 1, 1], [], []>} : vector<8x8xf32>, vector<8x64xf32>, vector<8x64xf32> -> vector<8x64xf32>
    %cst_95 = arith.constant dense<0.000000e+00> : vector<8x64xf32>
    %206 = tpu.matmul %20, %204, %cst_95 {dimension_numbers = #tpu.dot_dimension_numbers<[1], [0], [0], [1], [0, 0, 1, 1], [], []>} : vector<8x16xf32>, vector<16x64xf32>, vector<8x64xf32> -> vector<8x64xf32>
    %cst_96 = arith.constant 0.000000e+00 : f32
    %207 = vector.broadcast %cst_96 : f32 to vector<8x64xf32>
    %208 = arith.maximumf %205, %207 : vector<8x64xf32>
    %209 = arith.negf %206 : vector<8x64xf32>
    %210 = math.exp %209 : vector<8x64xf32>
    %cst_97 = arith.constant 1.000000e+00 : f32
    %211 = vector.broadcast %cst_97 : f32 to vector<8x64xf32>
    %212 = arith.addf %211, %210 : vector<8x64xf32>
    %213 = arith.divf %211, %212 : vector<8x64xf32>
    %214 = arith.addf %208, %213 : vector<8x64xf32>
    %cst_98 = arith.constant 5.000000e-01 : f32
    %215 = vector.broadcast %cst_98 : f32 to vector<8x64xf32>
    %216 = arith.mulf %214, %215 : vector<8x64xf32>
    %cst_99 = arith.constant 0.000000e+00 : f32
    %217 = vector.broadcast %cst_99 : f32 to vector<8x64xf32>
    %218 = arith.maximumf %216, %217 : vector<8x64xf32>
    %cst_100 = arith.constant 0.899999976 : f32
    %219 = vector.broadcast %cst_100 : f32 to vector<8x64xf32>
    %220 = arith.mulf %219, %218 : vector<8x64xf32>
    %cst_101 = arith.constant 1.000000e-01 : f32
    %221 = vector.broadcast %cst_101 : f32 to vector<8x64xf32>
    %222 = arith.mulf %221, %17 : vector<8x64xf32>
    %223 = arith.addf %220, %222 : vector<8x64xf32>
    %cst_102 = arith.constant 0.000000e+00 : f32
    %224 = vector.broadcast %cst_102 : f32 to vector<8x64xf32>
    %225 = arith.maximumf %223, %224 : vector<8x64xf32>
    %226 = tpu.concatenate %225, %196 in 0 : vector<8x64xf32>, vector<8x64xf32> -> vector<16x64xf32>
    %c3_103 = arith.constant 3 : index
    %c0_104 = arith.constant 0 : index
    %c0_105 = arith.constant 0 : index
    %227 = vector.load %arg9[%c3_103, %c0_104, %c0_105] : memref<6x64x192xf32, #tpu.memory_space<vmem>>, vector<1x64x192xf32>
    %228 = vector.shape_cast %227 : vector<1x64x192xf32> to vector<64x192xf32>
    %cst_106 = arith.constant dense<0.000000e+00> : vector<16x192xf32>
    %229 = tpu.matmul %226, %228, %cst_106 {dimension_numbers = #tpu.dot_dimension_numbers<[1], [0], [0], [1], [0, 0, 1, 1], [], []>} : vector<16x64xf32>, vector<64x192xf32>, vector<16x192xf32> -> vector<16x192xf32>
    %230 = vector.extract_strided_slice %229 {offsets = [8, 0], sizes = [8, 64], strides = [1, 1]} : vector<16x192xf32> to vector<8x64xf32>
    %231 = vector.extract_strided_slice %229 {offsets = [8, 64], sizes = [8, 64], strides = [1, 1]} : vector<16x192xf32> to vector<8x64xf32>
    %232 = vector.extract_strided_slice %229 {offsets = [0, 128], sizes = [8, 64], strides = [1, 1]} : vector<16x192xf32> to vector<8x64xf32>
    %233 = tpu.concatenate %231, %232 in 0 : vector<8x64xf32>, vector<8x64xf32> -> vector<16x64xf32>
    %cst_107 = arith.constant dense<0.000000e+00> : vector<8x64xf32>
    %234 = tpu.matmul %21, %230, %cst_107 {dimension_numbers = #tpu.dot_dimension_numbers<[1], [0], [0], [1], [0, 0, 1, 1], [], []>} : vector<8x8xf32>, vector<8x64xf32>, vector<8x64xf32> -> vector<8x64xf32>
    %cst_108 = arith.constant dense<0.000000e+00> : vector<8x64xf32>
    %235 = tpu.matmul %22, %233, %cst_108 {dimension_numbers = #tpu.dot_dimension_numbers<[1], [0], [0], [1], [0, 0, 1, 1], [], []>} : vector<8x16xf32>, vector<16x64xf32>, vector<8x64xf32> -> vector<8x64xf32>
    %cst_109 = arith.constant 0.000000e+00 : f32
    %236 = vector.broadcast %cst_109 : f32 to vector<8x64xf32>
    %237 = arith.maximumf %234, %236 : vector<8x64xf32>
    %238 = arith.negf %235 : vector<8x64xf32>
    %239 = math.exp %238 : vector<8x64xf32>
    %cst_110 = arith.constant 1.000000e+00 : f32
    %240 = vector.broadcast %cst_110 : f32 to vector<8x64xf32>
    %241 = arith.addf %240, %239 : vector<8x64xf32>
    %242 = arith.divf %240, %241 : vector<8x64xf32>
    %243 = arith.addf %237, %242 : vector<8x64xf32>
    %cst_111 = arith.constant 5.000000e-01 : f32
    %244 = vector.broadcast %cst_111 : f32 to vector<8x64xf32>
    %245 = arith.mulf %243, %244 : vector<8x64xf32>
    %cst_112 = arith.constant 0.000000e+00 : f32
    %246 = vector.broadcast %cst_112 : f32 to vector<8x64xf32>
    %247 = arith.maximumf %245, %246 : vector<8x64xf32>
    %cst_113 = arith.constant 0.899999976 : f32
    %248 = vector.broadcast %cst_113 : f32 to vector<8x64xf32>
    %249 = arith.mulf %248, %247 : vector<8x64xf32>
    %cst_114 = arith.constant 1.000000e-01 : f32
    %250 = vector.broadcast %cst_114 : f32 to vector<8x64xf32>
    %251 = arith.mulf %250, %18 : vector<8x64xf32>
    %252 = arith.addf %249, %251 : vector<8x64xf32>
    %cst_115 = arith.constant 0.000000e+00 : f32
    %253 = vector.broadcast %cst_115 : f32 to vector<8x64xf32>
    %254 = arith.maximumf %252, %253 : vector<8x64xf32>
    %255 = tpu.concatenate %225, %254 in 0 : vector<8x64xf32>, vector<8x64xf32> -> vector<16x64xf32>
    %c4 = arith.constant 4 : index
    %c0_116 = arith.constant 0 : index
    %c0_117 = arith.constant 0 : index
    %256 = vector.load %arg8[%c4, %c0_116, %c0_117] : memref<6x64x192xf32, #tpu.memory_space<vmem>>, vector<1x64x192xf32>
    %257 = vector.shape_cast %256 : vector<1x64x192xf32> to vector<64x192xf32>
    %cst_118 = arith.constant dense<0.000000e+00> : vector<16x192xf32>
    %258 = tpu.matmul %255, %257, %cst_118 {dimension_numbers = #tpu.dot_dimension_numbers<[1], [0], [0], [1], [0, 0, 1, 1], [], []>} : vector<16x64xf32>, vector<64x192xf32>, vector<16x192xf32> -> vector<16x192xf32>
    %259 = vector.extract_strided_slice %258 {offsets = [0, 0], sizes = [8, 64], strides = [1, 1]} : vector<16x192xf32> to vector<8x64xf32>
    %260 = vector.extract_strided_slice %258 {offsets = [0, 64], sizes = [8, 64], strides = [1, 1]} : vector<16x192xf32> to vector<8x64xf32>
    %261 = vector.extract_strided_slice %258 {offsets = [8, 128], sizes = [8, 64], strides = [1, 1]} : vector<16x192xf32> to vector<8x64xf32>
    %262 = tpu.concatenate %260, %261 in 0 : vector<8x64xf32>, vector<8x64xf32> -> vector<16x64xf32>
    %cst_119 = arith.constant dense<0.000000e+00> : vector<8x64xf32>
    %263 = tpu.matmul %19, %259, %cst_119 {dimension_numbers = #tpu.dot_dimension_numbers<[1], [0], [0], [1], [0, 0, 1, 1], [], []>} : vector<8x8xf32>, vector<8x64xf32>, vector<8x64xf32> -> vector<8x64xf32>
    %cst_120 = arith.constant dense<0.000000e+00> : vector<8x64xf32>
    %264 = tpu.matmul %20, %262, %cst_120 {dimension_numbers = #tpu.dot_dimension_numbers<[1], [0], [0], [1], [0, 0, 1, 1], [], []>} : vector<8x16xf32>, vector<16x64xf32>, vector<8x64xf32> -> vector<8x64xf32>
    %cst_121 = arith.constant 0.000000e+00 : f32
    %265 = vector.broadcast %cst_121 : f32 to vector<8x64xf32>
    %266 = arith.maximumf %263, %265 : vector<8x64xf32>
    %267 = arith.negf %264 : vector<8x64xf32>
    %268 = math.exp %267 : vector<8x64xf32>
    %cst_122 = arith.constant 1.000000e+00 : f32
    %269 = vector.broadcast %cst_122 : f32 to vector<8x64xf32>
    %270 = arith.addf %269, %268 : vector<8x64xf32>
    %271 = arith.divf %269, %270 : vector<8x64xf32>
    %272 = arith.addf %266, %271 : vector<8x64xf32>
    %cst_123 = arith.constant 5.000000e-01 : f32
    %273 = vector.broadcast %cst_123 : f32 to vector<8x64xf32>
    %274 = arith.mulf %272, %273 : vector<8x64xf32>
    %cst_124 = arith.constant 0.000000e+00 : f32
    %275 = vector.broadcast %cst_124 : f32 to vector<8x64xf32>
    %276 = arith.maximumf %274, %275 : vector<8x64xf32>
    %cst_125 = arith.constant 0.899999976 : f32
    %277 = vector.broadcast %cst_125 : f32 to vector<8x64xf32>
    %278 = arith.mulf %277, %276 : vector<8x64xf32>
    %cst_126 = arith.constant 1.000000e-01 : f32
    %279 = vector.broadcast %cst_126 : f32 to vector<8x64xf32>
    %280 = arith.mulf %279, %17 : vector<8x64xf32>
    %281 = arith.addf %278, %280 : vector<8x64xf32>
    %cst_127 = arith.constant 0.000000e+00 : f32
    %282 = vector.broadcast %cst_127 : f32 to vector<8x64xf32>
    %283 = arith.maximumf %281, %282 : vector<8x64xf32>
    %284 = tpu.concatenate %283, %254 in 0 : vector<8x64xf32>, vector<8x64xf32> -> vector<16x64xf32>
    %c4_128 = arith.constant 4 : index
    %c0_129 = arith.constant 0 : index
    %c0_130 = arith.constant 0 : index
    %285 = vector.load %arg9[%c4_128, %c0_129, %c0_130] : memref<6x64x192xf32, #tpu.memory_space<vmem>>, vector<1x64x192xf32>
    %286 = vector.shape_cast %285 : vector<1x64x192xf32> to vector<64x192xf32>
    %cst_131 = arith.constant dense<0.000000e+00> : vector<16x192xf32>
    %287 = tpu.matmul %284, %286, %cst_131 {dimension_numbers = #tpu.dot_dimension_numbers<[1], [0], [0], [1], [0, 0, 1, 1], [], []>} : vector<16x64xf32>, vector<64x192xf32>, vector<16x192xf32> -> vector<16x192xf32>
    %288 = vector.extract_strided_slice %287 {offsets = [8, 0], sizes = [8, 64], strides = [1, 1]} : vector<16x192xf32> to vector<8x64xf32>
    %289 = vector.extract_strided_slice %287 {offsets = [8, 64], sizes = [8, 64], strides = [1, 1]} : vector<16x192xf32> to vector<8x64xf32>
    %290 = vector.extract_strided_slice %287 {offsets = [0, 128], sizes = [8, 64], strides = [1, 1]} : vector<16x192xf32> to vector<8x64xf32>
    %291 = tpu.concatenate %289, %290 in 0 : vector<8x64xf32>, vector<8x64xf32> -> vector<16x64xf32>
    %cst_132 = arith.constant dense<0.000000e+00> : vector<8x64xf32>
    %292 = tpu.matmul %21, %288, %cst_132 {dimension_numbers = #tpu.dot_dimension_numbers<[1], [0], [0], [1], [0, 0, 1, 1], [], []>} : vector<8x8xf32>, vector<8x64xf32>, vector<8x64xf32> -> vector<8x64xf32>
    %cst_133 = arith.constant dense<0.000000e+00> : vector<8x64xf32>
    %293 = tpu.matmul %22, %291, %cst_133 {dimension_numbers = #tpu.dot_dimension_numbers<[1], [0], [0], [1], [0, 0, 1, 1], [], []>} : vector<8x16xf32>, vector<16x64xf32>, vector<8x64xf32> -> vector<8x64xf32>
    %cst_134 = arith.constant 0.000000e+00 : f32
    %294 = vector.broadcast %cst_134 : f32 to vector<8x64xf32>
    %295 = arith.maximumf %292, %294 : vector<8x64xf32>
    %296 = arith.negf %293 : vector<8x64xf32>
    %297 = math.exp %296 : vector<8x64xf32>
    %cst_135 = arith.constant 1.000000e+00 : f32
    %298 = vector.broadcast %cst_135 : f32 to vector<8x64xf32>
    %299 = arith.addf %298, %297 : vector<8x64xf32>
    %300 = arith.divf %298, %299 : vector<8x64xf32>
    %301 = arith.addf %295, %300 : vector<8x64xf32>
    %cst_136 = arith.constant 5.000000e-01 : f32
    %302 = vector.broadcast %cst_136 : f32 to vector<8x64xf32>
    %303 = arith.mulf %301, %302 : vector<8x64xf32>
    %cst_137 = arith.constant 0.000000e+00 : f32
    %304 = vector.broadcast %cst_137 : f32 to vector<8x64xf32>
    %305 = arith.maximumf %303, %304 : vector<8x64xf32>
    %cst_138 = arith.constant 0.899999976 : f32
    %306 = vector.broadcast %cst_138 : f32 to vector<8x64xf32>
    %307 = arith.mulf %306, %305 : vector<8x64xf32>
    %cst_139 = arith.constant 1.000000e-01 : f32
    %308 = vector.broadcast %cst_139 : f32 to vector<8x64xf32>
    %309 = arith.mulf %308, %18 : vector<8x64xf32>
    %310 = arith.addf %307, %309 : vector<8x64xf32>
    %cst_140 = arith.constant 0.000000e+00 : f32
    %311 = vector.broadcast %cst_140 : f32 to vector<8x64xf32>
    %312 = arith.maximumf %310, %311 : vector<8x64xf32>
    %313 = tpu.concatenate %283, %312 in 0 : vector<8x64xf32>, vector<8x64xf32> -> vector<16x64xf32>
    %c5 = arith.constant 5 : index
    %c0_141 = arith.constant 0 : index
    %c0_142 = arith.constant 0 : index
    %314 = vector.load %arg8[%c5, %c0_141, %c0_142] : memref<6x64x192xf32, #tpu.memory_space<vmem>>, vector<1x64x192xf32>
    %315 = vector.shape_cast %314 : vector<1x64x192xf32> to vector<64x192xf32>
    %cst_143 = arith.constant dense<0.000000e+00> : vector<16x192xf32>
    %316 = tpu.matmul %313, %315, %cst_143 {dimension_numbers = #tpu.dot_dimension_numbers<[1], [0], [0], [1], [0, 0, 1, 1], [], []>} : vector<16x64xf32>, vector<64x192xf32>, vector<16x192xf32> -> vector<16x192xf32>
    %317 = vector.extract_strided_slice %316 {offsets = [0, 0], sizes = [8, 64], strides = [1, 1]} : vector<16x192xf32> to vector<8x64xf32>
    %318 = vector.extract_strided_slice %316 {offsets = [0, 64], sizes = [8, 64], strides = [1, 1]} : vector<16x192xf32> to vector<8x64xf32>
    %319 = vector.extract_strided_slice %316 {offsets = [8, 128], sizes = [8, 64], strides = [1, 1]} : vector<16x192xf32> to vector<8x64xf32>
    %320 = tpu.concatenate %318, %319 in 0 : vector<8x64xf32>, vector<8x64xf32> -> vector<16x64xf32>
    %cst_144 = arith.constant dense<0.000000e+00> : vector<8x64xf32>
    %321 = tpu.matmul %19, %317, %cst_144 {dimension_numbers = #tpu.dot_dimension_numbers<[1], [0], [0], [1], [0, 0, 1, 1], [], []>} : vector<8x8xf32>, vector<8x64xf32>, vector<8x64xf32> -> vector<8x64xf32>
    %cst_145 = arith.constant dense<0.000000e+00> : vector<8x64xf32>
    %322 = tpu.matmul %20, %320, %cst_145 {dimension_numbers = #tpu.dot_dimension_numbers<[1], [0], [0], [1], [0, 0, 1, 1], [], []>} : vector<8x16xf32>, vector<16x64xf32>, vector<8x64xf32> -> vector<8x64xf32>
    %cst_146 = arith.constant 0.000000e+00 : f32
    %323 = vector.broadcast %cst_146 : f32 to vector<8x64xf32>
    %324 = arith.maximumf %321, %323 : vector<8x64xf32>
    %325 = arith.negf %322 : vector<8x64xf32>
    %326 = math.exp %325 : vector<8x64xf32>
    %cst_147 = arith.constant 1.000000e+00 : f32
    %327 = vector.broadcast %cst_147 : f32 to vector<8x64xf32>
    %328 = arith.addf %327, %326 : vector<8x64xf32>
    %329 = arith.divf %327, %328 : vector<8x64xf32>
    %330 = arith.addf %324, %329 : vector<8x64xf32>
    %cst_148 = arith.constant 5.000000e-01 : f32
    %331 = vector.broadcast %cst_148 : f32 to vector<8x64xf32>
    %332 = arith.mulf %330, %331 : vector<8x64xf32>
    %cst_149 = arith.constant 0.000000e+00 : f32
    %333 = vector.broadcast %cst_149 : f32 to vector<8x64xf32>
    %334 = arith.maximumf %332, %333 : vector<8x64xf32>
    %cst_150 = arith.constant 0.899999976 : f32
    %335 = vector.broadcast %cst_150 : f32 to vector<8x64xf32>
    %336 = arith.mulf %335, %334 : vector<8x64xf32>
    %cst_151 = arith.constant 1.000000e-01 : f32
    %337 = vector.broadcast %cst_151 : f32 to vector<8x64xf32>
    %338 = arith.mulf %337, %17 : vector<8x64xf32>
    %339 = arith.addf %336, %338 : vector<8x64xf32>
    %cst_152 = arith.constant 0.000000e+00 : f32
    %340 = vector.broadcast %cst_152 : f32 to vector<8x64xf32>
    %341 = arith.maximumf %339, %340 : vector<8x64xf32>
    %342 = tpu.concatenate %341, %312 in 0 : vector<8x64xf32>, vector<8x64xf32> -> vector<16x64xf32>
    %c5_153 = arith.constant 5 : index
    %c0_154 = arith.constant 0 : index
    %c0_155 = arith.constant 0 : index
    %343 = vector.load %arg9[%c5_153, %c0_154, %c0_155] : memref<6x64x192xf32, #tpu.memory_space<vmem>>, vector<1x64x192xf32>
    %344 = vector.shape_cast %343 : vector<1x64x192xf32> to vector<64x192xf32>
    %cst_156 = arith.constant dense<0.000000e+00> : vector<16x192xf32>
    %345 = tpu.matmul %342, %344, %cst_156 {dimension_numbers = #tpu.dot_dimension_numbers<[1], [0], [0], [1], [0, 0, 1, 1], [], []>} : vector<16x64xf32>, vector<64x192xf32>, vector<16x192xf32> -> vector<16x192xf32>
    %346 = vector.extract_strided_slice %345 {offsets = [8, 0], sizes = [8, 64], strides = [1, 1]} : vector<16x192xf32> to vector<8x64xf32>
    %347 = vector.extract_strided_slice %345 {offsets = [8, 64], sizes = [8, 64], strides = [1, 1]} : vector<16x192xf32> to vector<8x64xf32>
    %348 = vector.extract_strided_slice %345 {offsets = [0, 128], sizes = [8, 64], strides = [1, 1]} : vector<16x192xf32> to vector<8x64xf32>
    %349 = tpu.concatenate %347, %348 in 0 : vector<8x64xf32>, vector<8x64xf32> -> vector<16x64xf32>
    %cst_157 = arith.constant dense<0.000000e+00> : vector<8x64xf32>
    %350 = tpu.matmul %21, %346, %cst_157 {dimension_numbers = #tpu.dot_dimension_numbers<[1], [0], [0], [1], [0, 0, 1, 1], [], []>} : vector<8x8xf32>, vector<8x64xf32>, vector<8x64xf32> -> vector<8x64xf32>
    %cst_158 = arith.constant dense<0.000000e+00> : vector<8x64xf32>
    %351 = tpu.matmul %22, %349, %cst_158 {dimension_numbers = #tpu.dot_dimension_numbers<[1], [0], [0], [1], [0, 0, 1, 1], [], []>} : vector<8x16xf32>, vector<16x64xf32>, vector<8x64xf32> -> vector<8x64xf32>
    %cst_159 = arith.constant 0.000000e+00 : f32
    %352 = vector.broadcast %cst_159 : f32 to vector<8x64xf32>
    %353 = arith.maximumf %350, %352 : vector<8x64xf32>
    %354 = arith.negf %351 : vector<8x64xf32>
    %355 = math.exp %354 : vector<8x64xf32>
    %cst_160 = arith.constant 1.000000e+00 : f32
    %356 = vector.broadcast %cst_160 : f32 to vector<8x64xf32>
    %357 = arith.addf %356, %355 : vector<8x64xf32>
    %358 = arith.divf %356, %357 : vector<8x64xf32>
    %359 = arith.addf %353, %358 : vector<8x64xf32>
    %cst_161 = arith.constant 5.000000e-01 : f32
    %360 = vector.broadcast %cst_161 : f32 to vector<8x64xf32>
    %361 = arith.mulf %359, %360 : vector<8x64xf32>
    %cst_162 = arith.constant 0.000000e+00 : f32
    %362 = vector.broadcast %cst_162 : f32 to vector<8x64xf32>
    %363 = arith.maximumf %361, %362 : vector<8x64xf32>
    %cst_163 = arith.constant 0.899999976 : f32
    %364 = vector.broadcast %cst_163 : f32 to vector<8x64xf32>
    %365 = arith.mulf %364, %363 : vector<8x64xf32>
    %cst_164 = arith.constant 1.000000e-01 : f32
    %366 = vector.broadcast %cst_164 : f32 to vector<8x64xf32>
    %367 = arith.mulf %366, %18 : vector<8x64xf32>
    %368 = arith.addf %365, %367 : vector<8x64xf32>
    %cst_165 = arith.constant 0.000000e+00 : f32
    %369 = vector.broadcast %cst_165 : f32 to vector<8x64xf32>
    %370 = arith.maximumf %368, %369 : vector<8x64xf32>
    %371 = tpu.concatenate %341, %370 in 0 : vector<8x64xf32>, vector<8x64xf32> -> vector<16x64xf32>
    %c0_166 = arith.constant 0 : index
    %c0_167 = arith.constant 0 : index
    %372 = vector.load %arg10[%c0_166, %c0_167] : memref<64x144xf32, #tpu.memory_space<vmem>>, vector<64x144xf32>
    %cst_168 = arith.constant dense<0.000000e+00> : vector<16x144xf32>
    %373 = tpu.matmul %371, %372, %cst_168 {dimension_numbers = #tpu.dot_dimension_numbers<[1], [0], [0], [1], [0, 0, 1, 1], [], []>} : vector<16x64xf32>, vector<64x144xf32>, vector<16x144xf32> -> vector<16x144xf32>
    %c0_169 = arith.constant 0 : index
    %c0_170 = arith.constant 0 : index
    %374 = vector.load %arg11[%c0_169, %c0_170] : memref<1x144xf32, #tpu.memory_space<vmem>>, vector<1x144xf32>
    %375 = vector.broadcast %374 : vector<1x144xf32> to vector<16x144xf32>
    %376 = arith.addf %373, %375 : vector<16x144xf32>
    %377 = vector.extract_strided_slice %376 {offsets = [0, 0], sizes = [16, 48], strides = [1, 1]} : vector<16x144xf32> to vector<16x48xf32>
    %378 = vector.extract_strided_slice %376 {offsets = [0, 96], sizes = [16, 48], strides = [1, 1]} : vector<16x144xf32> to vector<16x48xf32>
    %379 = arith.addf %377, %378 : vector<16x48xf32>
    %380 = vector.extract_strided_slice %376 {offsets = [0, 48], sizes = [16, 48], strides = [1, 1]} : vector<16x144xf32> to vector<16x48xf32>
    %381 = arith.negf %380 : vector<16x48xf32>
    %382 = math.exp %381 : vector<16x48xf32>
    %cst_171 = arith.constant 1.000000e+00 : f32
    %383 = vector.broadcast %cst_171 : f32 to vector<16x48xf32>
    %384 = arith.addf %383, %382 : vector<16x48xf32>
    %385 = arith.divf %383, %384 : vector<16x48xf32>
    %386 = arith.mulf %379, %385 : vector<16x48xf32>
    %c0_172 = arith.constant 0 : index
    %c0_173 = arith.constant 0 : index
    %c0_174 = arith.constant 0 : index
    %387 = vector.load %arg12[%c0_172, %c0_173, %c0_174] : memref<1x16x48xf32, #tpu.memory_space<vmem>>, vector<1x16x48xf32>
    %388 = vector.shape_cast %387 : vector<1x16x48xf32> to vector<16x48xf32>
    %389 = vector.shape_cast %386 : vector<16x48xf32> to vector<1x16x48xf32>
    tpu.vector_store %arg12[%c0_172, %c0_173, %c0_174], %389 {strides = array<i32>} : memref<1x16x48xf32, #tpu.memory_space<vmem>>, vector<1x16x48xf32>,
    return
  }
  func.func @transform_0(%arg0: i32) -> (i32, i32, i32) {
    %c0_i32 = arith.constant 0 : i32
    %c0_i32_0 = arith.constant 0 : i32
    %c0_i32_1 = arith.constant 0 : i32
    return %arg0, %c0_i32, %c0_i32_0 : i32, i32, i32
  }
  func.func @transform_1(%arg0: i32) -> (i32, i32) {
    %c0_i32 = arith.constant 0 : i32
    %c0_i32_0 = arith.constant 0 : i32
    %c0_i32_1 = arith.constant 0 : i32
    return %c0_i32, %c0_i32_0 : i32, i32
  }
  func.func @transform_2(%arg0: i32) -> (i32, i32) {
    %c0_i32 = arith.constant 0 : i32
    %c0_i32_0 = arith.constant 0 : i32
    %c0_i32_1 = arith.constant 0 : i32
    return %c0_i32, %c0_i32_0 : i32, i32
  }
  func.func @transform_3(%arg0: i32) -> (i32, i32) {
    %c0_i32 = arith.constant 0 : i32
    %c0_i32_0 = arith.constant 0 : i32
    %c0_i32_1 = arith.constant 0 : i32
    return %c0_i32, %c0_i32_0 : i32, i32
  }
  func.func @transform_4(%arg0: i32) -> (i32, i32) {
    %c0_i32 = arith.constant 0 : i32
    %c0_i32_0 = arith.constant 0 : i32
    %c0_i32_1 = arith.constant 0 : i32
    return %c0_i32, %c0_i32_0 : i32, i32
  }
  func.func @transform_5(%arg0: i32) -> (i32, i32) {
    %c0_i32 = arith.constant 0 : i32
    %c0_i32_0 = arith.constant 0 : i32
    %c0_i32_1 = arith.constant 0 : i32
    return %c0_i32, %c0_i32_0 : i32, i32
  }
  func.func @transform_6(%arg0: i32) -> (i32, i32) {
    %c0_i32 = arith.constant 0 : i32
    %c0_i32_0 = arith.constant 0 : i32
    %c0_i32_1 = arith.constant 0 : i32
    return %c0_i32, %c0_i32_0 : i32, i32
  }
  func.func @transform_7(%arg0: i32) -> (i32, i32, i32) {
    %c0_i32 = arith.constant 0 : i32
    %c0_i32_0 = arith.constant 0 : i32
    %c0_i32_1 = arith.constant 0 : i32
    %c0_i32_2 = arith.constant 0 : i32
    return %c0_i32, %c0_i32_0, %c0_i32_1 : i32, i32, i32
  }
  func.func @transform_8(%arg0: i32) -> (i32, i32, i32) {
    %c0_i32 = arith.constant 0 : i32
    %c0_i32_0 = arith.constant 0 : i32
    %c0_i32_1 = arith.constant 0 : i32
    %c0_i32_2 = arith.constant 0 : i32
    return %c0_i32, %c0_i32_0, %c0_i32_1 : i32, i32, i32
  }
  func.func @transform_9(%arg0: i32) -> (i32, i32) {
    %c0_i32 = arith.constant 0 : i32
    %c0_i32_0 = arith.constant 0 : i32
    %c0_i32_1 = arith.constant 0 : i32
    return %c0_i32, %c0_i32_0 : i32, i32
  }
  func.func @transform_10(%arg0: i32) -> (i32, i32) {
    %c0_i32 = arith.constant 0 : i32
    %c0_i32_0 = arith.constant 0 : i32
    %c0_i32_1 = arith.constant 0 : i32
    return %c0_i32, %c0_i32_0 : i32, i32
  }
  func.func @transform_11(%arg0: i32) -> (i32, i32, i32) {
    %c0_i32 = arith.constant 0 : i32
    %c0_i32_0 = arith.constant 0 : i32
    %c0_i32_1 = arith.constant 0 : i32
    return %arg0, %c0_i32, %c0_i32_0 : i32, i32, i32
  }
}

module attributes {stable_mosaic.version = 11 : i64} {
  func.func @_bn_kernel(%arg0: i32, %arg1: memref<2x8x48xf32, #tpu.memory_space<vmem>>, %arg2: memref<1x8x1xf32, #tpu.memory_space<vmem>>, %arg3: memref<1x8x1xf32, #tpu.memory_space<vmem>>, %arg4: memref<2x8x48xf32, #tpu.memory_space<vmem>>) attributes {dimension_semantics = [#tpu.dimension_semantics<parallel>], iteration_bounds = array<i64: 2>, scalar_prefetch = 0 : i64, scratch_operands = 0 : i64, tpu.core_type = #tpu.core_type<tc>, window_params = [{transform_indices = @transform_0, window_bounds = array<i64: 2, 8, 48>}, {transform_indices = @transform_1, window_bounds = array<i64: 1, 8, 1>}, {transform_indices = @transform_2, window_bounds = array<i64: 1, 8, 1>}, {transform_indices = @transform_3, window_bounds = array<i64: 2, 8, 48>}]} {
    %c0 = arith.constant 0 : index
    %c0_0 = arith.constant 0 : index
    %c0_1 = arith.constant 0 : index
    %0 = vector.load %arg1[%c0, %c0_0, %c0_1] : memref<2x8x48xf32, #tpu.memory_space<vmem>>, vector<2x8x48xf32>
    %cst = arith.constant dense<0.000000e+00> : vector<2x8xf32>
    %1 = vector.multi_reduction <add>, %0, %cst [2] : vector<2x8x48xf32> to vector<2x8xf32>
    %2 = vector.shape_cast %1 : vector<2x8xf32> to vector<2x8x1xf32>
    %cst_2 = arith.constant dense<0.000000e+00> : vector<8x1xf32>
    %3 = vector.multi_reduction <add>, %2, %cst_2 [0] : vector<2x8x1xf32> to vector<8x1xf32>
    %4 = vector.shape_cast %3 : vector<8x1xf32> to vector<1x8x1xf32>
    %5 = arith.mulf %0, %0 : vector<2x8x48xf32>
    %cst_3 = arith.constant dense<0.000000e+00> : vector<2x8xf32>
    %6 = vector.multi_reduction <add>, %5, %cst_3 [2] : vector<2x8x48xf32> to vector<2x8xf32>
    %7 = vector.shape_cast %6 : vector<2x8xf32> to vector<2x8x1xf32>
    %cst_4 = arith.constant dense<0.000000e+00> : vector<8x1xf32>
    %8 = vector.multi_reduction <add>, %7, %cst_4 [0] : vector<2x8x1xf32> to vector<8x1xf32>
    %9 = vector.shape_cast %8 : vector<8x1xf32> to vector<1x8x1xf32>
    %cst_5 = arith.constant 9.600000e+01 : f32
    %10 = vector.broadcast %cst_5 : f32 to vector<1x8x1xf32>
    %11 = arith.divf %4, %10 : vector<1x8x1xf32>
    %cst_6 = arith.constant 9.600000e+01 : f32
    %12 = vector.broadcast %cst_6 : f32 to vector<1x8x1xf32>
    %13 = arith.divf %9, %12 : vector<1x8x1xf32>
    %14 = arith.mulf %11, %11 : vector<1x8x1xf32>
    %15 = arith.subf %13, %14 : vector<1x8x1xf32>
    %16 = vector.broadcast %11 : vector<1x8x1xf32> to vector<2x8x48xf32>
    %17 = arith.subf %0, %16 : vector<2x8x48xf32>
    %cst_7 = arith.constant 9.99999974E-6 : f32
    %18 = vector.broadcast %cst_7 : f32 to vector<1x8x1xf32>
    %19 = arith.addf %15, %18 : vector<1x8x1xf32>
    %20 = math.rsqrt %19 : vector<1x8x1xf32>
    %21 = vector.broadcast %20 : vector<1x8x1xf32> to vector<2x8x48xf32>
    %22 = arith.mulf %17, %21 : vector<2x8x48xf32>
    %c0_8 = arith.constant 0 : index
    %c0_9 = arith.constant 0 : index
    %c0_10 = arith.constant 0 : index
    %23 = vector.load %arg2[%c0_8, %c0_9, %c0_10] : memref<1x8x1xf32, #tpu.memory_space<vmem>>, vector<1x8x1xf32>
    %24 = vector.broadcast %23 : vector<1x8x1xf32> to vector<2x8x48xf32>
    %25 = arith.mulf %22, %24 : vector<2x8x48xf32>
    %c0_11 = arith.constant 0 : index
    %c0_12 = arith.constant 0 : index
    %c0_13 = arith.constant 0 : index
    %26 = vector.load %arg3[%c0_11, %c0_12, %c0_13] : memref<1x8x1xf32, #tpu.memory_space<vmem>>, vector<1x8x1xf32>
    %27 = vector.broadcast %26 : vector<1x8x1xf32> to vector<2x8x48xf32>
    %28 = arith.addf %25, %27 : vector<2x8x48xf32>
    %c0_14 = arith.constant 0 : index
    %c0_15 = arith.constant 0 : index
    %c0_16 = arith.constant 0 : index
    %29 = vector.load %arg4[%c0_14, %c0_15, %c0_16] : memref<2x8x48xf32, #tpu.memory_space<vmem>>, vector<2x8x48xf32>
    tpu.vector_store %arg4[%c0_14, %c0_15, %c0_16], %28 {strides = array<i32>} : memref<2x8x48xf32, #tpu.memory_space<vmem>>, vector<2x8x48xf32>,
    return
  }
  func.func @transform_0(%arg0: i32) -> (i32, i32, i32) {
    %c0_i32 = arith.constant 0 : i32
    %c0_i32_0 = arith.constant 0 : i32
    %c0_i32_1 = arith.constant 0 : i32
    return %c0_i32, %arg0, %c0_i32_0 : i32, i32, i32
  }
  func.func @transform_1(%arg0: i32) -> (i32, i32, i32) {
    %c0_i32 = arith.constant 0 : i32
    %c0_i32_0 = arith.constant 0 : i32
    %c0_i32_1 = arith.constant 0 : i32
    return %c0_i32, %arg0, %c0_i32_0 : i32, i32, i32
  }
  func.func @transform_2(%arg0: i32) -> (i32, i32, i32) {
    %c0_i32 = arith.constant 0 : i32
    %c0_i32_0 = arith.constant 0 : i32
    %c0_i32_1 = arith.constant 0 : i32
    return %c0_i32, %arg0, %c0_i32_0 : i32, i32, i32
  }
  func.func @transform_3(%arg0: i32) -> (i32, i32, i32) {
    %c0_i32 = arith.constant 0 : i32
    %c0_i32_0 = arith.constant 0 : i32
    %c0_i32_1 = arith.constant 0 : i32
    return %c0_i32, %arg0, %c0_i32_0 : i32, i32, i32
  }
}

</mosaic_0001>

<llo_original>
// kernel: het_stgcn_block.3
$region0: #{het_stgcn_block.3}
  #allocation0 [shape = 'u32[]', space=smem, size = 0x4, offset = 0x4, fixed_abs, tag = 'smem constant byte address 0x4 - core index']
  #allocation1 [shape = 'u32[72,128]{1,0:T(1,128)}', space=vmem, size = 0x9000, scoped, tag = 'internal scratch']
  %s0 = inlined_call_operand.vmem [shape: f32[2,16,48], index: 0, kind: input, shape index: {}]
  %s1 = inlined_call_operand.vmem [shape: f32[1,16,1], index: 1, kind: input, shape index: {}]
  %s2 = inlined_call_operand.vmem [shape: f32[1,16,1], index: 2, kind: input, shape index: {}]
  %s3 = inlined_call_operand.vmem [shape: f32[2,16,48], index: 3, kind: output, shape index: {}]
  %s4 = sld [smem:[#allocation0]]
  $region117: #{het_stgcn_block.3} parent=0
    _
  %s6 = ssub.s32 1, %s4
  %s7 = scalar_select 0, %s6, %s4
  $region1: #{het_stgcn_block.3} parent=0
    #allocation2 [shape = 'u8[16384]{0}', space=vmem, size = 0x4000, scoped, tag = 'input window, operand 0']
    #allocation3 [shape = 'u8[16384]{0}', space=vmem, size = 0x4000, scoped, tag = 'output window, operand 0']
    loop: start=0, step=1, limit=4
    $region2: #{het_stgcn_block.3} parent=1 // loop_pre_header
      _
    $region3: #{het_stgcn_block.3} parent=1 // loop_header
      %s9 = sphi 0, %s13
      %p10 = scmp.ge.s32.totalorder %s9, 4
      %s19 = sphi 0, %s21
      %s22 = sphi 0, %s19
      %s23 = sphi 0, %s22
      %s39 = sphi 0, %s23
      %s45 = sphi 0, %s47
      %s48 = sphi 0, %s45
      %s49 = sphi 0, %s48
      %s65 = sphi 0, %s49
      %s71 = sphi 0, %s73
      %s74 = sphi 0, %s71
      %s75 = sphi 0, %s74
      %s91 = sphi 0, %s75
      %s97 = sphi 0, %s99
      %s100 = sphi 0, %s97
      %s101 = sphi 0, %s100
      %s117 = sphi 0, %s101
    $region4: #{het_stgcn_block.3} parent=1 // loop_header_branch
      %12 = sbr.rel (%p10) target = $region8
    $region5: #{het_stgcn_block.3} parent=1 // loop_body
      %s14 = ssub.s32 %s9, 1
      %s15 = ssub.s32 %s9, 2
      %s16 = sadd.s32 %s9, 1
      %s17 = ssub.s32 %s9, %s16
      %p18 = scmp.eq.s32.totalorder %s17, 0
      %s20 = sadd.s32 %s19, 1
      %s21 = scalar_select %p18, %s19, %s20
      %p24 = pneg %p18
      %p25 = scmp.eq.s32.totalorder %s9, 1
      %p26 = por %p24, %p25
      %p27 = scmp.ne.s32.totalorder %s19, %s22
      %p28 = scmp.eq.s32.totalorder %s9, 0
      %p29 = por %p27, %p28
      %p30 = scmp.ne.s32.totalorder %s19, %s22
      %p31 = scmp.eq.s32.totalorder %s14, 1
      %p32 = por %p30, %p31
      %p33 = scmp.ne.s32.totalorder %s22, %s23
      %p34 = scmp.eq.s32.totalorder %s14, 0
      %p35 = por %p33, %p34
      %p36 = scmp.ne.s32.totalorder %s22, %s23
      %p37 = scmp.eq.s32.totalorder %s15, 1
      %p38 = por %p36, %p37
      %p40 = scmp.ne.s32.totalorder %s23, %s39
      %p41 = scmp.eq.s32.totalorder %s15, 0
      %p42 = por %p40, %p41
      %s43 = ssub.s32 %s9, %s16
      %p44 = scmp.eq.s32.totalorder %s43, 0
      %s46 = sadd.s32 %s45, 1
      %s47 = scalar_select %p44, %s45, %s46
      %p50 = pneg %p44
      %p51 = scmp.eq.s32.totalorder %s9, 1
      %p52 = por %p50, %p51
      %p53 = scmp.ne.s32.totalorder %s45, %s48
      %p54 = scmp.eq.s32.totalorder %s9, 0
      %p55 = por %p53, %p54
      %p56 = scmp.ne.s32.totalorder %s45, %s48
      %p57 = scmp.eq.s32.totalorder %s14, 1
      %p58 = por %p56, %p57
      %p59 = scmp.ne.s32.totalorder %s48, %s49
      %p60 = scmp.eq.s32.totalorder %s14, 0
      %p61 = por %p59, %p60
      %p62 = scmp.ne.s32.totalorder %s48, %s49
      %p63 = scmp.eq.s32.totalorder %s15, 1
      %p64 = por %p62, %p63
      %p66 = scmp.ne.s32.totalorder %s49, %s65
      %p67 = scmp.eq.s32.totalorder %s15, 0
      %p68 = por %p66, %p67
      %s69 = ssub.s32 %s9, %s16
      %p70 = scmp.eq.s32.totalorder %s69, 0
      %s72 = sadd.s32 %s71, 1
      %s73 = scalar_select %p70, %s71, %s72
      %p76 = pneg %p70
      %p77 = scmp.eq.s32.totalorder %s9, 1
      %p78 = por %p76, %p77
      %p79 = scmp.ne.s32.totalorder %s71, %s74
      %p80 = scmp.eq.s32.totalorder %s9, 0
      %p81 = por %p79, %p80
      %p82 = scmp.ne.s32.totalorder %s71, %s74
      %p83 = scmp.eq.s32.totalorder %s14, 1
      %p84 = por %p82, %p83
      %p85 = scmp.ne.s32.totalorder %s74, %s75
      %p86 = scmp.eq.s32.totalorder %s14, 0
      %p87 = por %p85, %p86
      %p88 = scmp.ne.s32.totalorder %s74, %s75
      %p89 = scmp.eq.s32.totalorder %s15, 1
      %p90 = por %p88, %p89
      %p92 = scmp.ne.s32.totalorder %s75, %s91
      %p93 = scmp.eq.s32.totalorder %s15, 0
      %p94 = por %p92, %p93
      %s95 = ssub.s32 %s9, %s16
      %p96 = scmp.eq.s32.totalorder %s95, 0
      %s98 = sadd.s32 %s97, 1
      %s99 = scalar_select %p96, %s97, %s98
      %p102 = pneg %p96
      %p103 = scmp.eq.s32.totalorder %s9, 1
      %p104 = por %p102, %p103
      %p105 = scmp.ne.s32.totalorder %s97, %s100
      %p106 = scmp.eq.s32.totalorder %s9, 0
      %p107 = por %p105, %p106
      %p108 = scmp.ne.s32.totalorder %s97, %s100
      %p109 = scmp.eq.s32.totalorder %s14, 1
      %p110 = por %p108, %p109
      %p111 = scmp.ne.s32.totalorder %s100, %s101
      %p112 = scmp.eq.s32.totalorder %s14, 0
      %p113 = por %p111, %p112
      %p114 = scmp.ne.s32.totalorder %s100, %s101
      %p115 = scmp.eq.s32.totalorder %s15, 1
      %p116 = por %p114, %p115
      %p118 = scmp.ne.s32.totalorder %s101, %s117
      %p119 = scmp.eq.s32.totalorder %s15, 0
      %p120 = por %p118, %p119
      %p121 = scmp.le.s32.totalorder 1, %s9
      %p122 = scmp.lt.s32.totalorder %s9, 3
      %p123 = pnand %p121, %p122
      %p124 = pneg %p123
      // Predicated region
      $region9: #{het_stgcn_block.3} parent=5 // pred_check
        _
      $region10: #{het_stgcn_block.3} parent=5 // pred_check_branch
        %126 = sbr.rel (%p123) target = $region12
      $region11: #{het_stgcn_block.3} parent=5 // pred_region
        %s127 = ssub.s32 %s9, 1
      $region12: #{het_stgcn_block.3} parent=5 // pred_fallthru
        _
      %p128 = scmp.lt.s32.totalorder %s9, 2
      // Predicated region
      $region13: #{het_stgcn_block.3} parent=5 // pred_check
        %p129 = pneg %p128
      $region14: #{het_stgcn_block.3} parent=5 // pred_check_branch
        %131 = sbr.rel (%p129) target = $region16
      $region15: #{het_stgcn_block.3} parent=5 // pred_region
        // Predicated region
        $region17: #{het_stgcn_block.3} parent=15 // pred_check
          %p132 = pneg %p29
        $region18: #{het_stgcn_block.3} parent=15 // pred_check_branch
          %134 = sbr.rel (%p132) target = $region20
        $region19: #{het_stgcn_block.3} parent=15 // pred_region
          %s135 = sand.u32 %s19, 1
          %s136 = sand.u32 %s19, 1
          %s137 = smul.addr %s136, 16
          %s138 = scalar_lea.vmem [#allocation2], %s137
          %s139 = smul.addr %s9, 8
          %s140 = scalar_lea.vmem %s0, %s139
          // Predicated region
          $region21: #{het_stgcn_block.3} parent=19 // pred_check
            _
          $region22: #{het_stgcn_block.3} parent=19 // pred_check_branch
            %142 = sbr.rel (0) target = $region24
          $region23: #{het_stgcn_block.3} parent=19 // pred_region
            // Predicated region
            $region25: #{het_stgcn_block.3} parent=23 // pred_check
              _
            $region26: #{het_stgcn_block.3} parent=23 // pred_check_branch
              %144 = sbr.rel (0) target = $region28
            $region27: #{het_stgcn_block.3} parent=23 // pred_region
              // Predicated region
              $region40: #{het_stgcn_block.3} parent=27 // pred_check
                _
              $region41: #{het_stgcn_block.3} parent=27 // pred_check_branch
                %162 = sbr.rel (0) target = $region43
              $region42: #{het_stgcn_block.3} parent=27 // pred_region
                loop: start=0, step=1, limit=1
                $region44: #{het_stgcn_block.3} parent=42 // loop_pre_header
                  _
                $region45: #{het_stgcn_block.3} parent=42 // loop_header
                  %s164 = sphi 0, %s168
                  %p165 = scmp.ge.s32.totalorder %s164, 1
                  %s169 = sphi %s140, %s140
                  %s170 = sphi %s138, %s138
                $region46: #{het_stgcn_block.3} parent=42 // loop_header_branch
                  %167 = sbr.rel (%p165) target = $region50
                $region47: #{het_stgcn_block.3} parent=42 // loop_body
                  %v171 = vld [vmem:[%s169] sm:$0xff]
                  %172 = vst [vmem:[%s170] sm:$0xff] %v171
                  %v173 = vld [vmem:[%s169 + $0x10] sm:$0xff]
                  %174 = vst [vmem:[%s170 + $0x8] sm:$0xff] %v173
                $region48: #{het_stgcn_block.3} parent=42 // loop_footer
                  %s168 = sadd.s32 1, %s164
                $region49: #{het_stgcn_block.3} parent=42 // loop_footer_branch
                  %163 = sbr.rel target = $region45
                $region50: #{het_stgcn_block.3} parent=42 // loop_exit
                  _
              $region43: #{het_stgcn_block.3} parent=27 // pred_fallthru
                _
              // Predicated region
              $region51: #{het_stgcn_block.3} parent=27 // pred_check
                _
              $region52: #{het_stgcn_block.3} parent=27 // pred_check_branch
                %176 = sbr.rel target = $region54
              $region53: #{het_stgcn_block.3} parent=27 // pred_region
                _
              $region54: #{het_stgcn_block.3} parent=27 // pred_fallthru
                _
            $region28: #{het_stgcn_block.3} parent=23 // pred_fallthru
              _
            // Predicated region
            $region29: #{het_stgcn_block.3} parent=23 // pred_check
              _
            $region30: #{het_stgcn_block.3} parent=23 // pred_check_branch
              %146 = sbr.rel target = $region32
            $region31: #{het_stgcn_block.3} parent=23 // pred_region
              %s148 = ssub.s32 256, 1
              loop: start=0, step=1, limit=1
              $region33: #{het_stgcn_block.3} parent=31 // loop_pre_header
                _
              $region34: #{het_stgcn_block.3} parent=31 // loop_header
                %s150 = sphi 0, %s154
                %p151 = scmp.ge.s32.totalorder %s150, 1
                %s155 = sphi %s140, %s140
                %s156 = sphi %s138, %s138
              $region35: #{het_stgcn_block.3} parent=31 // loop_header_branch
                %153 = sbr.rel (%p151) target = $region39
              $region36: #{het_stgcn_block.3} parent=31 // loop_body
                %v157 = vld [vmem:[%s155] sm:%s148]
                %158 = vst [vmem:[%s156] sm:%s148] %v157
                %v159 = vld [vmem:[%s155 + $0x10] sm:%s148]
                %160 = vst [vmem:[%s156 + $0x8] sm:%s148] %v159
              $region37: #{het_stgcn_block.3} parent=31 // loop_footer
                %s154 = sadd.s32 1, %s150
              $region38: #{het_stgcn_block.3} parent=31 // loop_footer_branch
                %149 = sbr.rel target = $region34
              $region39: #{het_stgcn_block.3} parent=31 // loop_exit
                _
            $region32: #{het_stgcn_block.3} parent=23 // pred_fallthru
              _
          $region24: #{het_stgcn_block.3} parent=19 // pred_fallthru
            _
          %177 = vnop
        $region20: #{het_stgcn_block.3} parent=15 // pred_fallthru
          _
        // Predicated region
        $region55: #{het_stgcn_block.3} parent=15 // pred_check
          %p178 = pneg %p55
        $region56: #{het_stgcn_block.3} parent=15 // pred_check_branch
          %180 = sbr.rel (%p178) target = $region58
        $region57: #{het_stgcn_block.3} parent=15 // pred_region
          %p181 = scmp.lt.s32.totalorder %s9, 1
          %s182 = scalar_select %p181, %s9, 1
          %s183 = smul.addr %s182, 8
          %s184 = scalar_lea.vmem %s1, %s183
        $region58: #{het_stgcn_block.3} parent=15 // pred_fallthru
          _
        // Predicated region
        $region59: #{het_stgcn_block.3} parent=15 // pred_check
          %p185 = pneg %p81
        $region60: #{het_stgcn_block.3} parent=15 // pred_check_branch
          %187 = sbr.rel (%p185) target = $region62
        $region61: #{het_stgcn_block.3} parent=15 // pred_region
          %p188 = scmp.lt.s32.totalorder %s9, 1
          %s189 = scalar_select %p188, %s9, 1
          %s190 = smul.addr %s189, 8
          %s191 = scalar_lea.vmem %s2, %s190
        $region62: #{het_stgcn_block.3} parent=15 // pred_fallthru
          _
      $region16: #{het_stgcn_block.3} parent=5 // pred_fallthru
        _
      %p192 = scmp.le.s32.totalorder 1, %s9
      %p193 = scmp.lt.s32.totalorder %s9, 3
      %p194 = pnand %p192, %p193
      %p195 = pneg %p194
      // Predicated region
      $region63: #{het_stgcn_block.3} parent=5 // pred_check
        _
      $region64: #{het_stgcn_block.3} parent=5 // pred_check_branch
        %197 = sbr.rel (%p194) target = $region66
      $region65: #{het_stgcn_block.3} parent=5 // pred_region
        %s198 = ssub.s32 %s9, 1
        %s199 = sand.u32 %s22, 1
        %s200 = sand.u32 %s22, 1
        %s201 = smul.addr %s200, 16
        %s202 = scalar_lea.vmem [#allocation2], %s201
        // Predicated region
        $region67: #{het_stgcn_block.3} parent=65 // pred_check
          %p203 = pneg %p35
        $region68: #{het_stgcn_block.3} parent=65 // pred_check_branch
          %205 = sbr.rel (%p203) target = $region70
        $region69: #{het_stgcn_block.3} parent=65 // pred_region
          _
        $region70: #{het_stgcn_block.3} parent=65 // pred_fallthru
          _
        %s206 = sand.u32 %s22, 1
        %s207 = sand.u32 %s22, 1
        %s208 = smul.addr %s207, 16
        %s209 = scalar_lea.vmem [#allocation2], %s208
        %p210 = pneg %p35
        %p211 = pneg %p32
        %p212 = scmp.lt.s32.totalorder %s14, 1
        %s213 = scalar_select %p212, %s14, 1
        %s214 = smul.addr %s213, 8
        %s215 = scalar_lea.vmem %s1, %s214
        %p216 = pneg %p61
        %p217 = pneg %p58
        %p218 = scmp.lt.s32.totalorder %s14, 1
        %s219 = scalar_select %p218, %s14, 1
        %s220 = smul.addr %s219, 8
        %s221 = scalar_lea.vmem %s2, %s220
        %p222 = pneg %p87
        %p223 = pneg %p84
        %p224 = pneg %p113
        %p225 = pneg %p110
        %s226 = sand.u32 %s100, 1
        %s227 = sand.u32 %s100, 1
        %s228 = smul.addr %s227, 16
        %s229 = scalar_lea.vmem [#allocation3], %s228
        %p230 = scmp.lt.s32.totalorder %s14, 1
        %s231 = scalar_select %p230, %s14, 1
        %s232 = smul.addr %s231, 8
        %s233 = scalar_lea.vmem %s1, %s232
        %p234 = scmp.lt.s32.totalorder %s14, 1
        %s235 = scalar_select %p234, %s14, 1
        %s236 = smul.addr %s235, 8
        %s237 = scalar_lea.vmem %s2, %s236
        %v238 = vld [vmem:[%s202] sm:$0xff]
        %v239 = vld [vmem:[%s202 + $0x8] sm:$0xff]
        %vm240 = vcmask 392192
        %v241 = vsel %vm240, %v238, 0.0
        %242 = vadd.xlane.f32.xlu0 %v241
        %v243 = vpop.xlane.xlu0 %242
        %v244 = vsel %vm240, %v239, 0.0
        %245 = vadd.xlane.f32.xlu0 %v244
        %v246 = vpop.xlane.xlu0 %245
        %v247 = vadd.f32 %v243, %v246
        %v248 = vmul.f32 %v238, %v238
        %v249 = vmul.f32 %v239, %v239
        %v250 = vsel %vm240, %v248, 0.0
        %251 = vadd.xlane.f32.xlu0 %v250
        %v252 = vpop.xlane.xlu0 %251
        %v253 = vsel %vm240, %v249, 0.0
        %254 = vadd.xlane.f32.xlu0 %v253
        %v255 = vpop.xlane.xlu0 %254
        %v256 = vadd.f32 %v252, %v255
        %v257 = vrcp.pop 96.0
        %v258 = vmul.f32 96.0, %v257
        %v259 = vsub.f32 1.0, %v258
        %v260 = vmul.f32 %v257, %v259
        %v261 = vadd.f32 %v257, %v260
        %vm262 = vweird.f32 %v257
        %v263 = vsel %vm262, %v257, %v261
        %v264 = vmul.f32 %v247, %v263
        %v265 = vmul.f32 %v256, %v263
        %v266 = vmul.f32 %v264, %v264
        %v267 = vsub.f32 %v265, %v266
        %v268 = vsub.f32 %v238, %v264
        %v269 = vsub.f32 %v239, %v264
        %v270 = vadd.f32 %v267, 1e-05
        %v271 = vrsqrt.pop %v270
        %v272 = vmul.f32 %v271, %v270
        %v273 = vmul.f32 %v272, %v271
        %v274 = vmul.f32 0.5, %v273
        %v275 = vsub.f32 1.5, %v274
        %v276 = vmul.f32 %v271, %v275
        %vm277 = vweird.f32 %v270
        %vm278 = vweird.f32 %v271
        %vm279 = vmor %vm277, %vm278
        %v280 = vsel %vm279, %v271, %v276
        %v281 = vmul.f32 %v268, %v280
        %v282 = vmul.f32 %v269, %v280
        %v283 = vld [vmem:[%s233] sm:$0xff]
        %285 = vset.pattern.permute.xlu0 0
        %286 = vperm.xlu0 %285, %v283
        %v287 = vpop.permute.xlu0 %286
        %v289 = vmul.f32 %v281, %v287
        %v290 = vmul.f32 %v282, %v287
        %v291 = vld [vmem:[%s237] sm:$0xff]
        %293 = vset.pattern.permute.xlu0 0
        %294 = vperm.xlu0 %293, %v291
        %v295 = vpop.permute.xlu0 %294
        %v297 = vadd.f32 %v289, %v295
        %v298 = vadd.f32 %v290, %v295
        %299 = vst.msk [vmem:[%s229] sm:$0xff] %vm240, %v297
        %300 = vst.msk [vmem:[%s229 + $0x8] sm:$0xff] %vm240, %v298
        %s301 = sand.u32 %s100, 1
        %s302 = sand.u32 %s100, 1
        %s303 = smul.addr %s302, 16
        %s304 = scalar_lea.vmem [#allocation3], %s303
        // Predicated region
        $region71: #{het_stgcn_block.3} parent=65 // pred_check
          %p305 = pneg %p110
        $region72: #{het_stgcn_block.3} parent=65 // pred_check_branch
          %307 = sbr.rel (%p305) target = $region74
        $region73: #{het_stgcn_block.3} parent=65 // pred_region
          %s308 = smul.addr %s14, 8
          %s309 = scalar_lea.vmem %s3, %s308
          // Predicated region
          $region75: #{het_stgcn_block.3} parent=73 // pred_check
            _
          $region76: #{het_stgcn_block.3} parent=73 // pred_check_branch
            %311 = sbr.rel (0) target = $region78
          $region77: #{het_stgcn_block.3} parent=73 // pred_region
            // Predicated region
            $region79: #{het_stgcn_block.3} parent=77 // pred_check
              _
            $region80: #{het_stgcn_block.3} parent=77 // pred_check_branch
              %313 = sbr.rel (0) target = $region82
            $region81: #{het_stgcn_block.3} parent=77 // pred_region
              // Predicated region
              $region94: #{het_stgcn_block.3} parent=81 // pred_check
                _
              $region95: #{het_stgcn_block.3} parent=81 // pred_check_branch
                %331 = sbr.rel (0) target = $region97
              $region96: #{het_stgcn_block.3} parent=81 // pred_region
                loop: start=0, step=1, limit=1
                $region98: #{het_stgcn_block.3} parent=96 // loop_pre_header
                  _
                $region99: #{het_stgcn_block.3} parent=96 // loop_header
                  %s333 = sphi 0, %s337
                  %p334 = scmp.ge.s32.totalorder %s333, 1
                  %s338 = sphi %s304, %s304
                  %s339 = sphi %s309, %s309
                $region100: #{het_stgcn_block.3} parent=96 // loop_header_branch
                  %336 = sbr.rel (%p334) target = $region104
                $region101: #{het_stgcn_block.3} parent=96 // loop_body
                  %v340 = vld [vmem:[%s338] sm:$0xff]
                  %341 = vst [vmem:[%s339] sm:$0xff] %v340
                  %v342 = vld [vmem:[%s338 + $0x8] sm:$0xff]
                  %343 = vst [vmem:[%s339 + $0x10] sm:$0xff] %v342
                $region102: #{het_stgcn_block.3} parent=96 // loop_footer
                  %s337 = sadd.s32 1, %s333
                $region103: #{het_stgcn_block.3} parent=96 // loop_footer_branch
                  %332 = sbr.rel target = $region99
                $region104: #{het_stgcn_block.3} parent=96 // loop_exit
                  _
              $region97: #{het_stgcn_block.3} parent=81 // pred_fallthru
                _
              // Predicated region
              $region105: #{het_stgcn_block.3} parent=81 // pred_check
                _
              $region106: #{het_stgcn_block.3} parent=81 // pred_check_branch
                %345 = sbr.rel target = $region108
              $region107: #{het_stgcn_block.3} parent=81 // pred_region
                _
              $region108: #{het_stgcn_block.3} parent=81 // pred_fallthru
                _
            $region82: #{het_stgcn_block.3} parent=77 // pred_fallthru
              _
            // Predicated region
            $region83: #{het_stgcn_block.3} parent=77 // pred_check
              _
            $region84: #{het_stgcn_block.3} parent=77 // pred_check_branch
              %315 = sbr.rel target = $region86
            $region85: #{het_stgcn_block.3} parent=77 // pred_region
              %s317 = ssub.s32 256, 1
              loop: start=0, step=1, limit=1
              $region87: #{het_stgcn_block.3} parent=85 // loop_pre_header
                _
              $region88: #{het_stgcn_block.3} parent=85 // loop_header
                %s319 = sphi 0, %s323
                %p320 = scmp.ge.s32.totalorder %s319, 1
                %s324 = sphi %s304, %s304
                %s325 = sphi %s309, %s309
              $region89: #{het_stgcn_block.3} parent=85 // loop_header_branch
                %322 = sbr.rel (%p320) target = $region93
              $region90: #{het_stgcn_block.3} parent=85 // loop_body
                %v326 = vld [vmem:[%s324] sm:%s317]
                %327 = vst [vmem:[%s325] sm:%s317] %v326
                %v328 = vld [vmem:[%s324 + $0x8] sm:%s317]
                %329 = vst [vmem:[%s325 + $0x10] sm:%s317] %v328
              $region91: #{het_stgcn_block.3} parent=85 // loop_footer
                %s323 = sadd.s32 1, %s319
              $region92: #{het_stgcn_block.3} parent=85 // loop_footer_branch
                %318 = sbr.rel target = $region88
              $region93: #{het_stgcn_block.3} parent=85 // loop_exit
                _
            $region86: #{het_stgcn_block.3} parent=77 // pred_fallthru
              _
          $region78: #{het_stgcn_block.3} parent=73 // pred_fallthru
            _
          %346 = vnop
        $region74: #{het_stgcn_block.3} parent=65 // pred_fallthru
          _
      $region66: #{het_stgcn_block.3} parent=5 // pred_fallthru
        _
      %p347 = scmp.le.s32.totalorder 2, %s9
      // Predicated region
      $region109: #{het_stgcn_block.3} parent=5 // pred_check
        %p348 = pneg %p347
      $region110: #{het_stgcn_block.3} parent=5 // pred_check_branch
        %350 = sbr.rel (%p348) target = $region112
      $region111: #{het_stgcn_block.3} parent=5 // pred_region
        %s351 = ssub.s32 %s9, 2
        // Predicated region
        $region113: #{het_stgcn_block.3} parent=111 // pred_check
          %p352 = pneg %p116
        $region114: #{het_stgcn_block.3} parent=111 // pred_check_branch
          %354 = sbr.rel (%p352) target = $region116
        $region115: #{het_stgcn_block.3} parent=111 // pred_region
          %s355 = sand.u32 %s101, 1
          %s356 = sand.u32 %s101, 1
          %s357 = smul.addr %s356, 16
          %s358 = scalar_lea.vmem [#allocation3], %s357
        $region116: #{het_stgcn_block.3} parent=111 // pred_fallthru
          _
      $region112: #{het_stgcn_block.3} parent=5 // pred_fallthru
        _
    $region6: #{het_stgcn_block.3} parent=1 // loop_footer
      %s13 = sadd.s32 1, %s9
    $region7: #{het_stgcn_block.3} parent=1 // loop_footer_branch
      %8 = sbr.rel target = $region3
    $region8: #{het_stgcn_block.3} parent=1 // loop_exit
      _

// kernel: het_stgcn_block.2
$region0: #{het_stgcn_block.2}
  #allocation0 [shape = 'u32[]', space=smem, size = 0x4, offset = 0x4, fixed_abs, tag = 'smem constant byte address 0x4 - core index']
  #allocation1 [shape = 'u32[72,128]{1,0:T(1,128)}', space=vmem, size = 0x9000, scoped, tag = 'internal scratch']
  %s0 = inlined_call_operand.vmem [shape: f32[2,16,40], index: 0, kind: input, shape index: {}]
  %s1 = inlined_call_operand.vmem [shape: f32[40,192], index: 1, kind: input, shape index: {}]
  %s2 = inlined_call_operand.vmem [shape: f32[1,192], index: 2, kind: input, shape index: {}]
  %s3 = inlined_call_operand.vmem [shape: f32[8,8], index: 3, kind: input, shape index: {}]
  %s4 = inlined_call_operand.vmem [shape: f32[8,16], index: 4, kind: input, shape index: {}]
  %s5 = inlined_call_operand.vmem [shape: f32[8,8], index: 5, kind: input, shape index: {}]
  %s6 = inlined_call_operand.vmem [shape: f32[8,16], index: 6, kind: input, shape index: {}]
  %s7 = inlined_call_operand.vmem [shape: f32[6,64,192], index: 7, kind: input, shape index: {}]
  %s8 = inlined_call_operand.vmem [shape: f32[6,64,192], index: 8, kind: input, shape index: {}]
  %s9 = inlined_call_operand.vmem [shape: f32[64,144], index: 9, kind: input, shape index: {}]
  %s10 = inlined_call_operand.vmem [shape: f32[1,144], index: 10, kind: input, shape index: {}]
  %s11 = inlined_call_operand.vmem [shape: f32[2,16,48], index: 11, kind: output, shape index: {}]
  %s12 = sld [smem:[#allocation0]]
  $region77: #{het_stgcn_block.2} parent=0
    _
  %s14 = ssub.s32 1, %s12
  %s15 = scalar_select 0, %s14, %s12
  loop: start=0, step=1, limit=4
  $region2: #{het_stgcn_block.2} parent=0 // loop_pre_header
    _
  $region3: #{het_stgcn_block.2} parent=0 // loop_header
    %s17 = sphi 0, %s21
    %p18 = scmp.ge.s32.totalorder %s17, 4
    %s27 = sphi 0, %s29
    %s30 = sphi 0, %s27
    %s31 = sphi 0, %s30
    %s47 = sphi 0, %s31
    %s51 = sphi 0, %s51
    %s53 = sphi 0, %s51
    %s54 = sphi 0, %s53
    %s68 = sphi 0, %s54
    %s72 = sphi 0, %s72
    %s74 = sphi 0, %s72
    %s75 = sphi 0, %s74
    %s89 = sphi 0, %s75
    %s93 = sphi 0, %s93
    %s95 = sphi 0, %s93
    %s96 = sphi 0, %s95
    %s110 = sphi 0, %s96
    %s114 = sphi 0, %s114
    %s116 = sphi 0, %s114
    %s117 = sphi 0, %s116
    %s131 = sphi 0, %s117
    %s135 = sphi 0, %s135
    %s137 = sphi 0, %s135
    %s138 = sphi 0, %s137
    %s152 = sphi 0, %s138
    %s156 = sphi 0, %s156
    %s158 = sphi 0, %s156
    %s159 = sphi 0, %s158
    %s173 = sphi 0, %s159
    %s177 = sphi 0, %s177
    %s179 = sphi 0, %s177
    %s180 = sphi 0, %s179
    %s194 = sphi 0, %s180
    %s198 = sphi 0, %s198
    %s200 = sphi 0, %s198
    %s201 = sphi 0, %s200
    %s215 = sphi 0, %s201
    %s219 = sphi 0, %s219
    %s221 = sphi 0, %s219
    %s222 = sphi 0, %s221
    %s236 = sphi 0, %s222
    %s240 = sphi 0, %s240
    %s242 = sphi 0, %s240
    %s243 = sphi 0, %s242
    %s257 = sphi 0, %s243
    %s263 = sphi 0, %s265
    %s266 = sphi 0, %s263
    %s267 = sphi 0, %s266
    %s283 = sphi 0, %s267
  $region4: #{het_stgcn_block.2} parent=0 // loop_header_branch
    %20 = sbr.rel (%p18) target = $region8
  $region5: #{het_stgcn_block.2} parent=0 // loop_body
    %s22 = ssub.s32 %s17, 1
    %s23 = ssub.s32 %s17, 2
    %s24 = sadd.s32 %s17, 1
    %s25 = ssub.s32 %s17, %s24
    %p26 = scmp.eq.s32.totalorder %s25, 0
    %s28 = sadd.s32 %s27, 1
    %s29 = scalar_select %p26, %s27, %s28
    %p32 = pneg %p26
    %p33 = scmp.eq.s32.totalorder %s17, 1
    %p34 = por %p32, %p33
    %p35 = scmp.ne.s32.totalorder %s27, %s30
    %p36 = scmp.eq.s32.totalorder %s17, 0
    %p37 = por %p35, %p36
    %p38 = scmp.ne.s32.totalorder %s27, %s30
    %p39 = scmp.eq.s32.totalorder %s22, 1
    %p40 = por %p38, %p39
    %p41 = scmp.ne.s32.totalorder %s30, %s31
    %p42 = scmp.eq.s32.totalorder %s22, 0
    %p43 = por %p41, %p42
    %p44 = scmp.ne.s32.totalorder %s30, %s31
    %p45 = scmp.eq.s32.totalorder %s23, 1
    %p46 = por %p44, %p45
    %p48 = scmp.ne.s32.totalorder %s31, %s47
    %p49 = scmp.eq.s32.totalorder %s23, 0
    %p50 = por %p48, %p49
    %s52 = sadd.s32 %s51, 1
    %p55 = scmp.eq.s32.totalorder %s17, 1
    %p56 = scmp.ne.s32.totalorder %s51, %s53
    %p57 = scmp.eq.s32.totalorder %s17, 0
    %p58 = por %p56, %p57
    %p59 = scmp.ne.s32.totalorder %s51, %s53
    %p60 = scmp.eq.s32.totalorder %s22, 1
    %p61 = por %p59, %p60
    %p62 = scmp.ne.s32.totalorder %s53, %s54
    %p63 = scmp.eq.s32.totalorder %s22, 0
    %p64 = por %p62, %p63
    %p65 = scmp.ne.s32.totalorder %s53, %s54
    %p66 = scmp.eq.s32.totalorder %s23, 1
    %p67 = por %p65, %p66
    %p69 = scmp.ne.s32.totalorder %s54, %s68
    %p70 = scmp.eq.s32.totalorder %s23, 0
    %p71 = por %p69, %p70
    %s73 = sadd.s32 %s72, 1
    %p76 = scmp.eq.s32.totalorder %s17, 1
    %p77 = scmp.ne.s32.totalorder %s72, %s74
    %p78 = scmp.eq.s32.totalorder %s17, 0
    %p79 = por %p77, %p78
    %p80 = scmp.ne.s32.totalorder %s72, %s74
    %p81 = scmp.eq.s32.totalorder %s22, 1
    %p82 = por %p80, %p81
    %p83 = scmp.ne.s32.totalorder %s74, %s75
    %p84 = scmp.eq.s32.totalorder %s22, 0
    %p85 = por %p83, %p84
    %p86 = scmp.ne.s32.totalorder %s74, %s75
    %p87 = scmp.eq.s32.totalorder %s23, 1
    %p88 = por %p86, %p87
    %p90 = scmp.ne.s32.totalorder %s75, %s89
    %p91 = scmp.eq.s32.totalorder %s23, 0
    %p92 = por %p90, %p91
    %s94 = sadd.s32 %s93, 1
    %p97 = scmp.eq.s32.totalorder %s17, 1
    %p98 = scmp.ne.s32.totalorder %s93, %s95
    %p99 = scmp.eq.s32.totalorder %s17, 0
    %p100 = por %p98, %p99
    %p101 = scmp.ne.s32.totalorder %s93, %s95
    %p102 = scmp.eq.s32.totalorder %s22, 1
    %p103 = por %p101, %p102
    %p104 = scmp.ne.s32.totalorder %s95, %s96
    %p105 = scmp.eq.s32.totalorder %s22, 0
    %p106 = por %p104, %p105
    %p107 = scmp.ne.s32.totalorder %s95, %s96
    %p108 = scmp.eq.s32.totalorder %s23, 1
    %p109 = por %p107, %p108
    %p111 = scmp.ne.s32.totalorder %s96, %s110
    %p112 = scmp.eq.s32.totalorder %s23, 0
    %p113 = por %p111, %p112
    %s115 = sadd.s32 %s114, 1
    %p118 = scmp.eq.s32.totalorder %s17, 1
    %p119 = scmp.ne.s32.totalorder %s114, %s116
    %p120 = scmp.eq.s32.totalorder %s17, 0
    %p121 = por %p119, %p120
    %p122 = scmp.ne.s32.totalorder %s114, %s116
    %p123 = scmp.eq.s32.totalorder %s22, 1
    %p124 = por %p122, %p123
    %p125 = scmp.ne.s32.totalorder %s116, %s117
    %p126 = scmp.eq.s32.totalorder %s22, 0
    %p127 = por %p125, %p126
    %p128 = scmp.ne.s32.totalorder %s116, %s117
    %p129 = scmp.eq.s32.totalorder %s23, 1
    %p130 = por %p128, %p129
    %p132 = scmp.ne.s32.totalorder %s117, %s131
    %p133 = scmp.eq.s32.totalorder %s23, 0
    %p134 = por %p132, %p133
    %s136 = sadd.s32 %s135, 1
    %p139 = scmp.eq.s32.totalorder %s17, 1
    %p140 = scmp.ne.s32.totalorder %s135, %s137
    %p141 = scmp.eq.s32.totalorder %s17, 0
    %p142 = por %p140, %p141
    %p143 = scmp.ne.s32.totalorder %s135, %s137
    %p144 = scmp.eq.s32.totalorder %s22, 1
    %p145 = por %p143, %p144
    %p146 = scmp.ne.s32.totalorder %s137, %s138
    %p147 = scmp.eq.s32.totalorder %s22, 0
    %p148 = por %p146, %p147
    %p149 = scmp.ne.s32.totalorder %s137, %s138
    %p150 = scmp.eq.s32.totalorder %s23, 1
    %p151 = por %p149, %p150
    %p153 = scmp.ne.s32.totalorder %s138, %s152
    %p154 = scmp.eq.s32.totalorder %s23, 0
    %p155 = por %p153, %p154
    %s157 = sadd.s32 %s156, 1
    %p160 = scmp.eq.s32.totalorder %s17, 1
    %p161 = scmp.ne.s32.totalorder %s156, %s158
    %p162 = scmp.eq.s32.totalorder %s17, 0
    %p163 = por %p161, %p162
    %p164 = scmp.ne.s32.totalorder %s156, %s158
    %p165 = scmp.eq.s32.totalorder %s22, 1
    %p166 = por %p164, %p165
    %p167 = scmp.ne.s32.totalorder %s158, %s159
    %p168 = scmp.eq.s32.totalorder %s22, 0
    %p169 = por %p167, %p168
    %p170 = scmp.ne.s32.totalorder %s158, %s159
    %p171 = scmp.eq.s32.totalorder %s23, 1
    %p172 = por %p170, %p171
    %p174 = scmp.ne.s32.totalorder %s159, %s173
    %p175 = scmp.eq.s32.totalorder %s23, 0
    %p176 = por %p174, %p175
    %s178 = sadd.s32 %s177, 1
    %p181 = scmp.eq.s32.totalorder %s17, 1
    %p182 = scmp.ne.s32.totalorder %s177, %s179
    %p183 = scmp.eq.s32.totalorder %s17, 0
    %p184 = por %p182, %p183
    %p185 = scmp.ne.s32.totalorder %s177, %s179
    %p186 = scmp.eq.s32.totalorder %s22, 1
    %p187 = por %p185, %p186
    %p188 = scmp.ne.s32.totalorder %s179, %s180
    %p189 = scmp.eq.s32.totalorder %s22, 0
    %p190 = por %p188, %p189
    %p191 = scmp.ne.s32.totalorder %s179, %s180
    %p192 = scmp.eq.s32.totalorder %s23, 1
    %p193 = por %p191, %p192
    %p195 = scmp.ne.s32.totalorder %s180, %s194
    %p196 = scmp.eq.s32.totalorder %s23, 0
    %p197 = por %p195, %p196
    %s199 = sadd.s32 %s198, 1
    %p202 = scmp.eq.s32.totalorder %s17, 1
    %p203 = scmp.ne.s32.totalorder %s198, %s200
    %p204 = scmp.eq.s32.totalorder %s17, 0
    %p205 = por %p203, %p204
    %p206 = scmp.ne.s32.totalorder %s198, %s200
    %p207 = scmp.eq.s32.totalorder %s22, 1
    %p208 = por %p206, %p207
    %p209 = scmp.ne.s32.totalorder %s200, %s201
    %p210 = scmp.eq.s32.totalorder %s22, 0
    %p211 = por %p209, %p210
    %p212 = scmp.ne.s32.totalorder %s200, %s201
    %p213 = scmp.eq.s32.totalorder %s23, 1
    %p214 = por %p212, %p213
    %p216 = scmp.ne.s32.totalorder %s201, %s215
    %p217 = scmp.eq.s32.totalorder %s23, 0
    %p218 = por %p216, %p217
    %s220 = sadd.s32 %s219, 1
    %p223 = scmp.eq.s32.totalorder %s17, 1
    %p224 = scmp.ne.s32.totalorder %s219, %s221
    %p225 = scmp.eq.s32.totalorder %s17, 0
    %p226 = por %p224, %p225
    %p227 = scmp.ne.s32.totalorder %s219, %s221
    %p228 = scmp.eq.s32.totalorder %s22, 1
    %p229 = por %p227, %p228
    %p230 = scmp.ne.s32.totalorder %s221, %s222
    %p231 = scmp.eq.s32.totalorder %s22, 0
    %p232 = por %p230, %p231
    %p233 = scmp.ne.s32.totalorder %s221, %s222
    %p234 = scmp.eq.s32.totalorder %s23, 1
    %p235 = por %p233, %p234
    %p237 = scmp.ne.s32.totalorder %s222, %s236
    %p238 = scmp.eq.s32.totalorder %s23, 0
    %p239 = por %p237, %p238
    %s241 = sadd.s32 %s240, 1
    %p244 = scmp.eq.s32.totalorder %s17, 1
    %p245 = scmp.ne.s32.totalorder %s240, %s242
    %p246 = scmp.eq.s32.totalorder %s17, 0
    %p247 = por %p245, %p246
    %p248 = scmp.ne.s32.totalorder %s240, %s242
    %p249 = scmp.eq.s32.totalorder %s22, 1
    %p250 = por %p248, %p249
    %p251 = scmp.ne.s32.totalorder %s242, %s243
    %p252 = scmp.eq.s32.totalorder %s22, 0
    %p253 = por %p251, %p252
    %p254 = scmp.ne.s32.totalorder %s242, %s243
    %p255 = scmp.eq.s32.totalorder %s23, 1
    %p256 = por %p254, %p255
    %p258 = scmp.ne.s32.totalorder %s243, %s257
    %p259 = scmp.eq.s32.totalorder %s23, 0
    %p260 = por %p258, %p259
    %s261 = ssub.s32 %s17, %s24
    %p262 = scmp.eq.s32.totalorder %s261, 0
    %s264 = sadd.s32 %s263, 1
    %s265 = scalar_select %p262, %s263, %s264
    %p268 = pneg %p262
    %p269 = scmp.eq.s32.totalorder %s17, 1
    %p270 = por %p268, %p269
    %p271 = scmp.ne.s32.totalorder %s263, %s266
    %p272 = scmp.eq.s32.totalorder %s17, 0
    %p273 = por %p271, %p272
    %p274 = scmp.ne.s32.totalorder %s263, %s266
    %p275 = scmp.eq.s32.totalorder %s22, 1
    %p276 = por %p274, %p275
    %p277 = scmp.ne.s32.totalorder %s266, %s267
    %p278 = scmp.eq.s32.totalorder %s22, 0
    %p279 = por %p277, %p278
    %p280 = scmp.ne.s32.totalorder %s266, %s267
    %p281 = scmp.eq.s32.totalorder %s23, 1
    %p282 = por %p280, %p281
    %p284 = scmp.ne.s32.totalorder %s267, %s283
    %p285 = scmp.eq.s32.totalorder %s23, 0
    %p286 = por %p284, %p285
    %p287 = scmp.le.s32.totalorder 1, %s17
    %p288 = scmp.lt.s32.totalorder %s17, 3
    %p289 = pnand %p287, %p288
    %p290 = pneg %p289
    // Predicated region
    $region9: #{het_stgcn_block.2} parent=5 // pred_check
      _
    $region10: #{het_stgcn_block.2} parent=5 // pred_check_branch
      %292 = sbr.rel (%p289) target = $region12
    $region11: #{het_stgcn_block.2} parent=5 // pred_region
      %s293 = ssub.s32 %s17, 1
      // Predicated region
      $region13: #{het_stgcn_block.2} parent=11 // pred_check
        %p294 = pneg %p64
      $region14: #{het_stgcn_block.2} parent=11 // pred_check_branch
        %296 = sbr.rel (%p294) target = $region16
      $region15: #{het_stgcn_block.2} parent=11 // pred_region
        _
      $region16: #{het_stgcn_block.2} parent=11 // pred_fallthru
        _
      // Predicated region
      $region17: #{het_stgcn_block.2} parent=11 // pred_check
        %p297 = pneg %p85
      $region18: #{het_stgcn_block.2} parent=11 // pred_check_branch
        %299 = sbr.rel (%p297) target = $region20
      $region19: #{het_stgcn_block.2} parent=11 // pred_region
        _
      $region20: #{het_stgcn_block.2} parent=11 // pred_fallthru
        _
      // Predicated region
      $region21: #{het_stgcn_block.2} parent=11 // pred_check
        %p300 = pneg %p106
      $region22: #{het_stgcn_block.2} parent=11 // pred_check_branch
        %302 = sbr.rel (%p300) target = $region24
      $region23: #{het_stgcn_block.2} parent=11 // pred_region
        _
      $region24: #{het_stgcn_block.2} parent=11 // pred_fallthru
        _
      // Predicated region
      $region25: #{het_stgcn_block.2} parent=11 // pred_check
        %p303 = pneg %p127
      $region26: #{het_stgcn_block.2} parent=11 // pred_check_branch
        %305 = sbr.rel (%p303) target = $region28
      $region27: #{het_stgcn_block.2} parent=11 // pred_region
        _
      $region28: #{het_stgcn_block.2} parent=11 // pred_fallthru
        _
      // Predicated region
      $region29: #{het_stgcn_block.2} parent=11 // pred_check
        %p306 = pneg %p148
      $region30: #{het_stgcn_block.2} parent=11 // pred_check_branch
        %308 = sbr.rel (%p306) target = $region32
      $region31: #{het_stgcn_block.2} parent=11 // pred_region
        _
      $region32: #{het_stgcn_block.2} parent=11 // pred_fallthru
        _
      // Predicated region
      $region33: #{het_stgcn_block.2} parent=11 // pred_check
        %p309 = pneg %p169
      $region34: #{het_stgcn_block.2} parent=11 // pred_check_branch
        %311 = sbr.rel (%p309) target = $region36
      $region35: #{het_stgcn_block.2} parent=11 // pred_region
        _
      $region36: #{het_stgcn_block.2} parent=11 // pred_fallthru
        _
      // Predicated region
      $region37: #{het_stgcn_block.2} parent=11 // pred_check
        %p312 = pneg %p190
      $region38: #{het_stgcn_block.2} parent=11 // pred_check_branch
        %314 = sbr.rel (%p312) target = $region40
      $region39: #{het_stgcn_block.2} parent=11 // pred_region
        _
      $region40: #{het_stgcn_block.2} parent=11 // pred_fallthru
        _
      // Predicated region
      $region41: #{het_stgcn_block.2} parent=11 // pred_check
        %p315 = pneg %p211
      $region42: #{het_stgcn_block.2} parent=11 // pred_check_branch
        %317 = sbr.rel (%p315) target = $region44
      $region43: #{het_stgcn_block.2} parent=11 // pred_region
        _
      $region44: #{het_stgcn_block.2} parent=11 // pred_fallthru
        _
      // Predicated region
      $region45: #{het_stgcn_block.2} parent=11 // pred_check
        %p318 = pneg %p232
      $region46: #{het_stgcn_block.2} parent=11 // pred_check_branch
        %320 = sbr.rel (%p318) target = $region48
      $region47: #{het_stgcn_block.2} parent=11 // pred_region
        _
      $region48: #{het_stgcn_block.2} parent=11 // pred_fallthru
        _
      // Predicated region
      $region49: #{het_stgcn_block.2} parent=11 // pred_check
        %p321 = pneg %p253
      $region50: #{het_stgcn_block.2} parent=11 // pred_check_branch
        %323 = sbr.rel (%p321) target = $region52
      $region51: #{het_stgcn_block.2} parent=11 // pred_region
        _
      $region52: #{het_stgcn_block.2} parent=11 // pred_fallthru
        _
    $region12: #{het_stgcn_block.2} parent=5 // pred_fallthru
      _
    %p324 = scmp.lt.s32.totalorder %s17, 2
    // Predicated region
    $region53: #{het_stgcn_block.2} parent=5 // pred_check
      %p325 = pneg %p324
    $region54: #{het_stgcn_block.2} parent=5 // pred_check_branch
      %327 = sbr.rel (%p325) target = $region56
    $region55: #{het_stgcn_block.2} parent=5 // pred_region
      // Predicated region
      $region57: #{het_stgcn_block.2} parent=55 // pred_check
        %p328 = pneg %p37
      $region58: #{het_stgcn_block.2} parent=55 // pred_check_branch
        %330 = sbr.rel (%p328) target = $region60
      $region59: #{het_stgcn_block.2} parent=55 // pred_region
        %p331 = scmp.lt.s32.totalorder %s17, 1
        %s332 = scalar_select %p331, %s17, 1
        %s333 = smul.addr %s332, 2
        %s334 = smul.addr %s333, 8
        %s335 = scalar_lea.vmem %s0, %s334
      $region60: #{het_stgcn_block.2} parent=55 // pred_fallthru
        _
    $region56: #{het_stgcn_block.2} parent=5 // pred_fallthru
      _
    %p336 = scmp.le.s32.totalorder 1, %s17
    %p337 = scmp.lt.s32.totalorder %s17, 3
    %p338 = pnand %p336, %p337
    %p339 = pneg %p338
    // Predicated region
    $region61: #{het_stgcn_block.2} parent=5 // pred_check
      _
    $region62: #{het_stgcn_block.2} parent=5 // pred_check_branch
      %341 = sbr.rel (%p338) target = $region64
    $region63: #{het_stgcn_block.2} parent=5 // pred_region
      %s342 = ssub.s32 %s17, 1
      %p343 = scmp.lt.s32.totalorder %s22, 1
      %s344 = scalar_select %p343, %s22, 1
      %s345 = smul.addr %s344, 2
      %s346 = smul.addr %s345, 8
      %s347 = scalar_lea.vmem %s0, %s346
      %p348 = pneg %p43
      %p349 = pneg %p40
      %p350 = pneg %p64
      %p351 = pneg %p61
      %p352 = pneg %p85
      %p353 = pneg %p82
      %p354 = pneg %p106
      %p355 = pneg %p103
      %p356 = pneg %p127
      %p357 = pneg %p124
      %p358 = pneg %p148
      %p359 = pneg %p145
      %p360 = pneg %p169
      %p361 = pneg %p166
      %p362 = pneg %p190
      %p363 = pneg %p187
      %p364 = pneg %p211
      %p365 = pneg %p208
      %p366 = pneg %p232
      %p367 = pneg %p229
      %p368 = pneg %p253
      %p369 = pneg %p250
      %p370 = pneg %p279
      %p371 = pneg %p276
      %p372 = scmp.lt.s32.totalorder %s22, 1
      %s373 = scalar_select %p372, %s22, 1
      %s374 = smul.addr %s373, 2
      %s375 = smul.addr %s374, 8
      %s376 = scalar_lea.vmem %s11, %s375
      %p377 = scmp.lt.s32.totalorder %s22, 1
      %s378 = scalar_select %p377, %s22, 1
      %s379 = smul.addr %s378, 2
      %s380 = smul.addr %s379, 8
      %s381 = scalar_lea.vmem %s0, %s380
      %p382 = scmp.lt.s32.totalorder %s22, 1
      %s383 = scalar_select %p382, %s22, 1
      %s384 = smul.addr %s383, 2
      %s385 = smul.addr %s384, 8
      %s386 = scalar_lea.vmem %s11, %s385
      %v387 = vld [vmem:[%s381] sm:$0xff]
      %v388 = vld [vmem:[%s381 + $0x8] sm:$0xff]
      %v389 = vld [vmem:[%s1] sm:$0xff]
      %v390 = vld [vmem:[%s1 + $0x8] sm:$0xff]
      %v391 = vld [vmem:[%s1 + $0x10] sm:$0xff]
      %v392 = vld [vmem:[%s1 + $0x18] sm:$0xff]
      %v393 = vld [vmem:[%s1 + $0x20] sm:$0xff]
      %v394 = vld [vmem:[%s1 + $0x28] sm:$0xff]
      %v395 = vld [vmem:[%s1 + $0x30] sm:$0xff]
      %v396 = vld [vmem:[%s1 + $0x38] sm:$0xff]
      %v397 = vld [vmem:[%s1 + $0x40] sm:$0xff]
      %v398 = vld [vmem:[%s1 + $0x48] sm:$0xff]
      %v399 = vld [vmem:[%s2] sm:$0x3]
      %v401 = vperm.slane %v399, 0
      %v402 = vperm.slane %v399, 1
      %vm405 = vcmask 326656
      %v407 = vsel %vm405, %v387, 0
      %v410 = vsel %vm405, %v388, 0
      %412 = vmatpush.msra.mxu0 0.0
      %413 = vmatpush.msra.mxu0 0.0
      %414 = vmatpush.msra.mxu0 0.0
      %415 = vmatpush.msra.mxu0 0.0
      %416 = vmatpush.msra.mxu0 0.0
      %417 = vmatpush.msra.mxu0 0.0
      %418 = vmatpush.msra.mxu0 0.0
      %419 = vmatpush.msra.mxu0 0.0
      %420 = vmatpush.msra.mxu0 0.0
      %421 = vmatpush.msra.mxu0 0.0
      %422 = vmatpush.msra.mxu0 0.0
      %423 = vmatpush.msra.mxu0 %v397
      %424 = vmatpush.msra.mxu0 %v395
      %425 = vmatpush.msra.mxu0 %v393
      %426 = vmatpush.msra.mxu0 %v391
      %427 = vmatpush.msra.mxu0 %v389
      %428 = vmatmul.f32.gmra.mxu0 %v407
      %v429 = vpop.f32.mrf.mxu0
      %v430 = vadd.f32 %v401, %v429
      %431 = vmatmul.f32.gmra.mxu0 %v410
      %v432 = vpop.f32.mrf.mxu0
      %v433 = vadd.f32 %v401, %v432
      %434 = vdwg.mxu0
      %435 = vmatpush.msra.mxu0 0.0
      %436 = vmatpush.msra.mxu0 0.0
      %437 = vmatpush.msra.mxu0 0.0
      %438 = vmatpush.msra.mxu0 0.0
      %439 = vmatpush.msra.mxu0 0.0
      %440 = vmatpush.msra.mxu0 0.0
      %441 = vmatpush.msra.mxu0 0.0
      %442 = vmatpush.msra.mxu0 0.0
      %443 = vmatpush.msra.mxu0 0.0
      %444 = vmatpush.msra.mxu0 0.0
      %445 = vmatpush.msra.mxu0 0.0
      %446 = vmatpush.msra.mxu0 %v398
      %447 = vmatpush.msra.mxu0 %v396
      %448 = vmatpush.msra.mxu0 %v394
      %449 = vmatpush.msra.mxu0 %v392
      %450 = vmatpush.msra.mxu0 %v390
      %451 = vmatmul.f32.gmra.mxu0 %v407
      %v452 = vpop.f32.mrf.mxu0
      %v453 = vadd.f32 %v402, %v452
      %454 = vmatmul.f32.gmra.mxu0 %v410
      %v455 = vpop.f32.mrf.mxu0
      %v456 = vadd.f32 %v402, %v455
      %457 = vdwg.mxu0
      %v458 = vadd.f32 %v430, %v453
      %v459 = vadd.f32 %v433, %v456
      %v460 = vxor.u32 %v430, 2147483648
      %v461 = vxor.u32 %v433, 2147483648
      %v462 = vmul.f32 %v460, 1.442695
      %v463 = vpow.pop %v462
      %v464 = vmul.f32 %v461, 1.442695
      %v465 = vpow.pop %v464
      %v466 = vadd.f32 %v463, 1.0
      %v467 = vadd.f32 %v465, 1.0
      %v468 = vrcp.pop %v466
      %v469 = vmul.f32 %v466, %v468
      %v470 = vsub.f32 1.0, %v469
      %v471 = vmul.f32 %v468, %v470
      %v472 = vadd.f32 %v468, %v471
      %vm473 = vweird.f32 %v466
      %vm474 = vweird.f32 %v468
      %vm475 = vmor %vm473, %vm474
      %v476 = vsel %vm475, %v468, %v472
      %v477 = vand.u32 2147483647, %v466
      %vm478 = vcmp.eq.f32.partialorder %v477, 8.507059e+37
      %v479 = vand.u32 %v466, 2147483648
      %v480 = vor.u32 1.1754944e-38, %v479
      %v481 = vsel %vm478, %v480, %v476
      %v482 = vmul.f32 1.0, %v481
      %v483 = vrcp.pop %v467
      %v484 = vmul.f32 %v467, %v483
      %v485 = vsub.f32 1.0, %v484
      %v486 = vmul.f32 %v483, %v485
      %v487 = vadd.f32 %v483, %v486
      %vm488 = vweird.f32 %v467
      %vm489 = vweird.f32 %v483
      %vm490 = vmor %vm488, %vm489
      %v491 = vsel %vm490, %v483, %v487
      %v492 = vand.u32 2147483647, %v467
      %vm493 = vcmp.eq.f32.partialorder %v492, 8.507059e+37
      %v494 = vand.u32 %v467, 2147483648
      %v495 = vor.u32 1.1754944e-38, %v494
      %v496 = vsel %vm493, %v495, %v491
      %v497 = vmul.f32 1.0, %v496
      %500 = vrot.lane.b32.xlu0 %v482, 64
      %v501 = vpop.permute.xlu0 %500
      %502 = vrot.lane.b32.xlu0 %v497, 64
      %v503 = vpop.permute.xlu0 %502
      %v506 = vmul.f32 %v458, %v501
      %v507 = vmul.f32 %v459, %v503
      %v508 = vld [vmem:[%s3] sm:$0xff]
      %v509 = vld [vmem:[%s4] sm:$0xff]
      %v510 = vld [vmem:[%s5] sm:$0xff]
      %v511 = vld [vmem:[%s6] sm:$0xff]
      %v512 = vld [vmem:[%s7] sm:$0xff]
      %v513 = vld [vmem:[%s7 + $0x8] sm:$0xff]
      %v514 = vld [vmem:[%s7 + $0x10] sm:$0xff]
      %v515 = vld [vmem:[%s7 + $0x18] sm:$0xff]
      %v516 = vld [vmem:[%s7 + $0x20] sm:$0xff]
      %v517 = vld [vmem:[%s7 + $0x28] sm:$0xff]
      %v518 = vld [vmem:[%s7 + $0x30] sm:$0xff]
      %v519 = vld [vmem:[%s7 + $0x38] sm:$0xff]
      %v520 = vld [vmem:[%s7 + $0x40] sm:$0xff]
      %v521 = vld [vmem:[%s7 + $0x48] sm:$0xff]
      %v522 = vld [vmem:[%s7 + $0x50] sm:$0xff]
      %v523 = vld [vmem:[%s7 + $0x58] sm:$0xff]
      %v524 = vld [vmem:[%s7 + $0x60] sm:$0xff]
      %v525 = vld [vmem:[%s7 + $0x68] sm:$0xff]
      %v526 = vld [vmem:[%s7 + $0x70] sm:$0xff]
      %v527 = vld [vmem:[%s7 + $0x78] sm:$0xff]
      %vm528 = vcmask 523264
      %v530 = vsel %vm528, %v506, 0
      %v533 = vsel %vm528, %v507, 0
      %535 = vmatpush.msra.mxu0 0.0
      %536 = vmatpush.msra.mxu0 0.0
      %537 = vmatpush.msra.mxu0 0.0
      %538 = vmatpush.msra.mxu0 0.0
      %539 = vmatpush.msra.mxu0 0.0
      %540 = vmatpush.msra.mxu0 0.0
      %541 = vmatpush.msra.mxu0 0.0
      %542 = vmatpush.msra.mxu0 0.0
      %543 = vmatpush.msra.mxu0 %v526
      %544 = vmatpush.msra.mxu0 %v524
      %545 = vmatpush.msra.mxu0 %v522
      %546 = vmatpush.msra.mxu0 %v520
      %547 = vmatpush.msra.mxu0 %v518
      %548 = vmatpush.msra.mxu0 %v516
      %549 = vmatpush.msra.mxu0 %v514
      %550 = vmatpush.msra.mxu0 %v512
      %551 = vmatmul.f32.gmra.mxu0 %v530
      %v552 = vpop.f32.mrf.mxu0
      %v553 = vadd.f32 0.0, %v552
      %554 = vmatmul.f32.gmra.mxu0 %v533
      %v555 = vpop.f32.mrf.mxu0
      %556 = vdwg.mxu0
      %557 = vmatpush.msra.mxu0 0.0
      %558 = vmatpush.msra.mxu0 0.0
      %559 = vmatpush.msra.mxu0 0.0
      %560 = vmatpush.msra.mxu0 0.0
      %561 = vmatpush.msra.mxu0 0.0
      %562 = vmatpush.msra.mxu0 0.0
      %563 = vmatpush.msra.mxu0 0.0
      %564 = vmatpush.msra.mxu0 0.0
      %565 = vmatpush.msra.mxu0 %v527
      %566 = vmatpush.msra.mxu0 %v525
      %567 = vmatpush.msra.mxu0 %v523
      %568 = vmatpush.msra.mxu0 %v521
      %569 = vmatpush.msra.mxu0 %v519
      %570 = vmatpush.msra.mxu0 %v517
      %571 = vmatpush.msra.mxu0 %v515
      %572 = vmatpush.msra.mxu0 %v513
      %573 = vmatmul.f32.gmra.mxu0 %v530
      %v574 = vpop.f32.mrf.mxu0
      %575 = vmatmul.f32.gmra.mxu0 %v533
      %v576 = vpop.f32.mrf.mxu0
      %v577 = vadd.f32 0.0, %v576
      %578 = vdwg.mxu0
      %580 = vrot.lane.b32.xlu0 %v577, 64
      %v581 = vpop.permute.xlu0 %580
      %vm582 = vcmask 64512
      %v584 = vsel %vm582, %v508, 0
      %586 = vmatpush.msra.mxu0 0.0
      %587 = vmatpush.msra.mxu0 0.0
      %588 = vmatpush.msra.mxu0 0.0
      %589 = vmatpush.msra.mxu0 0.0
      %590 = vmatpush.msra.mxu0 0.0
      %591 = vmatpush.msra.mxu0 0.0
      %592 = vmatpush.msra.mxu0 0.0
      %593 = vmatpush.msra.mxu0 0.0
      %594 = vmatpush.msra.mxu0 0.0
      %595 = vmatpush.msra.mxu0 0.0
      %596 = vmatpush.msra.mxu0 0.0
      %597 = vmatpush.msra.mxu0 0.0
      %598 = vmatpush.msra.mxu0 0.0
      %599 = vmatpush.msra.mxu0 0.0
      %600 = vmatpush.msra.mxu0 0.0
      %601 = vmatpush.msra.mxu0 %v553
      %602 = vmatmul.f32.gmra.mxu0 %v584
      %v603 = vpop.f32.mrf.mxu0
      %v604 = vadd.f32 0.0, %v603
      %605 = vdwg.mxu0
      %607 = vrot.lane.b32.xlu0 %v553, 64
      %v608 = vpop.permute.xlu0 %607
      %609 = vrot.lane.b32.xlu0 %v581, 64
      %v610 = vpop.permute.xlu0 %609
      %vm613 = vcmask 130048
      %v615 = vsel %vm613, %v509, 0
      %617 = vmatpush.msra.mxu0 0.0
      %618 = vmatpush.msra.mxu0 0.0
      %619 = vmatpush.msra.mxu0 0.0
      %620 = vmatpush.msra.mxu0 0.0
      %621 = vmatpush.msra.mxu0 0.0
      %622 = vmatpush.msra.mxu0 0.0
      %623 = vmatpush.msra.mxu0 0.0
      %624 = vmatpush.msra.mxu0 0.0
      %625 = vmatpush.msra.mxu0 0.0
      %626 = vmatpush.msra.mxu0 0.0
      %627 = vmatpush.msra.mxu0 0.0
      %628 = vmatpush.msra.mxu0 0.0
      %629 = vmatpush.msra.mxu0 0.0
      %630 = vmatpush.msra.mxu0 0.0
      %631 = vmatpush.msra.mxu0 %v610
      %632 = vmatpush.msra.mxu0 %v608
      %633 = vmatmul.f32.gmra.mxu0 %v615
      %v634 = vpop.f32.mrf.mxu0
      %v635 = vadd.f32 0.0, %v634
      %636 = vdwg.mxu0
      %v637 = vmax.f32 %v604, 0.0
      %v638 = vxor.u32 %v635, 2147483648
      %v639 = vmul.f32 %v638, 1.442695
      %v640 = vpow.pop %v639
      %v641 = vadd.f32 %v640, 1.0
      %v642 = vrcp.pop %v641
      %v643 = vmul.f32 %v641, %v642
      %v644 = vsub.f32 1.0, %v643
      %v645 = vmul.f32 %v642, %v644
      %v646 = vadd.f32 %v642, %v645
      %vm647 = vweird.f32 %v641
      %vm648 = vweird.f32 %v642
      %vm649 = vmor %vm647, %vm648
      %v650 = vsel %vm649, %v642, %v646
      %v651 = vand.u32 2147483647, %v641
      %vm652 = vcmp.eq.f32.partialorder %v651, 8.507059e+37
      %v653 = vand.u32 %v641, 2147483648
      %v654 = vor.u32 1.1754944e-38, %v653
      %v655 = vsel %vm652, %v654, %v650
      %v656 = vmul.f32 1.0, %v655
      %v657 = vadd.f32 %v637, %v656
      %v658 = vmul.f32 %v657, 0.5
      %v659 = vmax.f32 %v658, 0.0
      %v660 = vmul.f32 %v659, 0.9
      %v661 = vmul.f32 %v506, 0.1
      %v662 = vadd.f32 %v660, %v661
      %v663 = vmax.f32 %v662, 0.0
      %v664 = vld [vmem:[%s8] sm:$0xff]
      %v665 = vld [vmem:[%s8 + $0x8] sm:$0xff]
      %v666 = vld [vmem:[%s8 + $0x10] sm:$0xff]
      %v667 = vld [vmem:[%s8 + $0x18] sm:$0xff]
      %v668 = vld [vmem:[%s8 + $0x20] sm:$0xff]
      %v669 = vld [vmem:[%s8 + $0x28] sm:$0xff]
      %v670 = vld [vmem:[%s8 + $0x30] sm:$0xff]
      %v671 = vld [vmem:[%s8 + $0x38] sm:$0xff]
      %v672 = vld [vmem:[%s8 + $0x40] sm:$0xff]
      %v673 = vld [vmem:[%s8 + $0x48] sm:$0xff]
      %v674 = vld [vmem:[%s8 + $0x50] sm:$0xff]
      %v675 = vld [vmem:[%s8 + $0x58] sm:$0xff]
      %v676 = vld [vmem:[%s8 + $0x60] sm:$0xff]
      %v677 = vld [vmem:[%s8 + $0x68] sm:$0xff]
      %v678 = vld [vmem:[%s8 + $0x70] sm:$0xff]
      %v679 = vld [vmem:[%s8 + $0x78] sm:$0xff]
      %v681 = vsel %vm528, %v663, 0
      %683 = vmatpush.msra.mxu0 0.0
      %684 = vmatpush.msra.mxu0 0.0
      %685 = vmatpush.msra.mxu0 0.0
      %686 = vmatpush.msra.mxu0 0.0
      %687 = vmatpush.msra.mxu0 0.0
      %688 = vmatpush.msra.mxu0 0.0
      %689 = vmatpush.msra.mxu0 0.0
      %690 = vmatpush.msra.mxu0 0.0
      %691 = vmatpush.msra.mxu0 %v678
      %692 = vmatpush.msra.mxu0 %v676
      %693 = vmatpush.msra.mxu0 %v674
      %694 = vmatpush.msra.mxu0 %v672
      %695 = vmatpush.msra.mxu0 %v670
      %696 = vmatpush.msra.mxu0 %v668
      %697 = vmatpush.msra.mxu0 %v666
      %698 = vmatpush.msra.mxu0 %v664
      %699 = vmatmul.f32.gmra.mxu0 %v681
      %v700 = vpop.f32.mrf.mxu0
      %701 = vmatmul.f32.gmra.mxu0 %v533
      %v702 = vpop.f32.mrf.mxu0
      %v703 = vadd.f32 0.0, %v702
      %704 = vdwg.mxu0
      %705 = vmatpush.msra.mxu0 0.0
      %706 = vmatpush.msra.mxu0 0.0
      %707 = vmatpush.msra.mxu0 0.0
      %708 = vmatpush.msra.mxu0 0.0
      %709 = vmatpush.msra.mxu0 0.0
      %710 = vmatpush.msra.mxu0 0.0
      %711 = vmatpush.msra.mxu0 0.0
      %712 = vmatpush.msra.mxu0 0.0
      %713 = vmatpush.msra.mxu0 %v679
      %714 = vmatpush.msra.mxu0 %v677
      %715 = vmatpush.msra.mxu0 %v675
      %716 = vmatpush.msra.mxu0 %v673
      %717 = vmatpush.msra.mxu0 %v671
      %718 = vmatpush.msra.mxu0 %v669
      %719 = vmatpush.msra.mxu0 %v667
      %720 = vmatpush.msra.mxu0 %v665
      %721 = vmatmul.f32.gmra.mxu0 %v681
      %v722 = vpop.f32.mrf.mxu0
      %v723 = vadd.f32 0.0, %v722
      %724 = vmatmul.f32.gmra.mxu0 %v533
      %v725 = vpop.f32.mrf.mxu0
      %726 = vdwg.mxu0
      %728 = vrot.lane.b32.xlu0 %v723, 64
      %v729 = vpop.permute.xlu0 %728
      %v731 = vsel %vm582, %v510, 0
      %733 = vmatpush.msra.mxu0 0.0
      %734 = vmatpush.msra.mxu0 0.0
      %735 = vmatpush.msra.mxu0 0.0
      %736 = vmatpush.msra.mxu0 0.0
      %737 = vmatpush.msra.mxu0 0.0
      %738 = vmatpush.msra.mxu0 0.0
      %739 = vmatpush.msra.mxu0 0.0
      %740 = vmatpush.msra.mxu0 0.0
      %741 = vmatpush.msra.mxu0 0.0
      %742 = vmatpush.msra.mxu0 0.0
      %743 = vmatpush.msra.mxu0 0.0
      %744 = vmatpush.msra.mxu0 0.0
      %745 = vmatpush.msra.mxu0 0.0
      %746 = vmatpush.msra.mxu0 0.0
      %747 = vmatpush.msra.mxu0 0.0
      %748 = vmatpush.msra.mxu0 %v703
      %749 = vmatmul.f32.gmra.mxu0 %v731
      %v750 = vpop.f32.mrf.mxu0
      %v751 = vadd.f32 0.0, %v750
      %752 = vdwg.mxu0
      %754 = vrot.lane.b32.xlu0 %v703, 64
      %v755 = vpop.permute.xlu0 %754
      %756 = vrot.lane.b32.xlu0 %v729, 64
      %v757 = vpop.permute.xlu0 %756
      %v761 = vsel %vm613, %v511, 0
      %763 = vmatpush.msra.mxu0 0.0
      %764 = vmatpush.msra.mxu0 0.0
      %765 = vmatpush.msra.mxu0 0.0
      %766 = vmatpush.msra.mxu0 0.0
      %767 = vmatpush.msra.mxu0 0.0
      %768 = vmatpush.msra.mxu0 0.0
      %769 = vmatpush.msra.mxu0 0.0
      %770 = vmatpush.msra.mxu0 0.0
      %771 = vmatpush.msra.mxu0 0.0
      %772 = vmatpush.msra.mxu0 0.0
      %773 = vmatpush.msra.mxu0 0.0
      %774 = vmatpush.msra.mxu0 0.0
      %775 = vmatpush.msra.mxu0 0.0
      %776 = vmatpush.msra.mxu0 0.0
      %777 = vmatpush.msra.mxu0 %v757
      %778 = vmatpush.msra.mxu0 %v755
      %779 = vmatmul.f32.gmra.mxu0 %v761
      %v780 = vpop.f32.mrf.mxu0
      %v781 = vadd.f32 0.0, %v780
      %782 = vdwg.mxu0
      %v783 = vmax.f32 %v751, 0.0
      %v784 = vxor.u32 %v781, 2147483648
      %v785 = vmul.f32 %v784, 1.442695
      %v786 = vpow.pop %v785
      %v787 = vadd.f32 %v786, 1.0
      %v788 = vrcp.pop %v787
      %v789 = vmul.f32 %v787, %v788
      %v790 = vsub.f32 1.0, %v789
      %v791 = vmul.f32 %v788, %v790
      %v792 = vadd.f32 %v788, %v791
      %vm793 = vweird.f32 %v787
      %vm794 = vweird.f32 %v788
      %vm795 = vmor %vm793, %vm794
      %v796 = vsel %vm795, %v788, %v792
      %v797 = vand.u32 2147483647, %v787
      %vm798 = vcmp.eq.f32.partialorder %v797, 8.507059e+37
      %v799 = vand.u32 %v787, 2147483648
      %v800 = vor.u32 1.1754944e-38, %v799
      %v801 = vsel %vm798, %v800, %v796
      %v802 = vmul.f32 1.0, %v801
      %v803 = vadd.f32 %v783, %v802
      %v804 = vmul.f32 %v803, 0.5
      %v805 = vmax.f32 %v804, 0.0
      %v806 = vmul.f32 %v805, 0.9
      %v807 = vmul.f32 %v507, 0.1
      %v808 = vadd.f32 %v806, %v807
      %v809 = vmax.f32 %v808, 0.0
      %s810 = scalar_lea.vmem %s7, 128
      %v811 = vld [vmem:[%s810] sm:$0xff]
      %v812 = vld [vmem:[%s810 + $0x8] sm:$0xff]
      %v813 = vld [vmem:[%s810 + $0x10] sm:$0xff]
      %v814 = vld [vmem:[%s810 + $0x18] sm:$0xff]
      %v815 = vld [vmem:[%s810 + $0x20] sm:$0xff]
      %v816 = vld [vmem:[%s810 + $0x28] sm:$0xff]
      %v817 = vld [vmem:[%s810 + $0x30] sm:$0xff]
      %v818 = vld [vmem:[%s810 + $0x38] sm:$0xff]
      %v819 = vld [vmem:[%s810 + $0x40] sm:$0xff]
      %v820 = vld [vmem:[%s810 + $0x48] sm:$0xff]
      %v821 = vld [vmem:[%s810 + $0x50] sm:$0xff]
      %v822 = vld [vmem:[%s810 + $0x58] sm:$0xff]
      %v823 = vld [vmem:[%s810 + $0x60] sm:$0xff]
      %v824 = vld [vmem:[%s810 + $0x68] sm:$0xff]
      %v825 = vld [vmem:[%s810 + $0x70] sm:$0xff]
      %v826 = vld [vmem:[%s810 + $0x78] sm:$0xff]
      %v828 = vsel %vm528, %v809, 0
      %830 = vmatpush.msra.mxu0 0.0
      %831 = vmatpush.msra.mxu0 0.0
      %832 = vmatpush.msra.mxu0 0.0
      %833 = vmatpush.msra.mxu0 0.0
      %834 = vmatpush.msra.mxu0 0.0
      %835 = vmatpush.msra.mxu0 0.0
      %836 = vmatpush.msra.mxu0 0.0
      %837 = vmatpush.msra.mxu0 0.0
      %838 = vmatpush.msra.mxu0 %v825
      %839 = vmatpush.msra.mxu0 %v823
      %840 = vmatpush.msra.mxu0 %v821
      %841 = vmatpush.msra.mxu0 %v819
      %842 = vmatpush.msra.mxu0 %v817
      %843 = vmatpush.msra.mxu0 %v815
      %844 = vmatpush.msra.mxu0 %v813
      %845 = vmatpush.msra.mxu0 %v811
      %846 = vmatmul.f32.gmra.mxu0 %v681
      %v847 = vpop.f32.mrf.mxu0
      %v848 = vadd.f32 0.0, %v847
      %849 = vmatmul.f32.gmra.mxu0 %v828
      %v850 = vpop.f32.mrf.mxu0
      %851 = vdwg.mxu0
      %852 = vmatpush.msra.mxu0 0.0
      %853 = vmatpush.msra.mxu0 0.0
      %854 = vmatpush.msra.mxu0 0.0
      %855 = vmatpush.msra.mxu0 0.0
      %856 = vmatpush.msra.mxu0 0.0
      %857 = vmatpush.msra.mxu0 0.0
      %858 = vmatpush.msra.mxu0 0.0
      %859 = vmatpush.msra.mxu0 0.0
      %860 = vmatpush.msra.mxu0 %v826
      %861 = vmatpush.msra.mxu0 %v824
      %862 = vmatpush.msra.mxu0 %v822
      %863 = vmatpush.msra.mxu0 %v820
      %864 = vmatpush.msra.mxu0 %v818
      %865 = vmatpush.msra.mxu0 %v816
      %866 = vmatpush.msra.mxu0 %v814
      %867 = vmatpush.msra.mxu0 %v812
      %868 = vmatmul.f32.gmra.mxu0 %v681
      %v869 = vpop.f32.mrf.mxu0
      %870 = vmatmul.f32.gmra.mxu0 %v828
      %v871 = vpop.f32.mrf.mxu0
      %v872 = vadd.f32 0.0, %v871
      %873 = vdwg.mxu0
      %875 = vrot.lane.b32.xlu0 %v872, 64
      %v876 = vpop.permute.xlu0 %875
      %877 = vmatpush.msra.mxu0 0.0
      %878 = vmatpush.msra.mxu0 0.0
      %879 = vmatpush.msra.mxu0 0.0
      %880 = vmatpush.msra.mxu0 0.0
      %881 = vmatpush.msra.mxu0 0.0
      %882 = vmatpush.msra.mxu0 0.0
      %883 = vmatpush.msra.mxu0 0.0
      %884 = vmatpush.msra.mxu0 0.0
      %885 = vmatpush.msra.mxu0 0.0
      %886 = vmatpush.msra.mxu0 0.0
      %887 = vmatpush.msra.mxu0 0.0
      %888 = vmatpush.msra.mxu0 0.0
      %889 = vmatpush.msra.mxu0 0.0
      %890 = vmatpush.msra.mxu0 0.0
      %891 = vmatpush.msra.mxu0 0.0
      %892 = vmatpush.msra.mxu0 %v848
      %893 = vmatmul.f32.gmra.mxu0 %v584
      %v894 = vpop.f32.mrf.mxu0
      %v895 = vadd.f32 0.0, %v894
      %896 = vdwg.mxu0
      %898 = vrot.lane.b32.xlu0 %v848, 64
      %v899 = vpop.permute.xlu0 %898
      %900 = vrot.lane.b32.xlu0 %v876, 64
      %v901 = vpop.permute.xlu0 %900
      %904 = vmatpush.msra.mxu0 0.0
      %905 = vmatpush.msra.mxu0 0.0
      %906 = vmatpush.msra.mxu0 0.0
      %907 = vmatpush.msra.mxu0 0.0
      %908 = vmatpush.msra.mxu0 0.0
      %909 = vmatpush.msra.mxu0 0.0
      %910 = vmatpush.msra.mxu0 0.0
      %911 = vmatpush.msra.mxu0 0.0
      %912 = vmatpush.msra.mxu0 0.0
      %913 = vmatpush.msra.mxu0 0.0
      %914 = vmatpush.msra.mxu0 0.0
      %915 = vmatpush.msra.mxu0 0.0
      %916 = vmatpush.msra.mxu0 0.0
      %917 = vmatpush.msra.mxu0 0.0
      %918 = vmatpush.msra.mxu0 %v901
      %919 = vmatpush.msra.mxu0 %v899
      %920 = vmatmul.f32.gmra.mxu0 %v615
      %v921 = vpop.f32.mrf.mxu0
      %v922 = vadd.f32 0.0, %v921
      %923 = vdwg.mxu0
      %v924 = vmax.f32 %v895, 0.0
      %v925 = vxor.u32 %v922, 2147483648
      %v926 = vmul.f32 %v925, 1.442695
      %v927 = vpow.pop %v926
      %v928 = vadd.f32 %v927, 1.0
      %v929 = vrcp.pop %v928
      %v930 = vmul.f32 %v928, %v929
      %v931 = vsub.f32 1.0, %v930
      %v932 = vmul.f32 %v929, %v931
      %v933 = vadd.f32 %v929, %v932
      %vm934 = vweird.f32 %v928
      %vm935 = vweird.f32 %v929
      %vm936 = vmor %vm934, %vm935
      %v937 = vsel %vm936, %v929, %v933
      %v938 = vand.u32 2147483647, %v928
      %vm939 = vcmp.eq.f32.partialorder %v938, 8.507059e+37
      %v940 = vand.u32 %v928, 2147483648
      %v941 = vor.u32 1.1754944e-38, %v940
      %v942 = vsel %vm939, %v941, %v937
      %v943 = vmul.f32 1.0, %v942
      %v944 = vadd.f32 %v924, %v943
      %v945 = vmul.f32 %v944, 0.5
      %v946 = vmax.f32 %v945, 0.0
      %v947 = vmul.f32 %v946, 0.9
      %v948 = vadd.f32 %v947, %v661
      %v949 = vmax.f32 %v948, 0.0
      %s950 = scalar_lea.vmem %s8, 128
      %v951 = vld [vmem:[%s950] sm:$0xff]
      %v952 = vld [vmem:[%s950 + $0x8] sm:$0xff]
      %v953 = vld [vmem:[%s950 + $0x10] sm:$0xff]
      %v954 = vld [vmem:[%s950 + $0x18] sm:$0xff]
      %v955 = vld [vmem:[%s950 + $0x20] sm:$0xff]
      %v956 = vld [vmem:[%s950 + $0x28] sm:$0xff]
      %v957 = vld [vmem:[%s950 + $0x30] sm:$0xff]
      %v958 = vld [vmem:[%s950 + $0x38] sm:$0xff]
      %v959 = vld [vmem:[%s950 + $0x40] sm:$0xff]
      %v960 = vld [vmem:[%s950 + $0x48] sm:$0xff]
      %v961 = vld [vmem:[%s950 + $0x50] sm:$0xff]
      %v962 = vld [vmem:[%s950 + $0x58] sm:$0xff]
      %v963 = vld [vmem:[%s950 + $0x60] sm:$0xff]
      %v964 = vld [vmem:[%s950 + $0x68] sm:$0xff]
      %v965 = vld [vmem:[%s950 + $0x70] sm:$0xff]
      %v966 = vld [vmem:[%s950 + $0x78] sm:$0xff]
      %v968 = vsel %vm528, %v949, 0
      %970 = vmatpush.msra.mxu0 0.0
      %971 = vmatpush.msra.mxu0 0.0
      %972 = vmatpush.msra.mxu0 0.0
      %973 = vmatpush.msra.mxu0 0.0
      %974 = vmatpush.msra.mxu0 0.0
      %975 = vmatpush.msra.mxu0 0.0
      %976 = vmatpush.msra.mxu0 0.0
      %977 = vmatpush.msra.mxu0 0.0
      %978 = vmatpush.msra.mxu0 %v965
      %979 = vmatpush.msra.mxu0 %v963
      %980 = vmatpush.msra.mxu0 %v961
      %981 = vmatpush.msra.mxu0 %v959
      %982 = vmatpush.msra.mxu0 %v957
      %983 = vmatpush.msra.mxu0 %v955
      %984 = vmatpush.msra.mxu0 %v953
      %985 = vmatpush.msra.mxu0 %v951
      %986 = vmatmul.f32.gmra.mxu0 %v968
      %v987 = vpop.f32.mrf.mxu0
      %988 = vmatmul.f32.gmra.mxu0 %v828
      %v989 = vpop.f32.mrf.mxu0
      %v990 = vadd.f32 0.0, %v989
      %991 = vdwg.mxu0
      %992 = vmatpush.msra.mxu0 0.0
      %993 = vmatpush.msra.mxu0 0.0
      %994 = vmatpush.msra.mxu0 0.0
      %995 = vmatpush.msra.mxu0 0.0
      %996 = vmatpush.msra.mxu0 0.0
      %997 = vmatpush.msra.mxu0 0.0
      %998 = vmatpush.msra.mxu0 0.0
      %999 = vmatpush.msra.mxu0 0.0
      %1000 = vmatpush.msra.mxu0 %v966
      %1001 = vmatpush.msra.mxu0 %v964
      %1002 = vmatpush.msra.mxu0 %v962
      %1003 = vmatpush.msra.mxu0 %v960
      %1004 = vmatpush.msra.mxu0 %v958
      %1005 = vmatpush.msra.mxu0 %v956
      %1006 = vmatpush.msra.mxu0 %v954
      %1007 = vmatpush.msra.mxu0 %v952
      %1008 = vmatmul.f32.gmra.mxu0 %v968
      %v1009 = vpop.f32.mrf.mxu0
      %v1010 = vadd.f32 0.0, %v1009
      %1011 = vmatmul.f32.gmra.mxu0 %v828
      %v1012 = vpop.f32.mrf.mxu0
      %1013 = vdwg.mxu0
      %1015 = vrot.lane.b32.xlu0 %v1010, 64
      %v1016 = vpop.permute.xlu0 %1015
      %1017 = vmatpush.msra.mxu0 0.0
      %1018 = vmatpush.msra.mxu0 0.0
      %1019 = vmatpush.msra.mxu0 0.0
      %1020 = vmatpush.msra.mxu0 0.0
      %1021 = vmatpush.msra.mxu0 0.0
      %1022 = vmatpush.msra.mxu0 0.0
      %1023 = vmatpush.msra.mxu0 0.0
      %1024 = vmatpush.msra.mxu0 0.0
      %1025 = vmatpush.msra.mxu0 0.0
      %1026 = vmatpush.msra.mxu0 0.0
      %1027 = vmatpush.msra.mxu0 0.0
      %1028 = vmatpush.msra.mxu0 0.0
      %1029 = vmatpush.msra.mxu0 0.0
      %1030 = vmatpush.msra.mxu0 0.0
      %1031 = vmatpush.msra.mxu0 0.0
      %1032 = vmatpush.msra.mxu0 %v990
      %1033 = vmatmul.f32.gmra.mxu0 %v731
      %v1034 = vpop.f32.mrf.mxu0
      %v1035 = vadd.f32 0.0, %v1034
      %1036 = vdwg.mxu0
      %1038 = vrot.lane.b32.xlu0 %v990, 64
      %v1039 = vpop.permute.xlu0 %1038
      %1040 = vrot.lane.b32.xlu0 %v1016, 64
      %v1041 = vpop.permute.xlu0 %1040
      %1044 = vmatpush.msra.mxu0 0.0
      %1045 = vmatpush.msra.mxu0 0.0
      %1046 = vmatpush.msra.mxu0 0.0
      %1047 = vmatpush.msra.mxu0 0.0
      %1048 = vmatpush.msra.mxu0 0.0
      %1049 = vmatpush.msra.mxu0 0.0
      %1050 = vmatpush.msra.mxu0 0.0
      %1051 = vmatpush.msra.mxu0 0.0
      %1052 = vmatpush.msra.mxu0 0.0
      %1053 = vmatpush.msra.mxu0 0.0
      %1054 = vmatpush.msra.mxu0 0.0
      %1055 = vmatpush.msra.mxu0 0.0
      %1056 = vmatpush.msra.mxu0 0.0
      %1057 = vmatpush.msra.mxu0 0.0
      %1058 = vmatpush.msra.mxu0 %v1041
      %1059 = vmatpush.msra.mxu0 %v1039
      %1060 = vmatmul.f32.gmra.mxu0 %v761
      %v1061 = vpop.f32.mrf.mxu0
      %v1062 = vadd.f32 0.0, %v1061
      %1063 = vdwg.mxu0
      %v1064 = vmax.f32 %v1035, 0.0
      %v1065 = vxor.u32 %v1062, 2147483648
      %v1066 = vmul.f32 %v1065, 1.442695
      %v1067 = vpow.pop %v1066
      %v1068 = vadd.f32 %v1067, 1.0
      %v1069 = vrcp.pop %v1068
      %v1070 = vmul.f32 %v1068, %v1069
      %v1071 = vsub.f32 1.0, %v1070
      %v1072 = vmul.f32 %v1069, %v1071
      %v1073 = vadd.f32 %v1069, %v1072
      %vm1074 = vweird.f32 %v1068
      %vm1075 = vweird.f32 %v1069
      %vm1076 = vmor %vm1074, %vm1075
      %v1077 = vsel %vm1076, %v1069, %v1073
      %v1078 = vand.u32 2147483647, %v1068
      %vm1079 = vcmp.eq.f32.partialorder %v1078, 8.507059e+37
      %v1080 = vand.u32 %v1068, 2147483648
      %v1081 = vor.u32 1.1754944e-38, %v1080
      %v1082 = vsel %vm1079, %v1081, %v1077
      %v1083 = vmul.f32 1.0, %v1082
      %v1084 = vadd.f32 %v1064, %v1083
      %v1085 = vmul.f32 %v1084, 0.5
      %v1086 = vmax.f32 %v1085, 0.0
      %v1087 = vmul.f32 %v1086, 0.9
      %v1088 = vadd.f32 %v1087, %v807
      %v1089 = vmax.f32 %v1088, 0.0
      %s1090 = scalar_lea.vmem %s7, 256
      %v1091 = vld [vmem:[%s1090] sm:$0xff]
      %v1092 = vld [vmem:[%s1090 + $0x8] sm:$0xff]
      %v1093 = vld [vmem:[%s1090 + $0x10] sm:$0xff]
      %v1094 = vld [vmem:[%s1090 + $0x18] sm:$0xff]
      %v1095 = vld [vmem:[%s1090 + $0x20] sm:$0xff]
      %v1096 = vld [vmem:[%s1090 + $0x28] sm:$0xff]
      %v1097 = vld [vmem:[%s1090 + $0x30] sm:$0xff]
      %v1098 = vld [vmem:[%s1090 + $0x38] sm:$0xff]
      %v1099 = vld [vmem:[%s1090 + $0x40] sm:$0xff]
      %v1100 = vld [vmem:[%s1090 + $0x48] sm:$0xff]
      %v1101 = vld [vmem:[%s1090 + $0x50] sm:$0xff]
      %v1102 = vld [vmem:[%s1090 + $0x58] sm:$0xff]
      %v1103 = vld [vmem:[%s1090 + $0x60] sm:$0xff]
      %v1104 = vld [vmem:[%s1090 + $0x68] sm:$0xff]
      %v1105 = vld [vmem:[%s1090 + $0x70] sm:$0xff]
      %v1106 = vld [vmem:[%s1090 + $0x78] sm:$0xff]
      %v1108 = vsel %vm528, %v1089, 0
      %1110 = vmatpush.msra.mxu0 0.0
      %1111 = vmatpush.msra.mxu0 0.0
      %1112 = vmatpush.msra.mxu0 0.0
      %1113 = vmatpush.msra.mxu0 0.0
      %1114 = vmatpush.msra.mxu0 0.0
      %1115 = vmatpush.msra.mxu0 0.0
      %1116 = vmatpush.msra.mxu0 0.0
      %1117 = vmatpush.msra.mxu0 0.0
      %1118 = vmatpush.msra.mxu0 %v1105
      %1119 = vmatpush.msra.mxu0 %v1103
      %1120 = vmatpush.msra.mxu0 %v1101
      %1121 = vmatpush.msra.mxu0 %v1099
      %1122 = vmatpush.msra.mxu0 %v1097
      %1123 = vmatpush.msra.mxu0 %v1095
      %1124 = vmatpush.msra.mxu0 %v1093
      %1125 = vmatpush.msra.mxu0 %v1091
      %1126 = vmatmul.f32.gmra.mxu0 %v968
      %v1127 = vpop.f32.mrf.mxu0
      %v1128 = vadd.f32 0.0, %v1127
      %1129 = vmatmul.f32.gmra.mxu0 %v1108
      %v1130 = vpop.f32.mrf.mxu0
      %1131 = vdwg.mxu0
      %1132 = vmatpush.msra.mxu0 0.0
      %1133 = vmatpush.msra.mxu0 0.0
      %1134 = vmatpush.msra.mxu0 0.0
      %1135 = vmatpush.msra.mxu0 0.0
      %1136 = vmatpush.msra.mxu0 0.0
      %1137 = vmatpush.msra.mxu0 0.0
      %1138 = vmatpush.msra.mxu0 0.0
      %1139 = vmatpush.msra.mxu0 0.0
      %1140 = vmatpush.msra.mxu0 %v1106
      %1141 = vmatpush.msra.mxu0 %v1104
      %1142 = vmatpush.msra.mxu0 %v1102
      %1143 = vmatpush.msra.mxu0 %v1100
      %1144 = vmatpush.msra.mxu0 %v1098
      %1145 = vmatpush.msra.mxu0 %v1096
      %1146 = vmatpush.msra.mxu0 %v1094
      %1147 = vmatpush.msra.mxu0 %v1092
      %1148 = vmatmul.f32.gmra.mxu0 %v968
      %v1149 = vpop.f32.mrf.mxu0
      %1150 = vmatmul.f32.gmra.mxu0 %v1108
      %v1151 = vpop.f32.mrf.mxu0
      %v1152 = vadd.f32 0.0, %v1151
      %1153 = vdwg.mxu0
      %1155 = vrot.lane.b32.xlu0 %v1152, 64
      %v1156 = vpop.permute.xlu0 %1155
      %1157 = vmatpush.msra.mxu0 0.0
      %1158 = vmatpush.msra.mxu0 0.0
      %1159 = vmatpush.msra.mxu0 0.0
      %1160 = vmatpush.msra.mxu0 0.0
      %1161 = vmatpush.msra.mxu0 0.0
      %1162 = vmatpush.msra.mxu0 0.0
      %1163 = vmatpush.msra.mxu0 0.0
      %1164 = vmatpush.msra.mxu0 0.0
      %1165 = vmatpush.msra.mxu0 0.0
      %1166 = vmatpush.msra.mxu0 0.0
      %1167 = vmatpush.msra.mxu0 0.0
      %1168 = vmatpush.msra.mxu0 0.0
      %1169 = vmatpush.msra.mxu0 0.0
      %1170 = vmatpush.msra.mxu0 0.0
      %1171 = vmatpush.msra.mxu0 0.0
      %1172 = vmatpush.msra.mxu0 %v1128
      %1173 = vmatmul.f32.gmra.mxu0 %v584
      %v1174 = vpop.f32.mrf.mxu0
      %v1175 = vadd.f32 0.0, %v1174
      %1176 = vdwg.mxu0
      %1178 = vrot.lane.b32.xlu0 %v1128, 64
      %v1179 = vpop.permute.xlu0 %1178
      %1180 = vrot.lane.b32.xlu0 %v1156, 64
      %v1181 = vpop.permute.xlu0 %1180
      %1184 = vmatpush.msra.mxu0 0.0
      %1185 = vmatpush.msra.mxu0 0.0
      %1186 = vmatpush.msra.mxu0 0.0
      %1187 = vmatpush.msra.mxu0 0.0
      %1188 = vmatpush.msra.mxu0 0.0
      %1189 = vmatpush.msra.mxu0 0.0
      %1190 = vmatpush.msra.mxu0 0.0
      %1191 = vmatpush.msra.mxu0 0.0
      %1192 = vmatpush.msra.mxu0 0.0
      %1193 = vmatpush.msra.mxu0 0.0
      %1194 = vmatpush.msra.mxu0 0.0
      %1195 = vmatpush.msra.mxu0 0.0
      %1196 = vmatpush.msra.mxu0 0.0
      %1197 = vmatpush.msra.mxu0 0.0
      %1198 = vmatpush.msra.mxu0 %v1181
      %1199 = vmatpush.msra.mxu0 %v1179
      %1200 = vmatmul.f32.gmra.mxu0 %v615
      %v1201 = vpop.f32.mrf.mxu0
      %v1202 = vadd.f32 0.0, %v1201
      %1203 = vdwg.mxu0
      %v1204 = vmax.f32 %v1175, 0.0
      %v1205 = vxor.u32 %v1202, 2147483648
      %v1206 = vmul.f32 %v1205, 1.442695
      %v1207 = vpow.pop %v1206
      %v1208 = vadd.f32 %v1207, 1.0
      %v1209 = vrcp.pop %v1208
      %v1210 = vmul.f32 %v1208, %v1209
      %v1211 = vsub.f32 1.0, %v1210
      %v1212 = vmul.f32 %v1209, %v1211
      %v1213 = vadd.f32 %v1209, %v1212
      %vm1214 = vweird.f32 %v1208
      %vm1215 = vweird.f32 %v1209
      %vm1216 = vmor %vm1214, %vm1215
      %v1217 = vsel %vm1216, %v1209, %v1213
      %v1218 = vand.u32 2147483647, %v1208
      %vm1219 = vcmp.eq.f32.partialorder %v1218, 8.507059e+37
      %v1220 = vand.u32 %v1208, 2147483648
      %v1221 = vor.u32 1.1754944e-38, %v1220
      %v1222 = vsel %vm1219, %v1221, %v1217
      %v1223 = vmul.f32 1.0, %v1222
      %v1224 = vadd.f32 %v1204, %v1223
      %v1225 = vmul.f32 %v1224, 0.5
      %v1226 = vmax.f32 %v1225, 0.0
      %v1227 = vmul.f32 %v1226, 0.9
      %v1228 = vadd.f32 %v1227, %v661
      %v1229 = vmax.f32 %v1228, 0.0
      %s1230 = scalar_lea.vmem %s8, 256
      %v1231 = vld [vmem:[%s1230] sm:$0xff]
      %v1232 = vld [vmem:[%s1230 + $0x8] sm:$0xff]
      %v1233 = vld [vmem:[%s1230 + $0x10] sm:$0xff]
      %v1234 = vld [vmem:[%s1230 + $0x18] sm:$0xff]
      %v1235 = vld [vmem:[%s1230 + $0x20] sm:$0xff]
      %v1236 = vld [vmem:[%s1230 + $0x28] sm:$0xff]
      %v1237 = vld [vmem:[%s1230 + $0x30] sm:$0xff]
      %v1238 = vld [vmem:[%s1230 + $0x38] sm:$0xff]
      %v1239 = vld [vmem:[%s1230 + $0x40] sm:$0xff]
      %v1240 = vld [vmem:[%s1230 + $0x48] sm:$0xff]
      %v1241 = vld [vmem:[%s1230 + $0x50] sm:$0xff]
      %v1242 = vld [vmem:[%s1230 + $0x58] sm:$0xff]
      %v1243 = vld [vmem:[%s1230 + $0x60] sm:$0xff]
      %v1244 = vld [vmem:[%s1230 + $0x68] sm:$0xff]
      %v1245 = vld [vmem:[%s1230 + $0x70] sm:$0xff]
      %v1246 = vld [vmem:[%s1230 + $0x78] sm:$0xff]
      %v1248 = vsel %vm528, %v1229, 0
      %1250 = vmatpush.msra.mxu0 0.0
      %1251 = vmatpush.msra.mxu0 0.0
      %1252 = vmatpush.msra.mxu0 0.0
      %1253 = vmatpush.msra.mxu0 0.0
      %1254 = vmatpush.msra.mxu0 0.0
      %1255 = vmatpush.msra.mxu0 0.0
      %1256 = vmatpush.msra.mxu0 0.0
      %1257 = vmatpush.msra.mxu0 0.0
      %1258 = vmatpush.msra.mxu0 %v1245
      %1259 = vmatpush.msra.mxu0 %v1243
      %1260 = vmatpush.msra.mxu0 %v1241
      %1261 = vmatpush.msra.mxu0 %v1239
      %1262 = vmatpush.msra.mxu0 %v1237
      %1263 = vmatpush.msra.mxu0 %v1235
      %1264 = vmatpush.msra.mxu0 %v1233
      %1265 = vmatpush.msra.mxu0 %v1231
      %1266 = vmatmul.f32.gmra.mxu0 %v1248
      %v1267 = vpop.f32.mrf.mxu0
      %1268 = vmatmul.f32.gmra.mxu0 %v1108
      %v1269 = vpop.f32.mrf.mxu0
      %v1270 = vadd.f32 0.0, %v1269
      %1271 = vdwg.mxu0
      %1272 = vmatpush.msra.mxu0 0.0
      %1273 = vmatpush.msra.mxu0 0.0
      %1274 = vmatpush.msra.mxu0 0.0
      %1275 = vmatpush.msra.mxu0 0.0
      %1276 = vmatpush.msra.mxu0 0.0
      %1277 = vmatpush.msra.mxu0 0.0
      %1278 = vmatpush.msra.mxu0 0.0
      %1279 = vmatpush.msra.mxu0 0.0
      %1280 = vmatpush.msra.mxu0 %v1246
      %1281 = vmatpush.msra.mxu0 %v1244
      %1282 = vmatpush.msra.mxu0 %v1242
      %1283 = vmatpush.msra.mxu0 %v1240
      %1284 = vmatpush.msra.mxu0 %v1238
      %1285 = vmatpush.msra.mxu0 %v1236
      %1286 = vmatpush.msra.mxu0 %v1234
      %1287 = vmatpush.msra.mxu0 %v1232
      %1288 = vmatmul.f32.gmra.mxu0 %v1248
      %v1289 = vpop.f32.mrf.mxu0
      %v1290 = vadd.f32 0.0, %v1289
      %1291 = vmatmul.f32.gmra.mxu0 %v1108
      %v1292 = vpop.f32.mrf.mxu0
      %1293 = vdwg.mxu0
      %1295 = vrot.lane.b32.xlu0 %v1290, 64
      %v1296 = vpop.permute.xlu0 %1295
      %1297 = vmatpush.msra.mxu0 0.0
      %1298 = vmatpush.msra.mxu0 0.0
      %1299 = vmatpush.msra.mxu0 0.0
      %1300 = vmatpush.msra.mxu0 0.0
      %1301 = vmatpush.msra.mxu0 0.0
      %1302 = vmatpush.msra.mxu0 0.0
      %1303 = vmatpush.msra.mxu0 0.0
      %1304 = vmatpush.msra.mxu0 0.0
      %1305 = vmatpush.msra.mxu0 0.0
      %1306 = vmatpush.msra.mxu0 0.0
      %1307 = vmatpush.msra.mxu0 0.0
      %1308 = vmatpush.msra.mxu0 0.0
      %1309 = vmatpush.msra.mxu0 0.0
      %1310 = vmatpush.msra.mxu0 0.0
      %1311 = vmatpush.msra.mxu0 0.0
      %1312 = vmatpush.msra.mxu0 %v1270
      %1313 = vmatmul.f32.gmra.mxu0 %v731
      %v1314 = vpop.f32.mrf.mxu0
      %v1315 = vadd.f32 0.0, %v1314
      %1316 = vdwg.mxu0
      %1318 = vrot.lane.b32.xlu0 %v1270, 64
      %v1319 = vpop.permute.xlu0 %1318
      %1320 = vrot.lane.b32.xlu0 %v1296, 64
      %v1321 = vpop.permute.xlu0 %1320
      %1324 = vmatpush.msra.mxu0 0.0
      %1325 = vmatpush.msra.mxu0 0.0
      %1326 = vmatpush.msra.mxu0 0.0
      %1327 = vmatpush.msra.mxu0 0.0
      %1328 = vmatpush.msra.mxu0 0.0
      %1329 = vmatpush.msra.mxu0 0.0
      %1330 = vmatpush.msra.mxu0 0.0
      %1331 = vmatpush.msra.mxu0 0.0
      %1332 = vmatpush.msra.mxu0 0.0
      %1333 = vmatpush.msra.mxu0 0.0
      %1334 = vmatpush.msra.mxu0 0.0
      %1335 = vmatpush.msra.mxu0 0.0
      %1336 = vmatpush.msra.mxu0 0.0
      %1337 = vmatpush.msra.mxu0 0.0
      %1338 = vmatpush.msra.mxu0 %v1321
      %1339 = vmatpush.msra.mxu0 %v1319
      %1340 = vmatmul.f32.gmra.mxu0 %v761
      %v1341 = vpop.f32.mrf.mxu0
      %v1342 = vadd.f32 0.0, %v1341
      %1343 = vdwg.mxu0
      %v1344 = vmax.f32 %v1315, 0.0
      %v1345 = vxor.u32 %v1342, 2147483648
      %v1346 = vmul.f32 %v1345, 1.442695
      %v1347 = vpow.pop %v1346
      %v1348 = vadd.f32 %v1347, 1.0
      %v1349 = vrcp.pop %v1348
      %v1350 = vmul.f32 %v1348, %v1349
      %v1351 = vsub.f32 1.0, %v1350
      %v1352 = vmul.f32 %v1349, %v1351
      %v1353 = vadd.f32 %v1349, %v1352
      %vm1354 = vweird.f32 %v1348
      %vm1355 = vweird.f32 %v1349
      %vm1356 = vmor %vm1354, %vm1355
      %v1357 = vsel %vm1356, %v1349, %v1353
      %v1358 = vand.u32 2147483647, %v1348
      %vm1359 = vcmp.eq.f32.partialorder %v1358, 8.507059e+37
      %v1360 = vand.u32 %v1348, 2147483648
      %v1361 = vor.u32 1.1754944e-38, %v1360
      %v1362 = vsel %vm1359, %v1361, %v1357
      %v1363 = vmul.f32 1.0, %v1362
      %v1364 = vadd.f32 %v1344, %v1363
      %v1365 = vmul.f32 %v1364, 0.5
      %v1366 = vmax.f32 %v1365, 0.0
      %v1367 = vmul.f32 %v1366, 0.9
      %v1368 = vadd.f32 %v1367, %v807
      %v1369 = vmax.f32 %v1368, 0.0
      %s1370 = scalar_lea.vmem %s7, 384
      %v1371 = vld [vmem:[%s1370] sm:$0xff]
      %v1372 = vld [vmem:[%s1370 + $0x8] sm:$0xff]
      %v1373 = vld [vmem:[%s1370 + $0x10] sm:$0xff]
      %v1374 = vld [vmem:[%s1370 + $0x18] sm:$0xff]
      %v1375 = vld [vmem:[%s1370 + $0x20] sm:$0xff]
      %v1376 = vld [vmem:[%s1370 + $0x28] sm:$0xff]
      %v1377 = vld [vmem:[%s1370 + $0x30] sm:$0xff]
      %v1378 = vld [vmem:[%s1370 + $0x38] sm:$0xff]
      %v1379 = vld [vmem:[%s1370 + $0x40] sm:$0xff]
      %v1380 = vld [vmem:[%s1370 + $0x48] sm:$0xff]
      %v1381 = vld [vmem:[%s1370 + $0x50] sm:$0xff]
      %v1382 = vld [vmem:[%s1370 + $0x58] sm:$0xff]
      %v1383 = vld [vmem:[%s1370 + $0x60] sm:$0xff]
      %v1384 = vld [vmem:[%s1370 + $0x68] sm:$0xff]
      %v1385 = vld [vmem:[%s1370 + $0x70] sm:$0xff]
      %v1386 = vld [vmem:[%s1370 + $0x78] sm:$0xff]
      %v1388 = vsel %vm528, %v1369, 0
      %1390 = vmatpush.msra.mxu0 0.0
      %1391 = vmatpush.msra.mxu0 0.0
      %1392 = vmatpush.msra.mxu0 0.0
      %1393 = vmatpush.msra.mxu0 0.0
      %1394 = vmatpush.msra.mxu0 0.0
      %1395 = vmatpush.msra.mxu0 0.0
      %1396 = vmatpush.msra.mxu0 0.0
      %1397 = vmatpush.msra.mxu0 0.0
      %1398 = vmatpush.msra.mxu0 %v1385
      %1399 = vmatpush.msra.mxu0 %v1383
      %1400 = vmatpush.msra.mxu0 %v1381
      %1401 = vmatpush.msra.mxu0 %v1379
      %1402 = vmatpush.msra.mxu0 %v1377
      %1403 = vmatpush.msra.mxu0 %v1375
      %1404 = vmatpush.msra.mxu0 %v1373
      %1405 = vmatpush.msra.mxu0 %v1371
      %1406 = vmatmul.f32.gmra.mxu0 %v1248
      %v1407 = vpop.f32.mrf.mxu0
      %v1408 = vadd.f32 0.0, %v1407
      %1409 = vmatmul.f32.gmra.mxu0 %v1388
      %v1410 = vpop.f32.mrf.mxu0
      %1411 = vdwg.mxu0
      %1412 = vmatpush.msra.mxu0 0.0
      %1413 = vmatpush.msra.mxu0 0.0
      %1414 = vmatpush.msra.mxu0 0.0
      %1415 = vmatpush.msra.mxu0 0.0
      %1416 = vmatpush.msra.mxu0 0.0
      %1417 = vmatpush.msra.mxu0 0.0
      %1418 = vmatpush.msra.mxu0 0.0
      %1419 = vmatpush.msra.mxu0 0.0
      %1420 = vmatpush.msra.mxu0 %v1386
      %1421 = vmatpush.msra.mxu0 %v1384
      %1422 = vmatpush.msra.mxu0 %v1382
      %1423 = vmatpush.msra.mxu0 %v1380
      %1424 = vmatpush.msra.mxu0 %v1378
      %1425 = vmatpush.msra.mxu0 %v1376
      %1426 = vmatpush.msra.mxu0 %v1374
      %1427 = vmatpush.msra.mxu0 %v1372
      %1428 = vmatmul.f32.gmra.mxu0 %v1248
      %v1429 = vpop.f32.mrf.mxu0
      %1430 = vmatmul.f32.gmra.mxu0 %v1388
      %v1431 = vpop.f32.mrf.mxu0
      %v1432 = vadd.f32 0.0, %v1431
      %1433 = vdwg.mxu0
      %1435 = vrot.lane.b32.xlu0 %v1432, 64
      %v1436 = vpop.permute.xlu0 %1435
      %1437 = vmatpush.msra.mxu0 0.0
      %1438 = vmatpush.msra.mxu0 0.0
      %1439 = vmatpush.msra.mxu0 0.0
      %1440 = vmatpush.msra.mxu0 0.0
      %1441 = vmatpush.msra.mxu0 0.0
      %1442 = vmatpush.msra.mxu0 0.0
      %1443 = vmatpush.msra.mxu0 0.0
      %1444 = vmatpush.msra.mxu0 0.0
      %1445 = vmatpush.msra.mxu0 0.0
      %1446 = vmatpush.msra.mxu0 0.0
      %1447 = vmatpush.msra.mxu0 0.0
      %1448 = vmatpush.msra.mxu0 0.0
      %1449 = vmatpush.msra.mxu0 0.0
      %1450 = vmatpush.msra.mxu0 0.0
      %1451 = vmatpush.msra.mxu0 0.0
      %1452 = vmatpush.msra.mxu0 %v1408
      %1453 = vmatmul.f32.gmra.mxu0 %v584
      %v1454 = vpop.f32.mrf.mxu0
      %v1455 = vadd.f32 0.0, %v1454
      %1456 = vdwg.mxu0
      %1458 = vrot.lane.b32.xlu0 %v1408, 64
      %v1459 = vpop.permute.xlu0 %1458
      %1460 = vrot.lane.b32.xlu0 %v1436, 64
      %v1461 = vpop.permute.xlu0 %1460
      %1464 = vmatpush.msra.mxu0 0.0
      %1465 = vmatpush.msra.mxu0 0.0
      %1466 = vmatpush.msra.mxu0 0.0
      %1467 = vmatpush.msra.mxu0 0.0
      %1468 = vmatpush.msra.mxu0 0.0
      %1469 = vmatpush.msra.mxu0 0.0
      %1470 = vmatpush.msra.mxu0 0.0
      %1471 = vmatpush.msra.mxu0 0.0
      %1472 = vmatpush.msra.mxu0 0.0
      %1473 = vmatpush.msra.mxu0 0.0
      %1474 = vmatpush.msra.mxu0 0.0
      %1475 = vmatpush.msra.mxu0 0.0
      %1476 = vmatpush.msra.mxu0 0.0
      %1477 = vmatpush.msra.mxu0 0.0
      %1478 = vmatpush.msra.mxu0 %v1461
      %1479 = vmatpush.msra.mxu0 %v1459
      %1480 = vmatmul.f32.gmra.mxu0 %v615
      %v1481 = vpop.f32.mrf.mxu0
      %v1482 = vadd.f32 0.0, %v1481
      %1483 = vdwg.mxu0
      %v1484 = vmax.f32 %v1455, 0.0
      %v1485 = vxor.u32 %v1482, 2147483648
      %v1486 = vmul.f32 %v1485, 1.442695
      %v1487 = vpow.pop %v1486
      %v1488 = vadd.f32 %v1487, 1.0
      %v1489 = vrcp.pop %v1488
      %v1490 = vmul.f32 %v1488, %v1489
      %v1491 = vsub.f32 1.0, %v1490
      %v1492 = vmul.f32 %v1489, %v1491
      %v1493 = vadd.f32 %v1489, %v1492
      %vm1494 = vweird.f32 %v1488
      %vm1495 = vweird.f32 %v1489
      %vm1496 = vmor %vm1494, %vm1495
      %v1497 = vsel %vm1496, %v1489, %v1493
      %v1498 = vand.u32 2147483647, %v1488
      %vm1499 = vcmp.eq.f32.partialorder %v1498, 8.507059e+37
      %v1500 = vand.u32 %v1488, 2147483648
      %v1501 = vor.u32 1.1754944e-38, %v1500
      %v1502 = vsel %vm1499, %v1501, %v1497
      %v1503 = vmul.f32 1.0, %v1502
      %v1504 = vadd.f32 %v1484, %v1503
      %v1505 = vmul.f32 %v1504, 0.5
      %v1506 = vmax.f32 %v1505, 0.0
      %v1507 = vmul.f32 %v1506, 0.9
      %v1508 = vadd.f32 %v1507, %v661
      %v1509 = vmax.f32 %v1508, 0.0
      %s1510 = scalar_lea.vmem %s8, 384
      %v1511 = vld [vmem:[%s1510] sm:$0xff]
      %v1512 = vld [vmem:[%s1510 + $0x8] sm:$0xff]
      %v1513 = vld [vmem:[%s1510 + $0x10] sm:$0xff]
      %v1514 = vld [vmem:[%s1510 + $0x18] sm:$0xff]
      %v1515 = vld [vmem:[%s1510 + $0x20] sm:$0xff]
      %v1516 = vld [vmem:[%s1510 + $0x28] sm:$0xff]
      %v1517 = vld [vmem:[%s1510 + $0x30] sm:$0xff]
      %v1518 = vld [vmem:[%s1510 + $0x38] sm:$0xff]
      %v1519 = vld [vmem:[%s1510 + $0x40] sm:$0xff]
      %v1520 = vld [vmem:[%s1510 + $0x48] sm:$0xff]
      %v1521 = vld [vmem:[%s1510 + $0x50] sm:$0xff]
      %v1522 = vld [vmem:[%s1510 + $0x58] sm:$0xff]
      %v1523 = vld [vmem:[%s1510 + $0x60] sm:$0xff]
      %v1524 = vld [vmem:[%s1510 + $0x68] sm:$0xff]
      %v1525 = vld [vmem:[%s1510 + $0x70] sm:$0xff]
      %v1526 = vld [vmem:[%s1510 + $0x78] sm:$0xff]
      %v1528 = vsel %vm528, %v1509, 0
      %1530 = vmatpush.msra.mxu0 0.0
      %1531 = vmatpush.msra.mxu0 0.0
      %1532 = vmatpush.msra.mxu0 0.0
      %1533 = vmatpush.msra.mxu0 0.0
      %1534 = vmatpush.msra.mxu0 0.0
      %1535 = vmatpush.msra.mxu0 0.0
      %1536 = vmatpush.msra.mxu0 0.0
      %1537 = vmatpush.msra.mxu0 0.0
      %1538 = vmatpush.msra.mxu0 %v1525
      %1539 = vmatpush.msra.mxu0 %v1523
      %1540 = vmatpush.msra.mxu0 %v1521
      %1541 = vmatpush.msra.mxu0 %v1519
      %1542 = vmatpush.msra.mxu0 %v1517
      %1543 = vmatpush.msra.mxu0 %v1515
      %1544 = vmatpush.msra.mxu0 %v1513
      %1545 = vmatpush.msra.mxu0 %v1511
      %1546 = vmatmul.f32.gmra.mxu0 %v1528
      %v1547 = vpop.f32.mrf.mxu0
      %1548 = vmatmul.f32.gmra.mxu0 %v1388
      %v1549 = vpop.f32.mrf.mxu0
      %v1550 = vadd.f32 0.0, %v1549
      %1551 = vdwg.mxu0
      %1552 = vmatpush.msra.mxu0 0.0
      %1553 = vmatpush.msra.mxu0 0.0
      %1554 = vmatpush.msra.mxu0 0.0
      %1555 = vmatpush.msra.mxu0 0.0
      %1556 = vmatpush.msra.mxu0 0.0
      %1557 = vmatpush.msra.mxu0 0.0
      %1558 = vmatpush.msra.mxu0 0.0
      %1559 = vmatpush.msra.mxu0 0.0
      %1560 = vmatpush.msra.mxu0 %v1526
      %1561 = vmatpush.msra.mxu0 %v1524
      %1562 = vmatpush.msra.mxu0 %v1522
      %1563 = vmatpush.msra.mxu0 %v1520
      %1564 = vmatpush.msra.mxu0 %v1518
      %1565 = vmatpush.msra.mxu0 %v1516
      %1566 = vmatpush.msra.mxu0 %v1514
      %1567 = vmatpush.msra.mxu0 %v1512
      %1568 = vmatmul.f32.gmra.mxu0 %v1528
      %v1569 = vpop.f32.mrf.mxu0
      %v1570 = vadd.f32 0.0, %v1569
      %1571 = vmatmul.f32.gmra.mxu0 %v1388
      %v1572 = vpop.f32.mrf.mxu0
      %1573 = vdwg.mxu0
      %1575 = vrot.lane.b32.xlu0 %v1570, 64
      %v1576 = vpop.permute.xlu0 %1575
      %1577 = vmatpush.msra.mxu0 0.0
      %1578 = vmatpush.msra.mxu0 0.0
      %1579 = vmatpush.msra.mxu0 0.0
      %1580 = vmatpush.msra.mxu0 0.0
      %1581 = vmatpush.msra.mxu0 0.0
      %1582 = vmatpush.msra.mxu0 0.0
      %1583 = vmatpush.msra.mxu0 0.0
      %1584 = vmatpush.msra.mxu0 0.0
      %1585 = vmatpush.msra.mxu0 0.0
      %1586 = vmatpush.msra.mxu0 0.0
      %1587 = vmatpush.msra.mxu0 0.0
      %1588 = vmatpush.msra.mxu0 0.0
      %1589 = vmatpush.msra.mxu0 0.0
      %1590 = vmatpush.msra.mxu0 0.0
      %1591 = vmatpush.msra.mxu0 0.0
      %1592 = vmatpush.msra.mxu0 %v1550
      %1593 = vmatmul.f32.gmra.mxu0 %v731
      %v1594 = vpop.f32.mrf.mxu0
      %v1595 = vadd.f32 0.0, %v1594
      %1596 = vdwg.mxu0
      %1598 = vrot.lane.b32.xlu0 %v1550, 64
      %v1599 = vpop.permute.xlu0 %1598
      %1600 = vrot.lane.b32.xlu0 %v1576, 64
      %v1601 = vpop.permute.xlu0 %1600
      %1604 = vmatpush.msra.mxu0 0.0
      %1605 = vmatpush.msra.mxu0 0.0
      %1606 = vmatpush.msra.mxu0 0.0
      %1607 = vmatpush.msra.mxu0 0.0
      %1608 = vmatpush.msra.mxu0 0.0
      %1609 = vmatpush.msra.mxu0 0.0
      %1610 = vmatpush.msra.mxu0 0.0
      %1611 = vmatpush.msra.mxu0 0.0
      %1612 = vmatpush.msra.mxu0 0.0
      %1613 = vmatpush.msra.mxu0 0.0
      %1614 = vmatpush.msra.mxu0 0.0
      %1615 = vmatpush.msra.mxu0 0.0
      %1616 = vmatpush.msra.mxu0 0.0
      %1617 = vmatpush.msra.mxu0 0.0
      %1618 = vmatpush.msra.mxu0 %v1601
      %1619 = vmatpush.msra.mxu0 %v1599
      %1620 = vmatmul.f32.gmra.mxu0 %v761
      %v1621 = vpop.f32.mrf.mxu0
      %v1622 = vadd.f32 0.0, %v1621
      %1623 = vdwg.mxu0
      %v1624 = vmax.f32 %v1595, 0.0
      %v1625 = vxor.u32 %v1622, 2147483648
      %v1626 = vmul.f32 %v1625, 1.442695
      %v1627 = vpow.pop %v1626
      %v1628 = vadd.f32 %v1627, 1.0
      %v1629 = vrcp.pop %v1628
      %v1630 = vmul.f32 %v1628, %v1629
      %v1631 = vsub.f32 1.0, %v1630
      %v1632 = vmul.f32 %v1629, %v1631
      %v1633 = vadd.f32 %v1629, %v1632
      %vm1634 = vweird.f32 %v1628
      %vm1635 = vweird.f32 %v1629
      %vm1636 = vmor %vm1634, %vm1635
      %v1637 = vsel %vm1636, %v1629, %v1633
      %v1638 = vand.u32 2147483647, %v1628
      %vm1639 = vcmp.eq.f32.partialorder %v1638, 8.507059e+37
      %v1640 = vand.u32 %v1628, 2147483648
      %v1641 = vor.u32 1.1754944e-38, %v1640
      %v1642 = vsel %vm1639, %v1641, %v1637
      %v1643 = vmul.f32 1.0, %v1642
      %v1644 = vadd.f32 %v1624, %v1643
      %v1645 = vmul.f32 %v1644, 0.5
      %v1646 = vmax.f32 %v1645, 0.0
      %v1647 = vmul.f32 %v1646, 0.9
      %v1648 = vadd.f32 %v1647, %v807
      %v1649 = vmax.f32 %v1648, 0.0
      %s1650 = scalar_lea.vmem %s7, 512
      %v1651 = vld [vmem:[%s1650] sm:$0xff]
      %v1652 = vld [vmem:[%s1650 + $0x8] sm:$0xff]
      %v1653 = vld [vmem:[%s1650 + $0x10] sm:$0xff]
      %v1654 = vld [vmem:[%s1650 + $0x18] sm:$0xff]
      %v1655 = vld [vmem:[%s1650 + $0x20] sm:$0xff]
      %v1656 = vld [vmem:[%s1650 + $0x28] sm:$0xff]
      %v1657 = vld [vmem:[%s1650 + $0x30] sm:$0xff]
      %v1658 = vld [vmem:[%s1650 + $0x38] sm:$0xff]
      %v1659 = vld [vmem:[%s1650 + $0x40] sm:$0xff]
      %v1660 = vld [vmem:[%s1650 + $0x48] sm:$0xff]
      %v1661 = vld [vmem:[%s1650 + $0x50] sm:$0xff]
      %v1662 = vld [vmem:[%s1650 + $0x58] sm:$0xff]
      %v1663 = vld [vmem:[%s1650 + $0x60] sm:$0xff]
      %v1664 = vld [vmem:[%s1650 + $0x68] sm:$0xff]
      %v1665 = vld [vmem:[%s1650 + $0x70] sm:$0xff]
      %v1666 = vld [vmem:[%s1650 + $0x78] sm:$0xff]
      %v1668 = vsel %vm528, %v1649, 0
      %1670 = vmatpush.msra.mxu0 0.0
      %1671 = vmatpush.msra.mxu0 0.0
      %1672 = vmatpush.msra.mxu0 0.0
      %1673 = vmatpush.msra.mxu0 0.0
      %1674 = vmatpush.msra.mxu0 0.0
      %1675 = vmatpush.msra.mxu0 0.0
      %1676 = vmatpush.msra.mxu0 0.0
      %1677 = vmatpush.msra.mxu0 0.0
      %1678 = vmatpush.msra.mxu0 %v1665
      %1679 = vmatpush.msra.mxu0 %v1663
      %1680 = vmatpush.msra.mxu0 %v1661
      %1681 = vmatpush.msra.mxu0 %v1659
      %1682 = vmatpush.msra.mxu0 %v1657
      %1683 = vmatpush.msra.mxu0 %v1655
      %1684 = vmatpush.msra.mxu0 %v1653
      %1685 = vmatpush.msra.mxu0 %v1651
      %1686 = vmatmul.f32.gmra.mxu0 %v1528
      %v1687 = vpop.f32.mrf.mxu0
      %v1688 = vadd.f32 0.0, %v1687
      %1689 = vmatmul.f32.gmra.mxu0 %v1668
      %v1690 = vpop.f32.mrf.mxu0
      %1691 = vdwg.mxu0
      %1692 = vmatpush.msra.mxu0 0.0
      %1693 = vmatpush.msra.mxu0 0.0
      %1694 = vmatpush.msra.mxu0 0.0
      %1695 = vmatpush.msra.mxu0 0.0
      %1696 = vmatpush.msra.mxu0 0.0
      %1697 = vmatpush.msra.mxu0 0.0
      %1698 = vmatpush.msra.mxu0 0.0
      %1699 = vmatpush.msra.mxu0 0.0
      %1700 = vmatpush.msra.mxu0 %v1666
      %1701 = vmatpush.msra.mxu0 %v1664
      %1702 = vmatpush.msra.mxu0 %v1662
      %1703 = vmatpush.msra.mxu0 %v1660
      %1704 = vmatpush.msra.mxu0 %v1658
      %1705 = vmatpush.msra.mxu0 %v1656
      %1706 = vmatpush.msra.mxu0 %v1654
      %1707 = vmatpush.msra.mxu0 %v1652
      %1708 = vmatmul.f32.gmra.mxu0 %v1528
      %v1709 = vpop.f32.mrf.mxu0
      %1710 = vmatmul.f32.gmra.mxu0 %v1668
      %v1711 = vpop.f32.mrf.mxu0
      %v1712 = vadd.f32 0.0, %v1711
      %1713 = vdwg.mxu0
      %1715 = vrot.lane.b32.xlu0 %v1712, 64
      %v1716 = vpop.permute.xlu0 %1715
      %1717 = vmatpush.msra.mxu0 0.0
      %1718 = vmatpush.msra.mxu0 0.0
      %1719 = vmatpush.msra.mxu0 0.0
      %1720 = vmatpush.msra.mxu0 0.0
      %1721 = vmatpush.msra.mxu0 0.0
      %1722 = vmatpush.msra.mxu0 0.0
      %1723 = vmatpush.msra.mxu0 0.0
      %1724 = vmatpush.msra.mxu0 0.0
      %1725 = vmatpush.msra.mxu0 0.0
      %1726 = vmatpush.msra.mxu0 0.0
      %1727 = vmatpush.msra.mxu0 0.0
      %1728 = vmatpush.msra.mxu0 0.0
      %1729 = vmatpush.msra.mxu0 0.0
      %1730 = vmatpush.msra.mxu0 0.0
      %1731 = vmatpush.msra.mxu0 0.0
      %1732 = vmatpush.msra.mxu0 %v1688
      %1733 = vmatmul.f32.gmra.mxu0 %v584
      %v1734 = vpop.f32.mrf.mxu0
      %v1735 = vadd.f32 0.0, %v1734
      %1736 = vdwg.mxu0
      %1738 = vrot.lane.b32.xlu0 %v1688, 64
      %v1739 = vpop.permute.xlu0 %1738
      %1740 = vrot.lane.b32.xlu0 %v1716, 64
      %v1741 = vpop.permute.xlu0 %1740
      %1744 = vmatpush.msra.mxu0 0.0
      %1745 = vmatpush.msra.mxu0 0.0
      %1746 = vmatpush.msra.mxu0 0.0
      %1747 = vmatpush.msra.mxu0 0.0
      %1748 = vmatpush.msra.mxu0 0.0
      %1749 = vmatpush.msra.mxu0 0.0
      %1750 = vmatpush.msra.mxu0 0.0
      %1751 = vmatpush.msra.mxu0 0.0
      %1752 = vmatpush.msra.mxu0 0.0
      %1753 = vmatpush.msra.mxu0 0.0
      %1754 = vmatpush.msra.mxu0 0.0
      %1755 = vmatpush.msra.mxu0 0.0
      %1756 = vmatpush.msra.mxu0 0.0
      %1757 = vmatpush.msra.mxu0 0.0
      %1758 = vmatpush.msra.mxu0 %v1741
      %1759 = vmatpush.msra.mxu0 %v1739
      %1760 = vmatmul.f32.gmra.mxu0 %v615
      %v1761 = vpop.f32.mrf.mxu0
      %v1762 = vadd.f32 0.0, %v1761
      %1763 = vdwg.mxu0
      %v1764 = vmax.f32 %v1735, 0.0
      %v1765 = vxor.u32 %v1762, 2147483648
      %v1766 = vmul.f32 %v1765, 1.442695
      %v1767 = vpow.pop %v1766
      %v1768 = vadd.f32 %v1767, 1.0
      %v1769 = vrcp.pop %v1768
      %v1770 = vmul.f32 %v1768, %v1769
      %v1771 = vsub.f32 1.0, %v1770
      %v1772 = vmul.f32 %v1769, %v1771
      %v1773 = vadd.f32 %v1769, %v1772
      %vm1774 = vweird.f32 %v1768
      %vm1775 = vweird.f32 %v1769
      %vm1776 = vmor %vm1774, %vm1775
      %v1777 = vsel %vm1776, %v1769, %v1773
      %v1778 = vand.u32 2147483647, %v1768
      %vm1779 = vcmp.eq.f32.partialorder %v1778, 8.507059e+37
      %v1780 = vand.u32 %v1768, 2147483648
      %v1781 = vor.u32 1.1754944e-38, %v1780
      %v1782 = vsel %vm1779, %v1781, %v1777
      %v1783 = vmul.f32 1.0, %v1782
      %v1784 = vadd.f32 %v1764, %v1783
      %v1785 = vmul.f32 %v1784, 0.5
      %v1786 = vmax.f32 %v1785, 0.0
      %v1787 = vmul.f32 %v1786, 0.9
      %v1788 = vadd.f32 %v1787, %v661
      %v1789 = vmax.f32 %v1788, 0.0
      %s1790 = scalar_lea.vmem %s8, 512
      %v1791 = vld [vmem:[%s1790] sm:$0xff]
      %v1792 = vld [vmem:[%s1790 + $0x8] sm:$0xff]
      %v1793 = vld [vmem:[%s1790 + $0x10] sm:$0xff]
      %v1794 = vld [vmem:[%s1790 + $0x18] sm:$0xff]
      %v1795 = vld [vmem:[%s1790 + $0x20] sm:$0xff]
      %v1796 = vld [vmem:[%s1790 + $0x28] sm:$0xff]
      %v1797 = vld [vmem:[%s1790 + $0x30] sm:$0xff]
      %v1798 = vld [vmem:[%s1790 + $0x38] sm:$0xff]
      %v1799 = vld [vmem:[%s1790 + $0x40] sm:$0xff]
      %v1800 = vld [vmem:[%s1790 + $0x48] sm:$0xff]
      %v1801 = vld [vmem:[%s1790 + $0x50] sm:$0xff]
      %v1802 = vld [vmem:[%s1790 + $0x58] sm:$0xff]
      %v1803 = vld [vmem:[%s1790 + $0x60] sm:$0xff]
      %v1804 = vld [vmem:[%s1790 + $0x68] sm:$0xff]
      %v1805 = vld [vmem:[%s1790 + $0x70] sm:$0xff]
      %v1806 = vld [vmem:[%s1790 + $0x78] sm:$0xff]
      %v1808 = vsel %vm528, %v1789, 0
      %1810 = vmatpush.msra.mxu0 0.0
      %1811 = vmatpush.msra.mxu0 0.0
      %1812 = vmatpush.msra.mxu0 0.0
      %1813 = vmatpush.msra.mxu0 0.0
      %1814 = vmatpush.msra.mxu0 0.0
      %1815 = vmatpush.msra.mxu0 0.0
      %1816 = vmatpush.msra.mxu0 0.0
      %1817 = vmatpush.msra.mxu0 0.0
      %1818 = vmatpush.msra.mxu0 %v1805
      %1819 = vmatpush.msra.mxu0 %v1803
      %1820 = vmatpush.msra.mxu0 %v1801
      %1821 = vmatpush.msra.mxu0 %v1799
      %1822 = vmatpush.msra.mxu0 %v1797
      %1823 = vmatpush.msra.mxu0 %v1795
      %1824 = vmatpush.msra.mxu0 %v1793
      %1825 = vmatpush.msra.mxu0 %v1791
      %1826 = vmatmul.f32.gmra.mxu0 %v1808
      %v1827 = vpop.f32.mrf.mxu0
      %1828 = vmatmul.f32.gmra.mxu0 %v1668
      %v1829 = vpop.f32.mrf.mxu0
      %v1830 = vadd.f32 0.0, %v1829
      %1831 = vdwg.mxu0
      %1832 = vmatpush.msra.mxu0 0.0
      %1833 = vmatpush.msra.mxu0 0.0
      %1834 = vmatpush.msra.mxu0 0.0
      %1835 = vmatpush.msra.mxu0 0.0
      %1836 = vmatpush.msra.mxu0 0.0
      %1837 = vmatpush.msra.mxu0 0.0
      %1838 = vmatpush.msra.mxu0 0.0
      %1839 = vmatpush.msra.mxu0 0.0
      %1840 = vmatpush.msra.mxu0 %v1806
      %1841 = vmatpush.msra.mxu0 %v1804
      %1842 = vmatpush.msra.mxu0 %v1802
      %1843 = vmatpush.msra.mxu0 %v1800
      %1844 = vmatpush.msra.mxu0 %v1798
      %1845 = vmatpush.msra.mxu0 %v1796
      %1846 = vmatpush.msra.mxu0 %v1794
      %1847 = vmatpush.msra.mxu0 %v1792
      %1848 = vmatmul.f32.gmra.mxu0 %v1808
      %v1849 = vpop.f32.mrf.mxu0
      %v1850 = vadd.f32 0.0, %v1849
      %1851 = vmatmul.f32.gmra.mxu0 %v1668
      %v1852 = vpop.f32.mrf.mxu0
      %1853 = vdwg.mxu0
      %1855 = vrot.lane.b32.xlu0 %v1850, 64
      %v1856 = vpop.permute.xlu0 %1855
      %1857 = vmatpush.msra.mxu0 0.0
      %1858 = vmatpush.msra.mxu0 0.0
      %1859 = vmatpush.msra.mxu0 0.0
      %1860 = vmatpush.msra.mxu0 0.0
      %1861 = vmatpush.msra.mxu0 0.0
      %1862 = vmatpush.msra.mxu0 0.0
      %1863 = vmatpush.msra.mxu0 0.0
      %1864 = vmatpush.msra.mxu0 0.0
      %1865 = vmatpush.msra.mxu0 0.0
      %1866 = vmatpush.msra.mxu0 0.0
      %1867 = vmatpush.msra.mxu0 0.0
      %1868 = vmatpush.msra.mxu0 0.0
      %1869 = vmatpush.msra.mxu0 0.0
      %1870 = vmatpush.msra.mxu0 0.0
      %1871 = vmatpush.msra.mxu0 0.0
      %1872 = vmatpush.msra.mxu0 %v1830
      %1873 = vmatmul.f32.gmra.mxu0 %v731
      %v1874 = vpop.f32.mrf.mxu0
      %v1875 = vadd.f32 0.0, %v1874
      %1876 = vdwg.mxu0
      %1878 = vrot.lane.b32.xlu0 %v1830, 64
      %v1879 = vpop.permute.xlu0 %1878
      %1880 = vrot.lane.b32.xlu0 %v1856, 64
      %v1881 = vpop.permute.xlu0 %1880
      %1884 = vmatpush.msra.mxu0 0.0
      %1885 = vmatpush.msra.mxu0 0.0
      %1886 = vmatpush.msra.mxu0 0.0
      %1887 = vmatpush.msra.mxu0 0.0
      %1888 = vmatpush.msra.mxu0 0.0
      %1889 = vmatpush.msra.mxu0 0.0
      %1890 = vmatpush.msra.mxu0 0.0
      %1891 = vmatpush.msra.mxu0 0.0
      %1892 = vmatpush.msra.mxu0 0.0
      %1893 = vmatpush.msra.mxu0 0.0
      %1894 = vmatpush.msra.mxu0 0.0
      %1895 = vmatpush.msra.mxu0 0.0
      %1896 = vmatpush.msra.mxu0 0.0
      %1897 = vmatpush.msra.mxu0 0.0
      %1898 = vmatpush.msra.mxu0 %v1881
      %1899 = vmatpush.msra.mxu0 %v1879
      %1900 = vmatmul.f32.gmra.mxu0 %v761
      %v1901 = vpop.f32.mrf.mxu0
      %v1902 = vadd.f32 0.0, %v1901
      %1903 = vdwg.mxu0
      %v1904 = vmax.f32 %v1875, 0.0
      %v1905 = vxor.u32 %v1902, 2147483648
      %v1906 = vmul.f32 %v1905, 1.442695
      %v1907 = vpow.pop %v1906
      %v1908 = vadd.f32 %v1907, 1.0
      %v1909 = vrcp.pop %v1908
      %v1910 = vmul.f32 %v1908, %v1909
      %v1911 = vsub.f32 1.0, %v1910
      %v1912 = vmul.f32 %v1909, %v1911
      %v1913 = vadd.f32 %v1909, %v1912
      %vm1914 = vweird.f32 %v1908
      %vm1915 = vweird.f32 %v1909
      %vm1916 = vmor %vm1914, %vm1915
      %v1917 = vsel %vm1916, %v1909, %v1913
      %v1918 = vand.u32 2147483647, %v1908
      %vm1919 = vcmp.eq.f32.partialorder %v1918, 8.507059e+37
      %v1920 = vand.u32 %v1908, 2147483648
      %v1921 = vor.u32 1.1754944e-38, %v1920
      %v1922 = vsel %vm1919, %v1921, %v1917
      %v1923 = vmul.f32 1.0, %v1922
      %v1924 = vadd.f32 %v1904, %v1923
      %v1925 = vmul.f32 %v1924, 0.5
      %v1926 = vmax.f32 %v1925, 0.0
      %v1927 = vmul.f32 %v1926, 0.9
      %v1928 = vadd.f32 %v1927, %v807
      %v1929 = vmax.f32 %v1928, 0.0
      %s1930 = scalar_lea.vmem %s7, 640
      %v1931 = vld [vmem:[%s1930] sm:$0xff]
      %v1932 = vld [vmem:[%s1930 + $0x8] sm:$0xff]
      %v1933 = vld [vmem:[%s1930 + $0x10] sm:$0xff]
      %v1934 = vld [vmem:[%s1930 + $0x18] sm:$0xff]
      %v1935 = vld [vmem:[%s1930 + $0x20] sm:$0xff]
      %v1936 = vld [vmem:[%s1930 + $0x28] sm:$0xff]
      %v1937 = vld [vmem:[%s1930 + $0x30] sm:$0xff]
      %v1938 = vld [vmem:[%s1930 + $0x38] sm:$0xff]
      %v1939 = vld [vmem:[%s1930 + $0x40] sm:$0xff]
      %v1940 = vld [vmem:[%s1930 + $0x48] sm:$0xff]
      %v1941 = vld [vmem:[%s1930 + $0x50] sm:$0xff]
      %v1942 = vld [vmem:[%s1930 + $0x58] sm:$0xff]
      %v1943 = vld [vmem:[%s1930 + $0x60] sm:$0xff]
      %v1944 = vld [vmem:[%s1930 + $0x68] sm:$0xff]
      %v1945 = vld [vmem:[%s1930 + $0x70] sm:$0xff]
      %v1946 = vld [vmem:[%s1930 + $0x78] sm:$0xff]
      %v1948 = vsel %vm528, %v1929, 0
      %1950 = vmatpush.msra.mxu0 0.0
      %1951 = vmatpush.msra.mxu0 0.0
      %1952 = vmatpush.msra.mxu0 0.0
      %1953 = vmatpush.msra.mxu0 0.0
      %1954 = vmatpush.msra.mxu0 0.0
      %1955 = vmatpush.msra.mxu0 0.0
      %1956 = vmatpush.msra.mxu0 0.0
      %1957 = vmatpush.msra.mxu0 0.0
      %1958 = vmatpush.msra.mxu0 %v1945
      %1959 = vmatpush.msra.mxu0 %v1943
      %1960 = vmatpush.msra.mxu0 %v1941
      %1961 = vmatpush.msra.mxu0 %v1939
      %1962 = vmatpush.msra.mxu0 %v1937
      %1963 = vmatpush.msra.mxu0 %v1935
      %1964 = vmatpush.msra.mxu0 %v1933
      %1965 = vmatpush.msra.mxu0 %v1931
      %1966 = vmatmul.f32.gmra.mxu0 %v1808
      %v1967 = vpop.f32.mrf.mxu0
      %v1968 = vadd.f32 0.0, %v1967
      %1969 = vmatmul.f32.gmra.mxu0 %v1948
      %v1970 = vpop.f32.mrf.mxu0
      %1971 = vdwg.mxu0
      %1972 = vmatpush.msra.mxu0 0.0
      %1973 = vmatpush.msra.mxu0 0.0
      %1974 = vmatpush.msra.mxu0 0.0
      %1975 = vmatpush.msra.mxu0 0.0
      %1976 = vmatpush.msra.mxu0 0.0
      %1977 = vmatpush.msra.mxu0 0.0
      %1978 = vmatpush.msra.mxu0 0.0
      %1979 = vmatpush.msra.mxu0 0.0
      %1980 = vmatpush.msra.mxu0 %v1946
      %1981 = vmatpush.msra.mxu0 %v1944
      %1982 = vmatpush.msra.mxu0 %v1942
      %1983 = vmatpush.msra.mxu0 %v1940
      %1984 = vmatpush.msra.mxu0 %v1938
      %1985 = vmatpush.msra.mxu0 %v1936
      %1986 = vmatpush.msra.mxu0 %v1934
      %1987 = vmatpush.msra.mxu0 %v1932
      %1988 = vmatmul.f32.gmra.mxu0 %v1808
      %v1989 = vpop.f32.mrf.mxu0
      %1990 = vmatmul.f32.gmra.mxu0 %v1948
      %v1991 = vpop.f32.mrf.mxu0
      %v1992 = vadd.f32 0.0, %v1991
      %1993 = vdwg.mxu0
      %1995 = vrot.lane.b32.xlu0 %v1992, 64
      %v1996 = vpop.permute.xlu0 %1995
      %1997 = vmatpush.msra.mxu0 0.0
      %1998 = vmatpush.msra.mxu0 0.0
      %1999 = vmatpush.msra.mxu0 0.0
      %2000 = vmatpush.msra.mxu0 0.0
      %2001 = vmatpush.msra.mxu0 0.0
      %2002 = vmatpush.msra.mxu0 0.0
      %2003 = vmatpush.msra.mxu0 0.0
      %2004 = vmatpush.msra.mxu0 0.0
      %2005 = vmatpush.msra.mxu0 0.0
      %2006 = vmatpush.msra.mxu0 0.0
      %2007 = vmatpush.msra.mxu0 0.0
      %2008 = vmatpush.msra.mxu0 0.0
      %2009 = vmatpush.msra.mxu0 0.0
      %2010 = vmatpush.msra.mxu0 0.0
      %2011 = vmatpush.msra.mxu0 0.0
      %2012 = vmatpush.msra.mxu0 %v1968
      %2013 = vmatmul.f32.gmra.mxu0 %v584
      %v2014 = vpop.f32.mrf.mxu0
      %v2015 = vadd.f32 0.0, %v2014
      %2016 = vdwg.mxu0
      %2018 = vrot.lane.b32.xlu0 %v1968, 64
      %v2019 = vpop.permute.xlu0 %2018
      %2020 = vrot.lane.b32.xlu0 %v1996, 64
      %v2021 = vpop.permute.xlu0 %2020
      %2024 = vmatpush.msra.mxu0 0.0
      %2025 = vmatpush.msra.mxu0 0.0
      %2026 = vmatpush.msra.mxu0 0.0
      %2027 = vmatpush.msra.mxu0 0.0
      %2028 = vmatpush.msra.mxu0 0.0
      %2029 = vmatpush.msra.mxu0 0.0
      %2030 = vmatpush.msra.mxu0 0.0
      %2031 = vmatpush.msra.mxu0 0.0
      %2032 = vmatpush.msra.mxu0 0.0
      %2033 = vmatpush.msra.mxu0 0.0
      %2034 = vmatpush.msra.mxu0 0.0
      %2035 = vmatpush.msra.mxu0 0.0
      %2036 = vmatpush.msra.mxu0 0.0
      %2037 = vmatpush.msra.mxu0 0.0
      %2038 = vmatpush.msra.mxu0 %v2021
      %2039 = vmatpush.msra.mxu0 %v2019
      %2040 = vmatmul.f32.gmra.mxu0 %v615
      %v2041 = vpop.f32.mrf.mxu0
      %v2042 = vadd.f32 0.0, %v2041
      %2043 = vdwg.mxu0
      %v2044 = vmax.f32 %v2015, 0.0
      %v2045 = vxor.u32 %v2042, 2147483648
      %v2046 = vmul.f32 %v2045, 1.442695
      %v2047 = vpow.pop %v2046
      %v2048 = vadd.f32 %v2047, 1.0
      %v2049 = vrcp.pop %v2048
      %v2050 = vmul.f32 %v2048, %v2049
      %v2051 = vsub.f32 1.0, %v2050
      %v2052 = vmul.f32 %v2049, %v2051
      %v2053 = vadd.f32 %v2049, %v2052
      %vm2054 = vweird.f32 %v2048
      %vm2055 = vweird.f32 %v2049
      %vm2056 = vmor %vm2054, %vm2055
      %v2057 = vsel %vm2056, %v2049, %v2053
      %v2058 = vand.u32 2147483647, %v2048
      %vm2059 = vcmp.eq.f32.partialorder %v2058, 8.507059e+37
      %v2060 = vand.u32 %v2048, 2147483648
      %v2061 = vor.u32 1.1754944e-38, %v2060
      %v2062 = vsel %vm2059, %v2061, %v2057
      %v2063 = vmul.f32 1.0, %v2062
      %v2064 = vadd.f32 %v2044, %v2063
      %v2065 = vmul.f32 %v2064, 0.5
      %v2066 = vmax.f32 %v2065, 0.0
      %v2067 = vmul.f32 %v2066, 0.9
      %v2068 = vadd.f32 %v2067, %v661
      %v2069 = vmax.f32 %v2068, 0.0
      %s2070 = scalar_lea.vmem %s8, 640
      %v2071 = vld [vmem:[%s2070] sm:$0xff]
      %v2072 = vld [vmem:[%s2070 + $0x8] sm:$0xff]
      %v2073 = vld [vmem:[%s2070 + $0x10] sm:$0xff]
      %v2074 = vld [vmem:[%s2070 + $0x18] sm:$0xff]
      %v2075 = vld [vmem:[%s2070 + $0x20] sm:$0xff]
      %v2076 = vld [vmem:[%s2070 + $0x28] sm:$0xff]
      %v2077 = vld [vmem:[%s2070 + $0x30] sm:$0xff]
      %v2078 = vld [vmem:[%s2070 + $0x38] sm:$0xff]
      %v2079 = vld [vmem:[%s2070 + $0x40] sm:$0xff]
      %v2080 = vld [vmem:[%s2070 + $0x48] sm:$0xff]
      %v2081 = vld [vmem:[%s2070 + $0x50] sm:$0xff]
      %v2082 = vld [vmem:[%s2070 + $0x58] sm:$0xff]
      %v2083 = vld [vmem:[%s2070 + $0x60] sm:$0xff]
      %v2084 = vld [vmem:[%s2070 + $0x68] sm:$0xff]
      %v2085 = vld [vmem:[%s2070 + $0x70] sm:$0xff]
      %v2086 = vld [vmem:[%s2070 + $0x78] sm:$0xff]
      %v2088 = vsel %vm528, %v2069, 0
      %2090 = vmatpush.msra.mxu0 0.0
      %2091 = vmatpush.msra.mxu0 0.0
      %2092 = vmatpush.msra.mxu0 0.0
      %2093 = vmatpush.msra.mxu0 0.0
      %2094 = vmatpush.msra.mxu0 0.0
      %2095 = vmatpush.msra.mxu0 0.0
      %2096 = vmatpush.msra.mxu0 0.0
      %2097 = vmatpush.msra.mxu0 0.0
      %2098 = vmatpush.msra.mxu0 %v2085
      %2099 = vmatpush.msra.mxu0 %v2083
      %2100 = vmatpush.msra.mxu0 %v2081
      %2101 = vmatpush.msra.mxu0 %v2079
      %2102 = vmatpush.msra.mxu0 %v2077
      %2103 = vmatpush.msra.mxu0 %v2075
      %2104 = vmatpush.msra.mxu0 %v2073
      %2105 = vmatpush.msra.mxu0 %v2071
      %2106 = vmatmul.f32.gmra.mxu0 %v2088
      %v2107 = vpop.f32.mrf.mxu0
      %2108 = vmatmul.f32.gmra.mxu0 %v1948
      %v2109 = vpop.f32.mrf.mxu0
      %v2110 = vadd.f32 0.0, %v2109
      %2111 = vdwg.mxu0
      %2112 = vmatpush.msra.mxu0 0.0
      %2113 = vmatpush.msra.mxu0 0.0
      %2114 = vmatpush.msra.mxu0 0.0
      %2115 = vmatpush.msra.mxu0 0.0
      %2116 = vmatpush.msra.mxu0 0.0
      %2117 = vmatpush.msra.mxu0 0.0
      %2118 = vmatpush.msra.mxu0 0.0
      %2119 = vmatpush.msra.mxu0 0.0
      %2120 = vmatpush.msra.mxu0 %v2086
      %2121 = vmatpush.msra.mxu0 %v2084
      %2122 = vmatpush.msra.mxu0 %v2082
      %2123 = vmatpush.msra.mxu0 %v2080
      %2124 = vmatpush.msra.mxu0 %v2078
      %2125 = vmatpush.msra.mxu0 %v2076
      %2126 = vmatpush.msra.mxu0 %v2074
      %2127 = vmatpush.msra.mxu0 %v2072
      %2128 = vmatmul.f32.gmra.mxu0 %v2088
      %v2129 = vpop.f32.mrf.mxu0
      %v2130 = vadd.f32 0.0, %v2129
      %2131 = vmatmul.f32.gmra.mxu0 %v1948
      %v2132 = vpop.f32.mrf.mxu0
      %2133 = vdwg.mxu0
      %2135 = vrot.lane.b32.xlu0 %v2130, 64
      %v2136 = vpop.permute.xlu0 %2135
      %2137 = vmatpush.msra.mxu0 0.0
      %2138 = vmatpush.msra.mxu0 0.0
      %2139 = vmatpush.msra.mxu0 0.0
      %2140 = vmatpush.msra.mxu0 0.0
      %2141 = vmatpush.msra.mxu0 0.0
      %2142 = vmatpush.msra.mxu0 0.0
      %2143 = vmatpush.msra.mxu0 0.0
      %2144 = vmatpush.msra.mxu0 0.0
      %2145 = vmatpush.msra.mxu0 0.0
      %2146 = vmatpush.msra.mxu0 0.0
      %2147 = vmatpush.msra.mxu0 0.0
      %2148 = vmatpush.msra.mxu0 0.0
      %2149 = vmatpush.msra.mxu0 0.0
      %2150 = vmatpush.msra.mxu0 0.0
      %2151 = vmatpush.msra.mxu0 0.0
      %2152 = vmatpush.msra.mxu0 %v2110
      %2153 = vmatmul.f32.gmra.mxu0 %v731
      %v2154 = vpop.f32.mrf.mxu0
      %v2155 = vadd.f32 0.0, %v2154
      %2156 = vdwg.mxu0
      %2158 = vrot.lane.b32.xlu0 %v2110, 64
      %v2159 = vpop.permute.xlu0 %2158
      %2160 = vrot.lane.b32.xlu0 %v2136, 64
      %v2161 = vpop.permute.xlu0 %2160
      %2164 = vmatpush.msra.mxu0 0.0
      %2165 = vmatpush.msra.mxu0 0.0
      %2166 = vmatpush.msra.mxu0 0.0
      %2167 = vmatpush.msra.mxu0 0.0
      %2168 = vmatpush.msra.mxu0 0.0
      %2169 = vmatpush.msra.mxu0 0.0
      %2170 = vmatpush.msra.mxu0 0.0
      %2171 = vmatpush.msra.mxu0 0.0
      %2172 = vmatpush.msra.mxu0 0.0
      %2173 = vmatpush.msra.mxu0 0.0
      %2174 = vmatpush.msra.mxu0 0.0
      %2175 = vmatpush.msra.mxu0 0.0
      %2176 = vmatpush.msra.mxu0 0.0
      %2177 = vmatpush.msra.mxu0 0.0
      %2178 = vmatpush.msra.mxu0 %v2161
      %2179 = vmatpush.msra.mxu0 %v2159
      %2180 = vmatmul.f32.gmra.mxu0 %v761
      %v2181 = vpop.f32.mrf.mxu0
      %v2182 = vadd.f32 0.0, %v2181
      %2183 = vdwg.mxu0
      %v2184 = vmax.f32 %v2155, 0.0
      %v2185 = vxor.u32 %v2182, 2147483648
      %v2186 = vmul.f32 %v2185, 1.442695
      %v2187 = vpow.pop %v2186
      %v2188 = vadd.f32 %v2187, 1.0
      %v2189 = vrcp.pop %v2188
      %v2190 = vmul.f32 %v2188, %v2189
      %v2191 = vsub.f32 1.0, %v2190
      %v2192 = vmul.f32 %v2189, %v2191
      %v2193 = vadd.f32 %v2189, %v2192
      %vm2194 = vweird.f32 %v2188
      %vm2195 = vweird.f32 %v2189
      %vm2196 = vmor %vm2194, %vm2195
      %v2197 = vsel %vm2196, %v2189, %v2193
      %v2198 = vand.u32 2147483647, %v2188
      %vm2199 = vcmp.eq.f32.partialorder %v2198, 8.507059e+37
      %v2200 = vand.u32 %v2188, 2147483648
      %v2201 = vor.u32 1.1754944e-38, %v2200
      %v2202 = vsel %vm2199, %v2201, %v2197
      %v2203 = vmul.f32 1.0, %v2202
      %v2204 = vadd.f32 %v2184, %v2203
      %v2205 = vmul.f32 %v2204, 0.5
      %v2206 = vmax.f32 %v2205, 0.0
      %v2207 = vmul.f32 %v2206, 0.9
      %v2208 = vadd.f32 %v2207, %v807
      %v2209 = vmax.f32 %v2208, 0.0
      %v2210 = vld [vmem:[%s9] sm:$0xff]
      %v2211 = vld [vmem:[%s9 + $0x8] sm:$0xff]
      %v2212 = vld [vmem:[%s9 + $0x10] sm:$0xff]
      %v2213 = vld [vmem:[%s9 + $0x18] sm:$0xff]
      %v2214 = vld [vmem:[%s9 + $0x20] sm:$0xff]
      %v2215 = vld [vmem:[%s9 + $0x28] sm:$0xff]
      %v2216 = vld [vmem:[%s9 + $0x30] sm:$0xff]
      %v2217 = vld [vmem:[%s9 + $0x38] sm:$0xff]
      %v2218 = vld [vmem:[%s9 + $0x40] sm:$0xff]
      %v2219 = vld [vmem:[%s9 + $0x48] sm:$0xff]
      %v2220 = vld [vmem:[%s9 + $0x50] sm:$0xff]
      %v2221 = vld [vmem:[%s9 + $0x58] sm:$0xff]
      %v2222 = vld [vmem:[%s9 + $0x60] sm:$0xff]
      %v2223 = vld [vmem:[%s9 + $0x68] sm:$0xff]
      %v2224 = vld [vmem:[%s9 + $0x70] sm:$0xff]
      %v2225 = vld [vmem:[%s9 + $0x78] sm:$0xff]
      %v2226 = vld [vmem:[%s10] sm:$0x3]
      %v2228 = vperm.slane %v2226, 0
      %v2229 = vperm.slane %v2226, 1
      %v2233 = vsel %vm528, %v2209, 0
      %2235 = vmatpush.msra.mxu0 0.0
      %2236 = vmatpush.msra.mxu0 0.0
      %2237 = vmatpush.msra.mxu0 0.0
      %2238 = vmatpush.msra.mxu0 0.0
      %2239 = vmatpush.msra.mxu0 0.0
      %2240 = vmatpush.msra.mxu0 0.0
      %2241 = vmatpush.msra.mxu0 0.0
      %2242 = vmatpush.msra.mxu0 0.0
      %2243 = vmatpush.msra.mxu0 %v2224
      %2244 = vmatpush.msra.mxu0 %v2222
      %2245 = vmatpush.msra.mxu0 %v2220
      %2246 = vmatpush.msra.mxu0 %v2218
      %2247 = vmatpush.msra.mxu0 %v2216
      %2248 = vmatpush.msra.mxu0 %v2214
      %2249 = vmatpush.msra.mxu0 %v2212
      %2250 = vmatpush.msra.mxu0 %v2210
      %2251 = vmatmul.f32.gmra.mxu0 %v2088
      %v2252 = vpop.f32.mrf.mxu0
      %v2253 = vadd.f32 %v2228, %v2252
      %2254 = vmatmul.f32.gmra.mxu0 %v2233
      %v2255 = vpop.f32.mrf.mxu0
      %v2256 = vadd.f32 %v2228, %v2255
      %2257 = vdwg.mxu0
      %2258 = vmatpush.msra.mxu0 0.0
      %2259 = vmatpush.msra.mxu0 0.0
      %2260 = vmatpush.msra.mxu0 0.0
      %2261 = vmatpush.msra.mxu0 0.0
      %2262 = vmatpush.msra.mxu0 0.0
      %2263 = vmatpush.msra.mxu0 0.0
      %2264 = vmatpush.msra.mxu0 0.0
      %2265 = vmatpush.msra.mxu0 0.0
      %2266 = vmatpush.msra.mxu0 %v2225
      %2267 = vmatpush.msra.mxu0 %v2223
      %2268 = vmatpush.msra.mxu0 %v2221
      %2269 = vmatpush.msra.mxu0 %v2219
      %2270 = vmatpush.msra.mxu0 %v2217
      %2271 = vmatpush.msra.mxu0 %v2215
      %2272 = vmatpush.msra.mxu0 %v2213
      %2273 = vmatpush.msra.mxu0 %v2211
      %2274 = vmatmul.f32.gmra.mxu0 %v2088
      %v2275 = vpop.f32.mrf.mxu0
      %v2276 = vadd.f32 %v2229, %v2275
      %2277 = vmatmul.f32.gmra.mxu0 %v2233
      %v2278 = vpop.f32.mrf.mxu0
      %v2279 = vadd.f32 %v2229, %v2278
      %2280 = vdwg.mxu0
      %2285 = vrot.lane.b32.xlu0 %v2253, 32
      %v2286 = vpop.permute.xlu0 %2285
      %2287 = vrot.lane.b32.xlu0 %v2276, 32
      %v2288 = vpop.permute.xlu0 %2287
      %2289 = vrot.lane.b32.xlu0 %v2256, 32
      %v2290 = vpop.permute.xlu0 %2289
      %2291 = vrot.lane.b32.xlu0 %v2279, 32
      %v2292 = vpop.permute.xlu0 %2291
      %vm2293 = vcmask 261120
      %v2294 = vsel %vm2293, %v2286, %v2288
      %v2295 = vsel %vm2293, %v2290, %v2292
      %v2298 = vadd.f32 %v2253, %v2294
      %v2299 = vadd.f32 %v2256, %v2295
      %v2300 = vxor.u32 %v2253, 2147483648
      %v2301 = vxor.u32 %v2256, 2147483648
      %v2302 = vmul.f32 %v2300, 1.442695
      %v2303 = vpow.pop %v2302
      %v2304 = vmul.f32 %v2301, 1.442695
      %v2305 = vpow.pop %v2304
      %v2306 = vadd.f32 %v2303, 1.0
      %v2307 = vadd.f32 %v2305, 1.0
      %v2308 = vrcp.pop %v2306
      %v2309 = vmul.f32 %v2306, %v2308
      %v2310 = vsub.f32 1.0, %v2309
      %v2311 = vmul.f32 %v2308, %v2310
      %v2312 = vadd.f32 %v2308, %v2311
      %vm2313 = vweird.f32 %v2306
      %vm2314 = vweird.f32 %v2308
      %vm2315 = vmor %vm2313, %vm2314
      %v2316 = vsel %vm2315, %v2308, %v2312
      %v2317 = vand.u32 2147483647, %v2306
      %vm2318 = vcmp.eq.f32.partialorder %v2317, 8.507059e+37
      %v2319 = vand.u32 %v2306, 2147483648
      %v2320 = vor.u32 1.1754944e-38, %v2319
      %v2321 = vsel %vm2318, %v2320, %v2316
      %v2322 = vmul.f32 1.0, %v2321
      %v2323 = vrcp.pop %v2307
      %v2324 = vmul.f32 %v2307, %v2323
      %v2325 = vsub.f32 1.0, %v2324
      %v2326 = vmul.f32 %v2323, %v2325
      %v2327 = vadd.f32 %v2323, %v2326
      %vm2328 = vweird.f32 %v2307
      %vm2329 = vweird.f32 %v2323
      %vm2330 = vmor %vm2328, %vm2329
      %v2331 = vsel %vm2330, %v2323, %v2327
      %v2332 = vand.u32 2147483647, %v2307
      %vm2333 = vcmp.eq.f32.partialorder %v2332, 8.507059e+37
      %v2334 = vand.u32 %v2307, 2147483648
      %v2335 = vor.u32 1.1754944e-38, %v2334
      %v2336 = vsel %vm2333, %v2335, %v2331
      %v2337 = vmul.f32 1.0, %v2336
      %2340 = vrot.lane.b32.xlu0 %v2322, 80
      %v2341 = vpop.permute.xlu0 %2340
      %2342 = vrot.lane.b32.xlu0 %v2337, 80
      %v2343 = vpop.permute.xlu0 %2342
      %v2346 = vmul.f32 %v2298, %v2341
      %v2347 = vmul.f32 %v2299, %v2343
      %vm2348 = vcmask 392192
      %2349 = vst.msk [vmem:[%s386] sm:$0xff] %vm2348, %v2346
      %2350 = vst.msk [vmem:[%s386 + $0x8] sm:$0xff] %vm2348, %v2347
      %p2351 = scmp.lt.s32.totalorder %s22, 1
      %s2352 = scalar_select %p2351, %s22, 1
      %s2353 = smul.addr %s2352, 2
      %s2354 = smul.addr %s2353, 8
      %s2355 = scalar_lea.vmem %s11, %s2354
      // Predicated region
      $region65: #{het_stgcn_block.2} parent=63 // pred_check
        %p2356 = pneg %p276
      $region66: #{het_stgcn_block.2} parent=63 // pred_check_branch
        %2358 = sbr.rel (%p2356) target = $region68
      $region67: #{het_stgcn_block.2} parent=63 // pred_region
        _
      $region68: #{het_stgcn_block.2} parent=63 // pred_fallthru
        _
    $region64: #{het_stgcn_block.2} parent=5 // pred_fallthru
      _
    %p2359 = scmp.le.s32.totalorder 2, %s17
    // Predicated region
    $region69: #{het_stgcn_block.2} parent=5 // pred_check
      %p2360 = pneg %p2359
    $region70: #{het_stgcn_block.2} parent=5 // pred_check_branch
      %2362 = sbr.rel (%p2360) target = $region72
    $region71: #{het_stgcn_block.2} parent=5 // pred_region
      %s2363 = ssub.s32 %s17, 2
      // Predicated region
      $region73: #{het_stgcn_block.2} parent=71 // pred_check
        %p2364 = pneg %p282
      $region74: #{het_stgcn_block.2} parent=71 // pred_check_branch
        %2366 = sbr.rel (%p2364) target = $region76
      $region75: #{het_stgcn_block.2} parent=71 // pred_region
        %p2367 = scmp.lt.s32.totalorder %s23, 1
        %s2368 = scalar_select %p2367, %s23, 1
        %s2369 = smul.addr %s2368, 2
        %s2370 = smul.addr %s2369, 8
        %s2371 = scalar_lea.vmem %s11, %s2370
      $region76: #{het_stgcn_block.2} parent=71 // pred_fallthru
        _
    $region72: #{het_stgcn_block.2} parent=5 // pred_fallthru
      _
  $region6: #{het_stgcn_block.2} parent=0 // loop_footer
    %s21 = sadd.s32 1, %s17
  $region7: #{het_stgcn_block.2} parent=0 // loop_footer_branch
    %16 = sbr.rel target = $region3
  $region8: #{het_stgcn_block.2} parent=0 // loop_exit
    _

</llo_original>
